<compile_context>
chip_gen: v7x
topology: tpu7x:2x2x1
jax: 0.10.0
libtpu: 0.0.40
codegen_flags: <defaults>
</compile_context>

<pallas_src>
import math

import jax
import jax.numpy as jnp
from jax import lax
from jax.experimental import pallas as pl
from jax.experimental.pallas import tpu as pltpu  # noqa: F401  (kept for TPU-specific tuning hooks)


# ----------------------------- config ---------------------------------------
VOCAB_SIZE = 128
HIDDEN = 32
NUM_HEADS = 4
HEAD_DIM = HIDDEN // NUM_HEADS
NUM_LAYERS = 2
INTERMEDIATE = 64
MAX_POS = 32
TYPE_VOCAB = 2
LN_EPS = 1e-12

BATCH = 2
SEQ = 8
M = BATCH * SEQ
ATTN_SCALE = 1.0 / math.sqrt(HEAD_DIM)


# ----------------------------- in-kernel helpers -----------------------------
def _matmul(a, b):
    return jnp.dot(a, b, preferred_element_type=jnp.float32)


def _matmul_nt(a, b):
    # a @ b.T without materializing a transpose (contraction on both dim 1).
    return lax.dot_general(a, b, (((1,), (1,)), ((), ())),
                           preferred_element_type=jnp.float32)


def _layernorm(x, g, b):
    mu = jnp.mean(x, axis=-1, keepdims=True)
    xc = x - mu
    var = jnp.mean(xc * xc, axis=-1, keepdims=True)
    return xc * lax.rsqrt(var + LN_EPS) * g + b


def _erf(x):
    # Abramowitz & Stegun 7.1.26 rational approximation, |error| < 1.5e-7.
    ax = jnp.abs(x)
    t = 1.0 / (1.0 + 0.3275911 * ax)
    poly = t * (0.254829592 + t * (-0.284496736 + t * (1.421413741
               + t * (-1.453152027 + t * 1.061405429))))
    y = 1.0 - poly * jnp.exp(-ax * ax)
    return jnp.where(x >= 0.0, y, -y)


def _gelu(x):
    # exact-erf GELU (matches pytorch-pretrained-bert) up to ~1.5e-7.
    return 0.5 * x * (1.0 + _erf(x * 0.7071067811865475))


# ----------------------------- the fused kernel ------------------------------
def bert_mlm_kernel(
    ids_ref, tt_ref, amask_ref, labels_ref,
    word_emb_ref, pos_emb_ref, type_emb_ref, emb_ln_g_ref, emb_ln_b_ref,
    qkv_w_ref, qkv_b_ref, ao_w_ref, ao_b_ref, ao_ln_g_ref, ao_ln_b_ref,
    ff1_w_ref, ff1_b_ref, ff2_w_ref, ff2_b_ref, out_ln_g_ref, out_ln_b_ref,
    tr_w_ref, tr_b_ref, tr_ln_g_ref, tr_ln_b_ref, dec_b_ref,
    logits_ref, loss_ref):
    ids = ids_ref[...]                                   # (M, 1) int32
    tt = tt_ref[...].astype(jnp.float32)                 # (M, 1)
    amask = amask_ref[...].astype(jnp.float32)           # (B, S)
    labels = labels_ref[...]                             # (M, 1) int32

    word_emb = word_emb_ref[...]                         # (V, H)

    # ---- embeddings: one-hot gathers on the MXU, fused with LayerNorm ------
    voc_iota = lax.broadcasted_iota(jnp.int32, (M, VOCAB_SIZE), 1)
    word_oh = (voc_iota == ids).astype(jnp.float32)      # (M, V)
    emb = _matmul(word_oh, word_emb)                     # (M, H)

    pos_rows = pos_emb_ref[...][0:SEQ, :]                # (S, H)
    emb = emb + jnp.concatenate([pos_rows] * BATCH, axis=0)

    type_emb = type_emb_ref[...]                         # (2, H)
    emb = emb + (1.0 - tt) * type_emb[0:1, :] + tt * type_emb[1:2, :]

    x = _layernorm(emb, emb_ln_g_ref[...], emb_ln_b_ref[...])   # (M, H)
    # dropout is a no-op in eval mode.

    add_mask = (1.0 - amask) * -10000.0                  # (B, S) additive mask

    # ---- encoder layers (statically unrolled, x stays VMEM-resident) -------
    for li in range(NUM_LAYERS):
        qkv = _matmul(x, qkv_w_ref[li]) + qkv_b_ref[li]  # (M, 3H)

        ctx_rows = []
        for b in range(BATCH):
            r0, r1 = b * SEQ, (b + 1) * SEQ
            mask_b = add_mask[b:b + 1, :]                # (1, S)
            head_ctx = []
            for h in range(NUM_HEADS):
                c0, c1 = h * HEAD_DIM, (h + 1) * HEAD_DIM
                qh = qkv[r0:r1, c0:c1]                               # (S, D)
                kh = qkv[r0:r1, HIDDEN + c0:HIDDEN + c1]             # (S, D)
                vh = qkv[r0:r1, 2 * HIDDEN + c0:2 * HIDDEN + c1]     # (S, D)
                s = _matmul_nt(qh, kh) * ATTN_SCALE + mask_b         # (S, S)
                s = s - jnp.max(s, axis=-1, keepdims=True)
                p = jnp.exp(s)
                p = p * pl.reciprocal(jnp.sum(p, axis=-1, keepdims=True),
                                      approx=True)
                head_ctx.append(_matmul(p, vh))                      # (S, D)
            ctx_rows.append(jnp.concatenate(head_ctx, axis=-1))      # (S, H)
        ctx = jnp.concatenate(ctx_rows, axis=0)                      # (M, H)

        attn_out = _matmul(ctx, ao_w_ref[li]) + ao_b_ref[li]
        x = _layernorm(x + attn_out, ao_ln_g_ref[li], ao_ln_b_ref[li])

        inter = _gelu(_matmul(x, ff1_w_ref[li]) + ff1_b_ref[li])     # (M, I)
        ff_out = _matmul(inter, ff2_w_ref[li]) + ff2_b_ref[li]
        x = _layernorm(x + ff_out, out_ln_g_ref[li], out_ln_b_ref[li])

    # ---- MLM prediction head: transform -> tied decoder ---------------------
    h_t = _gelu(_matmul(x, tr_w_ref[...]) + tr_b_ref[...])
    h_t = _layernorm(h_t, tr_ln_g_ref[...], tr_ln_b_ref[...])
    logits = _matmul_nt(h_t, word_emb) + dec_b_ref[...]              # (M, V)
    logits_ref[...] = logits

    # ---- log-softmax + masked NLL (ignore_index = -1, mean over valid) ------
    zmax = jnp.max(logits, axis=-1, keepdims=True)
    z = logits - zmax
    lse = jnp.log(jnp.sum(jnp.exp(z), axis=-1, keepdims=True))
    logp = z - lse                                                   # (M, V)

    lab_oh = (voc_iota == labels).astype(jnp.float32)   # all-zero row if -1
    nll = -jnp.sum(logp * lab_oh, axis=-1, keepdims=True)            # (M, 1)
    valid = (labels != -1).astype(jnp.float32)                       # (M, 1)
    nll_sum = jnp.sum(nll, axis=0, keepdims=True)                    # (1, 1)
    cnt = jnp.maximum(jnp.sum(valid, axis=0, keepdims=True), 1.0)    # (1, 1)
    loss_ref[...] = nll_sum / cnt


# ----------------------------- parameters ------------------------------------
def _normal(key, shape, std=0.02):
    return (std * jax.random.normal(key, shape)).astype(jnp.float32)


def init_params(key):
    k = iter(jax.random.split(key, 256))
    p = {}
    p["word_emb"] = _normal(next(k), (VOCAB_SIZE, HIDDEN))
    p["pos_emb"] = _normal(next(k), (MAX_POS, HIDDEN))
    p["type_emb"] = _normal(next(k), (TYPE_VOCAB, HIDDEN))
    p["emb_ln_g"] = jnp.ones((1, HIDDEN), jnp.float32)
    p["emb_ln_b"] = jnp.zeros((1, HIDDEN), jnp.float32)

    qkv_w, ao_w, ff1_w, ff2_w = [], [], [], []
    for _ in range(NUM_LAYERS):
        qw = _normal(next(k), (HIDDEN, HIDDEN))
        kw = _normal(next(k), (HIDDEN, HIDDEN))
        vw = _normal(next(k), (HIDDEN, HIDDEN))
        qkv_w.append(jnp.concatenate([qw, kw, vw], axis=1))   # fused QKV weight
        ao_w.append(_normal(next(k), (HIDDEN, HIDDEN)))
        ff1_w.append(_normal(next(k), (HIDDEN, INTERMEDIATE)))
        ff2_w.append(_normal(next(k), (INTERMEDIATE, HIDDEN)))
    p["qkv_w"] = jnp.stack(qkv_w)                                     # (L,H,3H)
    p["qkv_b"] = jnp.zeros((NUM_LAYERS, 1, 3 * HIDDEN), jnp.float32)
    p["ao_w"] = jnp.stack(ao_w)                                       # (L,H,H)
    p["ao_b"] = jnp.zeros((NUM_LAYERS, 1, HIDDEN), jnp.float32)
    p["ao_ln_g"] = jnp.ones((NUM_LAYERS, 1, HIDDEN), jnp.float32)
    p["ao_ln_b"] = jnp.zeros((NUM_LAYERS, 1, HIDDEN), jnp.float32)
    p["ff1_w"] = jnp.stack(ff1_w)                                     # (L,H,I)
    p["ff1_b"] = jnp.zeros((NUM_LAYERS, 1, INTERMEDIATE), jnp.float32)
    p["ff2_w"] = jnp.stack(ff2_w)                                     # (L,I,H)
    p["ff2_b"] = jnp.zeros((NUM_LAYERS, 1, HIDDEN), jnp.float32)
    p["out_ln_g"] = jnp.ones((NUM_LAYERS, 1, HIDDEN), jnp.float32)
    p["out_ln_b"] = jnp.zeros((NUM_LAYERS, 1, HIDDEN), jnp.float32)

    p["tr_w"] = _normal(next(k), (HIDDEN, HIDDEN))
    p["tr_b"] = jnp.zeros((1, HIDDEN), jnp.float32)
    p["tr_ln_g"] = jnp.ones((1, HIDDEN), jnp.float32)
    p["tr_ln_b"] = jnp.zeros((1, HIDDEN), jnp.float32)
    p["dec_bias"] = jnp.zeros((1, VOCAB_SIZE), jnp.float32)
    return p


# ----------------------------- forward ---------------------------------------
def bert_mlm_forward(params, input_ids, token_type_ids, attention_mask, labels):
    B, S = input_ids.shape
    ids = input_ids.reshape(M, 1).astype(jnp.int32)
    tt = token_type_ids.reshape(M, 1).astype(jnp.int32)
    lab = labels.reshape(M, 1).astype(jnp.int32)
    amask = attention_mask.astype(jnp.int32)

    logits, loss = pl.pallas_call(
        bert_mlm_kernel,
        out_shape=(jax.ShapeDtypeStruct((M, VOCAB_SIZE), jnp.float32),
                   jax.ShapeDtypeStruct((1, 1), jnp.float32)),
    )(ids, tt, amask, lab,
      params["word_emb"], params["pos_emb"], params["type_emb"],
      params["emb_ln_g"], params["emb_ln_b"],
      params["qkv_w"], params["qkv_b"],
      params["ao_w"], params["ao_b"], params["ao_ln_g"], params["ao_ln_b"],
      params["ff1_w"], params["ff1_b"],
      params["ff2_w"], params["ff2_b"], params["out_ln_g"], params["out_ln_b"],
      params["tr_w"], params["tr_b"], params["tr_ln_g"], params["tr_ln_b"],
      params["dec_bias"])

    return loss[0, 0], logits.reshape(B, S, VOCAB_SIZE)


# ----------------------------- main ------------------------------------------
if __name__ == "__main__":
    root = jax.random.PRNGKey(0)
    kp, ki, kt, kl = jax.random.split(root, 4)

    params = init_params(kp)

    input_ids = jax.random.randint(ki, (BATCH, SEQ), 0, VOCAB_SIZE,
                                   dtype=jnp.int32)
    token_type_ids = jax.random.randint(kt, (BATCH, SEQ), 0, TYPE_VOCAB,
                                        dtype=jnp.int32)
    attention_mask = jnp.ones((BATCH, SEQ), dtype=jnp.int32)
    attention_mask = attention_mask.at[:, -2:].set(0)   # pad last two positions
    labels = jax.random.randint(kl, (BATCH, SEQ), 0, VOCAB_SIZE,
                                dtype=jnp.int32)
    labels = labels.at[:, ::2].set(-1)                  # ignore every other pos

    fwd = jax.jit(bert_mlm_forward)
    loss, logits = fwd(params, input_ids, token_type_ids, attention_mask,
                       labels)
    jax.block_until_ready((loss, logits))
    print("KERNEL_OK")
</pallas_src>

<mosaic_0001>
module attributes {stable_mosaic.version = 11 : i64} {
  func.func @bert_mlm_kernel(%arg0: memref<16x1xi32, #tpu.memory_space<vmem>>, %arg1: memref<16x1xi32, #tpu.memory_space<vmem>>, %arg2: memref<2x8xi32, #tpu.memory_space<vmem>>, %arg3: memref<16x1xi32, #tpu.memory_space<vmem>>, %arg4: memref<128x32xf32, #tpu.memory_space<vmem>>, %arg5: memref<32x32xf32, #tpu.memory_space<vmem>>, %arg6: memref<2x32xf32, #tpu.memory_space<vmem>>, %arg7: memref<1x32xf32, #tpu.memory_space<vmem>>, %arg8: memref<1x32xf32, #tpu.memory_space<vmem>>, %arg9: memref<2x32x96xf32, #tpu.memory_space<vmem>>, %arg10: memref<2x1x96xf32, #tpu.memory_space<vmem>>, %arg11: memref<2x32x32xf32, #tpu.memory_space<vmem>>, %arg12: memref<2x1x32xf32, #tpu.memory_space<vmem>>, %arg13: memref<2x1x32xf32, #tpu.memory_space<vmem>>, %arg14: memref<2x1x32xf32, #tpu.memory_space<vmem>>, %arg15: memref<2x32x64xf32, #tpu.memory_space<vmem>>, %arg16: memref<2x1x64xf32, #tpu.memory_space<vmem>>, %arg17: memref<2x64x32xf32, #tpu.memory_space<vmem>>, %arg18: memref<2x1x32xf32, #tpu.memory_space<vmem>>, %arg19: memref<2x1x32xf32, #tpu.memory_space<vmem>>, %arg20: memref<2x1x32xf32, #tpu.memory_space<vmem>>, %arg21: memref<32x32xf32, #tpu.memory_space<vmem>>, %arg22: memref<1x32xf32, #tpu.memory_space<vmem>>, %arg23: memref<1x32xf32, #tpu.memory_space<vmem>>, %arg24: memref<1x32xf32, #tpu.memory_space<vmem>>, %arg25: memref<1x128xf32, #tpu.memory_space<vmem>>, %arg26: memref<16x128xf32, #tpu.memory_space<vmem>>, %arg27: memref<1x1xf32, #tpu.memory_space<vmem>>) attributes {dimension_semantics = [], scalar_prefetch = 0 : i64, scratch_operands = 0 : i64, tpu.core_type = #tpu.core_type<tc>} {
    %c0 = arith.constant 0 : index
    %c0_0 = arith.constant 0 : index
    %0 = vector.load %arg0[%c0, %c0_0] : memref<16x1xi32, #tpu.memory_space<vmem>>, vector<16x1xi32>
    %c0_1 = arith.constant 0 : index
    %c0_2 = arith.constant 0 : index
    %1 = vector.load %arg1[%c0_1, %c0_2] : memref<16x1xi32, #tpu.memory_space<vmem>>, vector<16x1xi32>
    %2 = arith.sitofp %1 : vector<16x1xi32> to vector<16x1xf32>
    %c0_3 = arith.constant 0 : index
    %c0_4 = arith.constant 0 : index
    %3 = vector.load %arg2[%c0_3, %c0_4] : memref<2x8xi32, #tpu.memory_space<vmem>>, vector<2x8xi32>
    %4 = arith.sitofp %3 : vector<2x8xi32> to vector<2x8xf32>
    %c0_5 = arith.constant 0 : index
    %c0_6 = arith.constant 0 : index
    %5 = vector.load %arg3[%c0_5, %c0_6] : memref<16x1xi32, #tpu.memory_space<vmem>>, vector<16x1xi32>
    %c0_7 = arith.constant 0 : index
    %c0_8 = arith.constant 0 : index
    %6 = vector.load %arg4[%c0_7, %c0_8] : memref<128x32xf32, #tpu.memory_space<vmem>>, vector<128x32xf32>
    %7 = tpu.iota {dimensions = array<i32: 1>} : vector<16x128xi32>
    %8 = vector.broadcast %0 : vector<16x1xi32> to vector<16x128xi32>
    %9 = arith.cmpi eq, %7, %8 : vector<16x128xi32>
    %10 = arith.extui %9 : vector<16x128xi1> to vector<16x128xi32>
    %11 = arith.sitofp %10 : vector<16x128xi32> to vector<16x128xf32>
    %cst = arith.constant dense<0.000000e+00> : vector<16x32xf32>
    %12 = tpu.matmul %11, %6, %cst {dimension_numbers = #tpu.dot_dimension_numbers<[1], [0], [0], [1], [0, 0, 1, 1], [], []>} : vector<16x128xf32>, vector<128x32xf32>, vector<16x32xf32> -> vector<16x32xf32>
    %c0_9 = arith.constant 0 : index
    %c0_10 = arith.constant 0 : index
    %13 = vector.load %arg5[%c0_9, %c0_10] : memref<32x32xf32, #tpu.memory_space<vmem>>, vector<32x32xf32>
    %14 = vector.extract_strided_slice %13 {offsets = [0, 0], sizes = [8, 32], strides = [1, 1]} : vector<32x32xf32> to vector<8x32xf32>
    %15 = tpu.concatenate %14, %14 in 0 : vector<8x32xf32>, vector<8x32xf32> -> vector<16x32xf32>
    %16 = arith.addf %12, %15 : vector<16x32xf32>
    %c0_11 = arith.constant 0 : index
    %c0_12 = arith.constant 0 : index
    %17 = vector.load %arg6[%c0_11, %c0_12] : memref<2x32xf32, #tpu.memory_space<vmem>>, vector<2x32xf32>
    %cst_13 = arith.constant 1.000000e+00 : f32
    %18 = vector.broadcast %cst_13 : f32 to vector<16x1xf32>
    %19 = arith.subf %18, %2 : vector<16x1xf32>
    %20 = vector.extract_strided_slice %17 {offsets = [0, 0], sizes = [1, 32], strides = [1, 1]} : vector<2x32xf32> to vector<1x32xf32>
    %21 = vector.broadcast %19 : vector<16x1xf32> to vector<16x32xf32>
    %22 = vector.broadcast %20 : vector<1x32xf32> to vector<16x32xf32>
    %23 = arith.mulf %21, %22 : vector<16x32xf32>
    %24 = arith.addf %16, %23 : vector<16x32xf32>
    %25 = vector.extract_strided_slice %17 {offsets = [1, 0], sizes = [1, 32], strides = [1, 1]} : vector<2x32xf32> to vector<1x32xf32>
    %26 = vector.broadcast %2 : vector<16x1xf32> to vector<16x32xf32>
    %27 = vector.broadcast %25 : vector<1x32xf32> to vector<16x32xf32>
    %28 = arith.mulf %26, %27 : vector<16x32xf32>
    %29 = arith.addf %24, %28 : vector<16x32xf32>
    %c0_14 = arith.constant 0 : index
    %c0_15 = arith.constant 0 : index
    %30 = vector.load %arg7[%c0_14, %c0_15] : memref<1x32xf32, #tpu.memory_space<vmem>>, vector<1x32xf32>
    %c0_16 = arith.constant 0 : index
    %c0_17 = arith.constant 0 : index
    %31 = vector.load %arg8[%c0_16, %c0_17] : memref<1x32xf32, #tpu.memory_space<vmem>>, vector<1x32xf32>
    %cst_18 = arith.constant dense<0.000000e+00> : vector<16xf32>
    %32 = vector.multi_reduction <add>, %29, %cst_18 [1] : vector<16x32xf32> to vector<16xf32>
    %33 = vector.shape_cast %32 : vector<16xf32> to vector<16x1xf32>
    %cst_19 = arith.constant 3.200000e+01 : f32
    %34 = vector.broadcast %cst_19 : f32 to vector<16x1xf32>
    %35 = arith.divf %33, %34 : vector<16x1xf32>
    %36 = vector.broadcast %35 : vector<16x1xf32> to vector<16x32xf32>
    %37 = arith.subf %29, %36 : vector<16x32xf32>
    %38 = arith.mulf %37, %37 : vector<16x32xf32>
    %cst_20 = arith.constant dense<0.000000e+00> : vector<16xf32>
    %39 = vector.multi_reduction <add>, %38, %cst_20 [1] : vector<16x32xf32> to vector<16xf32>
    %40 = vector.shape_cast %39 : vector<16xf32> to vector<16x1xf32>
    %cst_21 = arith.constant 3.200000e+01 : f32
    %41 = vector.broadcast %cst_21 : f32 to vector<16x1xf32>
    %42 = arith.divf %40, %41 : vector<16x1xf32>
    %cst_22 = arith.constant 9.99999996E-13 : f32
    %43 = vector.broadcast %cst_22 : f32 to vector<16x1xf32>
    %44 = arith.addf %42, %43 : vector<16x1xf32>
    %45 = math.rsqrt %44 : vector<16x1xf32>
    %46 = vector.broadcast %45 : vector<16x1xf32> to vector<16x32xf32>
    %47 = arith.mulf %37, %46 : vector<16x32xf32>
    %48 = vector.broadcast %30 : vector<1x32xf32> to vector<16x32xf32>
    %49 = arith.mulf %47, %48 : vector<16x32xf32>
    %50 = vector.broadcast %31 : vector<1x32xf32> to vector<16x32xf32>
    %51 = arith.addf %49, %50 : vector<16x32xf32>
    %cst_23 = arith.constant 1.000000e+00 : f32
    %52 = vector.broadcast %cst_23 : f32 to vector<2x8xf32>
    %53 = arith.subf %52, %4 : vector<2x8xf32>
    %cst_24 = arith.constant -1.000000e+04 : f32
    %54 = vector.broadcast %cst_24 : f32 to vector<2x8xf32>
    %55 = arith.mulf %53, %54 : vector<2x8xf32>
    %c0_25 = arith.constant 0 : index
    %c0_26 = arith.constant 0 : index
    %c0_27 = arith.constant 0 : index
    %56 = vector.load %arg9[%c0_25, %c0_26, %c0_27] : memref<2x32x96xf32, #tpu.memory_space<vmem>>, vector<1x32x96xf32>
    %57 = vector.shape_cast %56 : vector<1x32x96xf32> to vector<32x96xf32>
    %cst_28 = arith.constant dense<0.000000e+00> : vector<16x96xf32>
    %58 = tpu.matmul %51, %57, %cst_28 {dimension_numbers = #tpu.dot_dimension_numbers<[1], [0], [0], [1], [0, 0, 1, 1], [], []>} : vector<16x32xf32>, vector<32x96xf32>, vector<16x96xf32> -> vector<16x96xf32>
    %c0_29 = arith.constant 0 : index
    %c0_30 = arith.constant 0 : index
    %c0_31 = arith.constant 0 : index
    %59 = vector.load %arg10[%c0_29, %c0_30, %c0_31] : memref<2x1x96xf32, #tpu.memory_space<vmem>>, vector<1x1x96xf32>
    %60 = vector.shape_cast %59 : vector<1x1x96xf32> to vector<1x96xf32>
    %61 = vector.broadcast %60 : vector<1x96xf32> to vector<16x96xf32>
    %62 = arith.addf %58, %61 : vector<16x96xf32>
    %63 = vector.extract_strided_slice %55 {offsets = [0, 0], sizes = [1, 8], strides = [1, 1]} : vector<2x8xf32> to vector<1x8xf32>
    %64 = vector.extract_strided_slice %62 {offsets = [0, 0], sizes = [8, 8], strides = [1, 1]} : vector<16x96xf32> to vector<8x8xf32>
    %65 = vector.extract_strided_slice %62 {offsets = [0, 32], sizes = [8, 8], strides = [1, 1]} : vector<16x96xf32> to vector<8x8xf32>
    %66 = vector.extract_strided_slice %62 {offsets = [0, 64], sizes = [8, 8], strides = [1, 1]} : vector<16x96xf32> to vector<8x8xf32>
    %cst_32 = arith.constant dense<0.000000e+00> : vector<8x8xf32>
    %67 = tpu.matmul %64, %65, %cst_32 {dimension_numbers = #tpu.dot_dimension_numbers<[1], [1], [0], [0], [0, 0, 1, 0], [], []>} : vector<8x8xf32>, vector<8x8xf32>, vector<8x8xf32> -> vector<8x8xf32>
    %cst_33 = arith.constant 0.353553385 : f32
    %68 = vector.broadcast %cst_33 : f32 to vector<8x8xf32>
    %69 = arith.mulf %67, %68 : vector<8x8xf32>
    %70 = vector.broadcast %63 : vector<1x8xf32> to vector<8x8xf32>
    %71 = arith.addf %69, %70 : vector<8x8xf32>
    %cst_34 = arith.constant dense<0xFF800000> : vector<8xf32>
    %72 = vector.multi_reduction <maximumf>, %71, %cst_34 [1] : vector<8x8xf32> to vector<8xf32>
    %73 = vector.shape_cast %72 : vector<8xf32> to vector<8x1xf32>
    %74 = vector.broadcast %73 : vector<8x1xf32> to vector<8x8xf32>
    %75 = arith.subf %71, %74 : vector<8x8xf32>
    %76 = math.exp %75 : vector<8x8xf32>
    %cst_35 = arith.constant dense<0.000000e+00> : vector<8xf32>
    %77 = vector.multi_reduction <add>, %76, %cst_35 [1] : vector<8x8xf32> to vector<8xf32>
    %78 = vector.shape_cast %77 : vector<8xf32> to vector<8x1xf32>
    %79 = tpu.reciprocal %78 {approx = true} : vector<8x1xf32> -> vector<8x1xf32>
    %80 = vector.broadcast %79 : vector<8x1xf32> to vector<8x8xf32>
    %81 = arith.mulf %76, %80 : vector<8x8xf32>
    %cst_36 = arith.constant dense<0.000000e+00> : vector<8x8xf32>
    %82 = tpu.matmul %81, %66, %cst_36 {dimension_numbers = #tpu.dot_dimension_numbers<[1], [0], [0], [1], [0, 0, 1, 1], [], []>} : vector<8x8xf32>, vector<8x8xf32>, vector<8x8xf32> -> vector<8x8xf32>
    %83 = vector.extract_strided_slice %62 {offsets = [0, 8], sizes = [8, 8], strides = [1, 1]} : vector<16x96xf32> to vector<8x8xf32>
    %84 = vector.extract_strided_slice %62 {offsets = [0, 40], sizes = [8, 8], strides = [1, 1]} : vector<16x96xf32> to vector<8x8xf32>
    %85 = vector.extract_strided_slice %62 {offsets = [0, 72], sizes = [8, 8], strides = [1, 1]} : vector<16x96xf32> to vector<8x8xf32>
    %cst_37 = arith.constant dense<0.000000e+00> : vector<8x8xf32>
    %86 = tpu.matmul %83, %84, %cst_37 {dimension_numbers = #tpu.dot_dimension_numbers<[1], [1], [0], [0], [0, 0, 1, 0], [], []>} : vector<8x8xf32>, vector<8x8xf32>, vector<8x8xf32> -> vector<8x8xf32>
    %cst_38 = arith.constant 0.353553385 : f32
    %87 = vector.broadcast %cst_38 : f32 to vector<8x8xf32>
    %88 = arith.mulf %86, %87 : vector<8x8xf32>
    %89 = vector.broadcast %63 : vector<1x8xf32> to vector<8x8xf32>
    %90 = arith.addf %88, %89 : vector<8x8xf32>
    %cst_39 = arith.constant dense<0xFF800000> : vector<8xf32>
    %91 = vector.multi_reduction <maximumf>, %90, %cst_39 [1] : vector<8x8xf32> to vector<8xf32>
    %92 = vector.shape_cast %91 : vector<8xf32> to vector<8x1xf32>
    %93 = vector.broadcast %92 : vector<8x1xf32> to vector<8x8xf32>
    %94 = arith.subf %90, %93 : vector<8x8xf32>
    %95 = math.exp %94 : vector<8x8xf32>
    %cst_40 = arith.constant dense<0.000000e+00> : vector<8xf32>
    %96 = vector.multi_reduction <add>, %95, %cst_40 [1] : vector<8x8xf32> to vector<8xf32>
    %97 = vector.shape_cast %96 : vector<8xf32> to vector<8x1xf32>
    %98 = tpu.reciprocal %97 {approx = true} : vector<8x1xf32> -> vector<8x1xf32>
    %99 = vector.broadcast %98 : vector<8x1xf32> to vector<8x8xf32>
    %100 = arith.mulf %95, %99 : vector<8x8xf32>
    %cst_41 = arith.constant dense<0.000000e+00> : vector<8x8xf32>
    %101 = tpu.matmul %100, %85, %cst_41 {dimension_numbers = #tpu.dot_dimension_numbers<[1], [0], [0], [1], [0, 0, 1, 1], [], []>} : vector<8x8xf32>, vector<8x8xf32>, vector<8x8xf32> -> vector<8x8xf32>
    %102 = vector.extract_strided_slice %62 {offsets = [0, 16], sizes = [8, 8], strides = [1, 1]} : vector<16x96xf32> to vector<8x8xf32>
    %103 = vector.extract_strided_slice %62 {offsets = [0, 48], sizes = [8, 8], strides = [1, 1]} : vector<16x96xf32> to vector<8x8xf32>
    %104 = vector.extract_strided_slice %62 {offsets = [0, 80], sizes = [8, 8], strides = [1, 1]} : vector<16x96xf32> to vector<8x8xf32>
    %cst_42 = arith.constant dense<0.000000e+00> : vector<8x8xf32>
    %105 = tpu.matmul %102, %103, %cst_42 {dimension_numbers = #tpu.dot_dimension_numbers<[1], [1], [0], [0], [0, 0, 1, 0], [], []>} : vector<8x8xf32>, vector<8x8xf32>, vector<8x8xf32> -> vector<8x8xf32>
    %cst_43 = arith.constant 0.353553385 : f32
    %106 = vector.broadcast %cst_43 : f32 to vector<8x8xf32>
    %107 = arith.mulf %105, %106 : vector<8x8xf32>
    %108 = vector.broadcast %63 : vector<1x8xf32> to vector<8x8xf32>
    %109 = arith.addf %107, %108 : vector<8x8xf32>
    %cst_44 = arith.constant dense<0xFF800000> : vector<8xf32>
    %110 = vector.multi_reduction <maximumf>, %109, %cst_44 [1] : vector<8x8xf32> to vector<8xf32>
    %111 = vector.shape_cast %110 : vector<8xf32> to vector<8x1xf32>
    %112 = vector.broadcast %111 : vector<8x1xf32> to vector<8x8xf32>
    %113 = arith.subf %109, %112 : vector<8x8xf32>
    %114 = math.exp %113 : vector<8x8xf32>
    %cst_45 = arith.constant dense<0.000000e+00> : vector<8xf32>
    %115 = vector.multi_reduction <add>, %114, %cst_45 [1] : vector<8x8xf32> to vector<8xf32>
    %116 = vector.shape_cast %115 : vector<8xf32> to vector<8x1xf32>
    %117 = tpu.reciprocal %116 {approx = true} : vector<8x1xf32> -> vector<8x1xf32>
    %118 = vector.broadcast %117 : vector<8x1xf32> to vector<8x8xf32>
    %119 = arith.mulf %114, %118 : vector<8x8xf32>
    %cst_46 = arith.constant dense<0.000000e+00> : vector<8x8xf32>
    %120 = tpu.matmul %119, %104, %cst_46 {dimension_numbers = #tpu.dot_dimension_numbers<[1], [0], [0], [1], [0, 0, 1, 1], [], []>} : vector<8x8xf32>, vector<8x8xf32>, vector<8x8xf32> -> vector<8x8xf32>
    %121 = vector.extract_strided_slice %62 {offsets = [0, 24], sizes = [8, 8], strides = [1, 1]} : vector<16x96xf32> to vector<8x8xf32>
    %122 = vector.extract_strided_slice %62 {offsets = [0, 56], sizes = [8, 8], strides = [1, 1]} : vector<16x96xf32> to vector<8x8xf32>
    %123 = vector.extract_strided_slice %62 {offsets = [0, 88], sizes = [8, 8], strides = [1, 1]} : vector<16x96xf32> to vector<8x8xf32>
    %cst_47 = arith.constant dense<0.000000e+00> : vector<8x8xf32>
    %124 = tpu.matmul %121, %122, %cst_47 {dimension_numbers = #tpu.dot_dimension_numbers<[1], [1], [0], [0], [0, 0, 1, 0], [], []>} : vector<8x8xf32>, vector<8x8xf32>, vector<8x8xf32> -> vector<8x8xf32>
    %cst_48 = arith.constant 0.353553385 : f32
    %125 = vector.broadcast %cst_48 : f32 to vector<8x8xf32>
    %126 = arith.mulf %124, %125 : vector<8x8xf32>
    %127 = vector.broadcast %63 : vector<1x8xf32> to vector<8x8xf32>
    %128 = arith.addf %126, %127 : vector<8x8xf32>
    %cst_49 = arith.constant dense<0xFF800000> : vector<8xf32>
    %129 = vector.multi_reduction <maximumf>, %128, %cst_49 [1] : vector<8x8xf32> to vector<8xf32>
    %130 = vector.shape_cast %129 : vector<8xf32> to vector<8x1xf32>
    %131 = vector.broadcast %130 : vector<8x1xf32> to vector<8x8xf32>
    %132 = arith.subf %128, %131 : vector<8x8xf32>
    %133 = math.exp %132 : vector<8x8xf32>
    %cst_50 = arith.constant dense<0.000000e+00> : vector<8xf32>
    %134 = vector.multi_reduction <add>, %133, %cst_50 [1] : vector<8x8xf32> to vector<8xf32>
    %135 = vector.shape_cast %134 : vector<8xf32> to vector<8x1xf32>
    %136 = tpu.reciprocal %135 {approx = true} : vector<8x1xf32> -> vector<8x1xf32>
    %137 = vector.broadcast %136 : vector<8x1xf32> to vector<8x8xf32>
    %138 = arith.mulf %133, %137 : vector<8x8xf32>
    %cst_51 = arith.constant dense<0.000000e+00> : vector<8x8xf32>
    %139 = tpu.matmul %138, %123, %cst_51 {dimension_numbers = #tpu.dot_dimension_numbers<[1], [0], [0], [1], [0, 0, 1, 1], [], []>} : vector<8x8xf32>, vector<8x8xf32>, vector<8x8xf32> -> vector<8x8xf32>
    %140 = tpu.concatenate %82, %101, %120, %139 in 1 : vector<8x8xf32>, vector<8x8xf32>, vector<8x8xf32>, vector<8x8xf32> -> vector<8x32xf32>
    %141 = vector.extract_strided_slice %55 {offsets = [1, 0], sizes = [1, 8], strides = [1, 1]} : vector<2x8xf32> to vector<1x8xf32>
    %142 = vector.extract_strided_slice %62 {offsets = [8, 0], sizes = [8, 8], strides = [1, 1]} : vector<16x96xf32> to vector<8x8xf32>
    %143 = vector.extract_strided_slice %62 {offsets = [8, 32], sizes = [8, 8], strides = [1, 1]} : vector<16x96xf32> to vector<8x8xf32>
    %144 = vector.extract_strided_slice %62 {offsets = [8, 64], sizes = [8, 8], strides = [1, 1]} : vector<16x96xf32> to vector<8x8xf32>
    %cst_52 = arith.constant dense<0.000000e+00> : vector<8x8xf32>
    %145 = tpu.matmul %142, %143, %cst_52 {dimension_numbers = #tpu.dot_dimension_numbers<[1], [1], [0], [0], [0, 0, 1, 0], [], []>} : vector<8x8xf32>, vector<8x8xf32>, vector<8x8xf32> -> vector<8x8xf32>
    %cst_53 = arith.constant 0.353553385 : f32
    %146 = vector.broadcast %cst_53 : f32 to vector<8x8xf32>
    %147 = arith.mulf %145, %146 : vector<8x8xf32>
    %148 = vector.broadcast %141 : vector<1x8xf32> to vector<8x8xf32>
    %149 = arith.addf %147, %148 : vector<8x8xf32>
    %cst_54 = arith.constant dense<0xFF800000> : vector<8xf32>
    %150 = vector.multi_reduction <maximumf>, %149, %cst_54 [1] : vector<8x8xf32> to vector<8xf32>
    %151 = vector.shape_cast %150 : vector<8xf32> to vector<8x1xf32>
    %152 = vector.broadcast %151 : vector<8x1xf32> to vector<8x8xf32>
    %153 = arith.subf %149, %152 : vector<8x8xf32>
    %154 = math.exp %153 : vector<8x8xf32>
    %cst_55 = arith.constant dense<0.000000e+00> : vector<8xf32>
    %155 = vector.multi_reduction <add>, %154, %cst_55 [1] : vector<8x8xf32> to vector<8xf32>
    %156 = vector.shape_cast %155 : vector<8xf32> to vector<8x1xf32>
    %157 = tpu.reciprocal %156 {approx = true} : vector<8x1xf32> -> vector<8x1xf32>
    %158 = vector.broadcast %157 : vector<8x1xf32> to vector<8x8xf32>
    %159 = arith.mulf %154, %158 : vector<8x8xf32>
    %cst_56 = arith.constant dense<0.000000e+00> : vector<8x8xf32>
    %160 = tpu.matmul %159, %144, %cst_56 {dimension_numbers = #tpu.dot_dimension_numbers<[1], [0], [0], [1], [0, 0, 1, 1], [], []>} : vector<8x8xf32>, vector<8x8xf32>, vector<8x8xf32> -> vector<8x8xf32>
    %161 = vector.extract_strided_slice %62 {offsets = [8, 8], sizes = [8, 8], strides = [1, 1]} : vector<16x96xf32> to vector<8x8xf32>
    %162 = vector.extract_strided_slice %62 {offsets = [8, 40], sizes = [8, 8], strides = [1, 1]} : vector<16x96xf32> to vector<8x8xf32>
    %163 = vector.extract_strided_slice %62 {offsets = [8, 72], sizes = [8, 8], strides = [1, 1]} : vector<16x96xf32> to vector<8x8xf32>
    %cst_57 = arith.constant dense<0.000000e+00> : vector<8x8xf32>
    %164 = tpu.matmul %161, %162, %cst_57 {dimension_numbers = #tpu.dot_dimension_numbers<[1], [1], [0], [0], [0, 0, 1, 0], [], []>} : vector<8x8xf32>, vector<8x8xf32>, vector<8x8xf32> -> vector<8x8xf32>
    %cst_58 = arith.constant 0.353553385 : f32
    %165 = vector.broadcast %cst_58 : f32 to vector<8x8xf32>
    %166 = arith.mulf %164, %165 : vector<8x8xf32>
    %167 = vector.broadcast %141 : vector<1x8xf32> to vector<8x8xf32>
    %168 = arith.addf %166, %167 : vector<8x8xf32>
    %cst_59 = arith.constant dense<0xFF800000> : vector<8xf32>
    %169 = vector.multi_reduction <maximumf>, %168, %cst_59 [1] : vector<8x8xf32> to vector<8xf32>
    %170 = vector.shape_cast %169 : vector<8xf32> to vector<8x1xf32>
    %171 = vector.broadcast %170 : vector<8x1xf32> to vector<8x8xf32>
    %172 = arith.subf %168, %171 : vector<8x8xf32>
    %173 = math.exp %172 : vector<8x8xf32>
    %cst_60 = arith.constant dense<0.000000e+00> : vector<8xf32>
    %174 = vector.multi_reduction <add>, %173, %cst_60 [1] : vector<8x8xf32> to vector<8xf32>
    %175 = vector.shape_cast %174 : vector<8xf32> to vector<8x1xf32>
    %176 = tpu.reciprocal %175 {approx = true} : vector<8x1xf32> -> vector<8x1xf32>
    %177 = vector.broadcast %176 : vector<8x1xf32> to vector<8x8xf32>
    %178 = arith.mulf %173, %177 : vector<8x8xf32>
    %cst_61 = arith.constant dense<0.000000e+00> : vector<8x8xf32>
    %179 = tpu.matmul %178, %163, %cst_61 {dimension_numbers = #tpu.dot_dimension_numbers<[1], [0], [0], [1], [0, 0, 1, 1], [], []>} : vector<8x8xf32>, vector<8x8xf32>, vector<8x8xf32> -> vector<8x8xf32>
    %180 = vector.extract_strided_slice %62 {offsets = [8, 16], sizes = [8, 8], strides = [1, 1]} : vector<16x96xf32> to vector<8x8xf32>
    %181 = vector.extract_strided_slice %62 {offsets = [8, 48], sizes = [8, 8], strides = [1, 1]} : vector<16x96xf32> to vector<8x8xf32>
    %182 = vector.extract_strided_slice %62 {offsets = [8, 80], sizes = [8, 8], strides = [1, 1]} : vector<16x96xf32> to vector<8x8xf32>
    %cst_62 = arith.constant dense<0.000000e+00> : vector<8x8xf32>
    %183 = tpu.matmul %180, %181, %cst_62 {dimension_numbers = #tpu.dot_dimension_numbers<[1], [1], [0], [0], [0, 0, 1, 0], [], []>} : vector<8x8xf32>, vector<8x8xf32>, vector<8x8xf32> -> vector<8x8xf32>
    %cst_63 = arith.constant 0.353553385 : f32
    %184 = vector.broadcast %cst_63 : f32 to vector<8x8xf32>
    %185 = arith.mulf %183, %184 : vector<8x8xf32>
    %186 = vector.broadcast %141 : vector<1x8xf32> to vector<8x8xf32>
    %187 = arith.addf %185, %186 : vector<8x8xf32>
    %cst_64 = arith.constant dense<0xFF800000> : vector<8xf32>
    %188 = vector.multi_reduction <maximumf>, %187, %cst_64 [1] : vector<8x8xf32> to vector<8xf32>
    %189 = vector.shape_cast %188 : vector<8xf32> to vector<8x1xf32>
    %190 = vector.broadcast %189 : vector<8x1xf32> to vector<8x8xf32>
    %191 = arith.subf %187, %190 : vector<8x8xf32>
    %192 = math.exp %191 : vector<8x8xf32>
    %cst_65 = arith.constant dense<0.000000e+00> : vector<8xf32>
    %193 = vector.multi_reduction <add>, %192, %cst_65 [1] : vector<8x8xf32> to vector<8xf32>
    %194 = vector.shape_cast %193 : vector<8xf32> to vector<8x1xf32>
    %195 = tpu.reciprocal %194 {approx = true} : vector<8x1xf32> -> vector<8x1xf32>
    %196 = vector.broadcast %195 : vector<8x1xf32> to vector<8x8xf32>
    %197 = arith.mulf %192, %196 : vector<8x8xf32>
    %cst_66 = arith.constant dense<0.000000e+00> : vector<8x8xf32>
    %198 = tpu.matmul %197, %182, %cst_66 {dimension_numbers = #tpu.dot_dimension_numbers<[1], [0], [0], [1], [0, 0, 1, 1], [], []>} : vector<8x8xf32>, vector<8x8xf32>, vector<8x8xf32> -> vector<8x8xf32>
    %199 = vector.extract_strided_slice %62 {offsets = [8, 24], sizes = [8, 8], strides = [1, 1]} : vector<16x96xf32> to vector<8x8xf32>
    %200 = vector.extract_strided_slice %62 {offsets = [8, 56], sizes = [8, 8], strides = [1, 1]} : vector<16x96xf32> to vector<8x8xf32>
    %201 = vector.extract_strided_slice %62 {offsets = [8, 88], sizes = [8, 8], strides = [1, 1]} : vector<16x96xf32> to vector<8x8xf32>
    %cst_67 = arith.constant dense<0.000000e+00> : vector<8x8xf32>
    %202 = tpu.matmul %199, %200, %cst_67 {dimension_numbers = #tpu.dot_dimension_numbers<[1], [1], [0], [0], [0, 0, 1, 0], [], []>} : vector<8x8xf32>, vector<8x8xf32>, vector<8x8xf32> -> vector<8x8xf32>
    %cst_68 = arith.constant 0.353553385 : f32
    %203 = vector.broadcast %cst_68 : f32 to vector<8x8xf32>
    %204 = arith.mulf %202, %203 : vector<8x8xf32>
    %205 = vector.broadcast %141 : vector<1x8xf32> to vector<8x8xf32>
    %206 = arith.addf %204, %205 : vector<8x8xf32>
    %cst_69 = arith.constant dense<0xFF800000> : vector<8xf32>
    %207 = vector.multi_reduction <maximumf>, %206, %cst_69 [1] : vector<8x8xf32> to vector<8xf32>
    %208 = vector.shape_cast %207 : vector<8xf32> to vector<8x1xf32>
    %209 = vector.broadcast %208 : vector<8x1xf32> to vector<8x8xf32>
    %210 = arith.subf %206, %209 : vector<8x8xf32>
    %211 = math.exp %210 : vector<8x8xf32>
    %cst_70 = arith.constant dense<0.000000e+00> : vector<8xf32>
    %212 = vector.multi_reduction <add>, %211, %cst_70 [1] : vector<8x8xf32> to vector<8xf32>
    %213 = vector.shape_cast %212 : vector<8xf32> to vector<8x1xf32>
    %214 = tpu.reciprocal %213 {approx = true} : vector<8x1xf32> -> vector<8x1xf32>
    %215 = vector.broadcast %214 : vector<8x1xf32> to vector<8x8xf32>
    %216 = arith.mulf %211, %215 : vector<8x8xf32>
    %cst_71 = arith.constant dense<0.000000e+00> : vector<8x8xf32>
    %217 = tpu.matmul %216, %201, %cst_71 {dimension_numbers = #tpu.dot_dimension_numbers<[1], [0], [0], [1], [0, 0, 1, 1], [], []>} : vector<8x8xf32>, vector<8x8xf32>, vector<8x8xf32> -> vector<8x8xf32>
    %218 = tpu.concatenate %160, %179, %198, %217 in 1 : vector<8x8xf32>, vector<8x8xf32>, vector<8x8xf32>, vector<8x8xf32> -> vector<8x32xf32>
    %219 = tpu.concatenate %140, %218 in 0 : vector<8x32xf32>, vector<8x32xf32> -> vector<16x32xf32>
    %c0_72 = arith.constant 0 : index
    %c0_73 = arith.constant 0 : index
    %c0_74 = arith.constant 0 : index
    %220 = vector.load %arg11[%c0_72, %c0_73, %c0_74] : memref<2x32x32xf32, #tpu.memory_space<vmem>>, vector<1x32x32xf32>
    %221 = vector.shape_cast %220 : vector<1x32x32xf32> to vector<32x32xf32>
    %cst_75 = arith.constant dense<0.000000e+00> : vector<16x32xf32>
    %222 = tpu.matmul %219, %221, %cst_75 {dimension_numbers = #tpu.dot_dimension_numbers<[1], [0], [0], [1], [0, 0, 1, 1], [], []>} : vector<16x32xf32>, vector<32x32xf32>, vector<16x32xf32> -> vector<16x32xf32>
    %c0_76 = arith.constant 0 : index
    %c0_77 = arith.constant 0 : index
    %c0_78 = arith.constant 0 : index
    %223 = vector.load %arg12[%c0_76, %c0_77, %c0_78] : memref<2x1x32xf32, #tpu.memory_space<vmem>>, vector<1x1x32xf32>
    %224 = vector.shape_cast %223 : vector<1x1x32xf32> to vector<1x32xf32>
    %225 = vector.broadcast %224 : vector<1x32xf32> to vector<16x32xf32>
    %226 = arith.addf %222, %225 : vector<16x32xf32>
    %227 = arith.addf %51, %226 : vector<16x32xf32>
    %c0_79 = arith.constant 0 : index
    %c0_80 = arith.constant 0 : index
    %c0_81 = arith.constant 0 : index
    %228 = vector.load %arg13[%c0_79, %c0_80, %c0_81] : memref<2x1x32xf32, #tpu.memory_space<vmem>>, vector<1x1x32xf32>
    %229 = vector.shape_cast %228 : vector<1x1x32xf32> to vector<1x32xf32>
    %c0_82 = arith.constant 0 : index
    %c0_83 = arith.constant 0 : index
    %c0_84 = arith.constant 0 : index
    %230 = vector.load %arg14[%c0_82, %c0_83, %c0_84] : memref<2x1x32xf32, #tpu.memory_space<vmem>>, vector<1x1x32xf32>
    %231 = vector.shape_cast %230 : vector<1x1x32xf32> to vector<1x32xf32>
    %cst_85 = arith.constant dense<0.000000e+00> : vector<16xf32>
    %232 = vector.multi_reduction <add>, %227, %cst_85 [1] : vector<16x32xf32> to vector<16xf32>
    %233 = vector.shape_cast %232 : vector<16xf32> to vector<16x1xf32>
    %cst_86 = arith.constant 3.200000e+01 : f32
    %234 = vector.broadcast %cst_86 : f32 to vector<16x1xf32>
    %235 = arith.divf %233, %234 : vector<16x1xf32>
    %236 = vector.broadcast %235 : vector<16x1xf32> to vector<16x32xf32>
    %237 = arith.subf %227, %236 : vector<16x32xf32>
    %238 = arith.mulf %237, %237 : vector<16x32xf32>
    %cst_87 = arith.constant dense<0.000000e+00> : vector<16xf32>
    %239 = vector.multi_reduction <add>, %238, %cst_87 [1] : vector<16x32xf32> to vector<16xf32>
    %240 = vector.shape_cast %239 : vector<16xf32> to vector<16x1xf32>
    %cst_88 = arith.constant 3.200000e+01 : f32
    %241 = vector.broadcast %cst_88 : f32 to vector<16x1xf32>
    %242 = arith.divf %240, %241 : vector<16x1xf32>
    %cst_89 = arith.constant 9.99999996E-13 : f32
    %243 = vector.broadcast %cst_89 : f32 to vector<16x1xf32>
    %244 = arith.addf %242, %243 : vector<16x1xf32>
    %245 = math.rsqrt %244 : vector<16x1xf32>
    %246 = vector.broadcast %245 : vector<16x1xf32> to vector<16x32xf32>
    %247 = arith.mulf %237, %246 : vector<16x32xf32>
    %248 = vector.broadcast %229 : vector<1x32xf32> to vector<16x32xf32>
    %249 = arith.mulf %247, %248 : vector<16x32xf32>
    %250 = vector.broadcast %231 : vector<1x32xf32> to vector<16x32xf32>
    %251 = arith.addf %249, %250 : vector<16x32xf32>
    %c0_90 = arith.constant 0 : index
    %c0_91 = arith.constant 0 : index
    %c0_92 = arith.constant 0 : index
    %252 = vector.load %arg15[%c0_90, %c0_91, %c0_92] : memref<2x32x64xf32, #tpu.memory_space<vmem>>, vector<1x32x64xf32>
    %253 = vector.shape_cast %252 : vector<1x32x64xf32> to vector<32x64xf32>
    %cst_93 = arith.constant dense<0.000000e+00> : vector<16x64xf32>
    %254 = tpu.matmul %251, %253, %cst_93 {dimension_numbers = #tpu.dot_dimension_numbers<[1], [0], [0], [1], [0, 0, 1, 1], [], []>} : vector<16x32xf32>, vector<32x64xf32>, vector<16x64xf32> -> vector<16x64xf32>
    %c0_94 = arith.constant 0 : index
    %c0_95 = arith.constant 0 : index
    %c0_96 = arith.constant 0 : index
    %255 = vector.load %arg16[%c0_94, %c0_95, %c0_96] : memref<2x1x64xf32, #tpu.memory_space<vmem>>, vector<1x1x64xf32>
    %256 = vector.shape_cast %255 : vector<1x1x64xf32> to vector<1x64xf32>
    %257 = vector.broadcast %256 : vector<1x64xf32> to vector<16x64xf32>
    %258 = arith.addf %254, %257 : vector<16x64xf32>
    %cst_97 = arith.constant 5.000000e-01 : f32
    %259 = vector.broadcast %cst_97 : f32 to vector<16x64xf32>
    %260 = arith.mulf %259, %258 : vector<16x64xf32>
    %cst_98 = arith.constant 0.707106769 : f32
    %261 = vector.broadcast %cst_98 : f32 to vector<16x64xf32>
    %262 = arith.mulf %258, %261 : vector<16x64xf32>
    %263 = math.absf %262 : vector<16x64xf32>
    %cst_99 = arith.constant 0.327591091 : f32
    %264 = vector.broadcast %cst_99 : f32 to vector<16x64xf32>
    %265 = arith.mulf %264, %263 : vector<16x64xf32>
    %cst_100 = arith.constant 1.000000e+00 : f32
    %266 = vector.broadcast %cst_100 : f32 to vector<16x64xf32>
    %267 = arith.addf %266, %265 : vector<16x64xf32>
    %cst_101 = arith.constant 1.000000e+00 : f32
    %268 = vector.broadcast %cst_101 : f32 to vector<16x64xf32>
    %269 = arith.divf %268, %267 : vector<16x64xf32>
    %cst_102 = arith.constant 1.06140542 : f32
    %270 = vector.broadcast %cst_102 : f32 to vector<16x64xf32>
    %271 = arith.mulf %269, %270 : vector<16x64xf32>
    %cst_103 = arith.constant -1.45315206 : f32
    %272 = vector.broadcast %cst_103 : f32 to vector<16x64xf32>
    %273 = arith.addf %272, %271 : vector<16x64xf32>
    %274 = arith.mulf %269, %273 : vector<16x64xf32>
    %cst_104 = arith.constant 1.42141378 : f32
    %275 = vector.broadcast %cst_104 : f32 to vector<16x64xf32>
    %276 = arith.addf %275, %274 : vector<16x64xf32>
    %277 = arith.mulf %269, %276 : vector<16x64xf32>
    %cst_105 = arith.constant -0.284496725 : f32
    %278 = vector.broadcast %cst_105 : f32 to vector<16x64xf32>
    %279 = arith.addf %278, %277 : vector<16x64xf32>
    %280 = arith.mulf %269, %279 : vector<16x64xf32>
    %cst_106 = arith.constant 0.254829586 : f32
    %281 = vector.broadcast %cst_106 : f32 to vector<16x64xf32>
    %282 = arith.addf %281, %280 : vector<16x64xf32>
    %283 = arith.mulf %269, %282 : vector<16x64xf32>
    %cst_107 = arith.constant 0.000000e+00 : f32
    %284 = vector.broadcast %cst_107 : f32 to vector<16x64xf32>
    %285 = arith.subf %284, %263 : vector<16x64xf32>
    %286 = arith.mulf %285, %263 : vector<16x64xf32>
    %287 = math.exp %286 : vector<16x64xf32>
    %288 = arith.mulf %283, %287 : vector<16x64xf32>
    %cst_108 = arith.constant 1.000000e+00 : f32
    %289 = vector.broadcast %cst_108 : f32 to vector<16x64xf32>
    %290 = arith.subf %289, %288 : vector<16x64xf32>
    %cst_109 = arith.constant 0.000000e+00 : f32
    %291 = vector.broadcast %cst_109 : f32 to vector<16x64xf32>
    %292 = arith.cmpf oge, %262, %291 : vector<16x64xf32>
    %cst_110 = arith.constant 0.000000e+00 : f32
    %293 = vector.broadcast %cst_110 : f32 to vector<16x64xf32>
    %294 = arith.subf %293, %290 : vector<16x64xf32>
    %295 = arith.select %292, %290, %294 : vector<16x64xi1>, vector<16x64xf32>
    %cst_111 = arith.constant 1.000000e+00 : f32
    %296 = vector.broadcast %cst_111 : f32 to vector<16x64xf32>
    %297 = arith.addf %296, %295 : vector<16x64xf32>
    %298 = arith.mulf %260, %297 : vector<16x64xf32>
    %c0_112 = arith.constant 0 : index
    %c0_113 = arith.constant 0 : index
    %c0_114 = arith.constant 0 : index
    %299 = vector.load %arg17[%c0_112, %c0_113, %c0_114] : memref<2x64x32xf32, #tpu.memory_space<vmem>>, vector<1x64x32xf32>
    %300 = vector.shape_cast %299 : vector<1x64x32xf32> to vector<64x32xf32>
    %cst_115 = arith.constant dense<0.000000e+00> : vector<16x32xf32>
    %301 = tpu.matmul %298, %300, %cst_115 {dimension_numbers = #tpu.dot_dimension_numbers<[1], [0], [0], [1], [0, 0, 1, 1], [], []>} : vector<16x64xf32>, vector<64x32xf32>, vector<16x32xf32> -> vector<16x32xf32>
    %c0_116 = arith.constant 0 : index
    %c0_117 = arith.constant 0 : index
    %c0_118 = arith.constant 0 : index
    %302 = vector.load %arg18[%c0_116, %c0_117, %c0_118] : memref<2x1x32xf32, #tpu.memory_space<vmem>>, vector<1x1x32xf32>
    %303 = vector.shape_cast %302 : vector<1x1x32xf32> to vector<1x32xf32>
    %304 = vector.broadcast %303 : vector<1x32xf32> to vector<16x32xf32>
    %305 = arith.addf %301, %304 : vector<16x32xf32>
    %306 = arith.addf %251, %305 : vector<16x32xf32>
    %c0_119 = arith.constant 0 : index
    %c0_120 = arith.constant 0 : index
    %c0_121 = arith.constant 0 : index
    %307 = vector.load %arg19[%c0_119, %c0_120, %c0_121] : memref<2x1x32xf32, #tpu.memory_space<vmem>>, vector<1x1x32xf32>
    %308 = vector.shape_cast %307 : vector<1x1x32xf32> to vector<1x32xf32>
    %c0_122 = arith.constant 0 : index
    %c0_123 = arith.constant 0 : index
    %c0_124 = arith.constant 0 : index
    %309 = vector.load %arg20[%c0_122, %c0_123, %c0_124] : memref<2x1x32xf32, #tpu.memory_space<vmem>>, vector<1x1x32xf32>
    %310 = vector.shape_cast %309 : vector<1x1x32xf32> to vector<1x32xf32>
    %cst_125 = arith.constant dense<0.000000e+00> : vector<16xf32>
    %311 = vector.multi_reduction <add>, %306, %cst_125 [1] : vector<16x32xf32> to vector<16xf32>
    %312 = vector.shape_cast %311 : vector<16xf32> to vector<16x1xf32>
    %cst_126 = arith.constant 3.200000e+01 : f32
    %313 = vector.broadcast %cst_126 : f32 to vector<16x1xf32>
    %314 = arith.divf %312, %313 : vector<16x1xf32>
    %315 = vector.broadcast %314 : vector<16x1xf32> to vector<16x32xf32>
    %316 = arith.subf %306, %315 : vector<16x32xf32>
    %317 = arith.mulf %316, %316 : vector<16x32xf32>
    %cst_127 = arith.constant dense<0.000000e+00> : vector<16xf32>
    %318 = vector.multi_reduction <add>, %317, %cst_127 [1] : vector<16x32xf32> to vector<16xf32>
    %319 = vector.shape_cast %318 : vector<16xf32> to vector<16x1xf32>
    %cst_128 = arith.constant 3.200000e+01 : f32
    %320 = vector.broadcast %cst_128 : f32 to vector<16x1xf32>
    %321 = arith.divf %319, %320 : vector<16x1xf32>
    %cst_129 = arith.constant 9.99999996E-13 : f32
    %322 = vector.broadcast %cst_129 : f32 to vector<16x1xf32>
    %323 = arith.addf %321, %322 : vector<16x1xf32>
    %324 = math.rsqrt %323 : vector<16x1xf32>
    %325 = vector.broadcast %324 : vector<16x1xf32> to vector<16x32xf32>
    %326 = arith.mulf %316, %325 : vector<16x32xf32>
    %327 = vector.broadcast %308 : vector<1x32xf32> to vector<16x32xf32>
    %328 = arith.mulf %326, %327 : vector<16x32xf32>
    %329 = vector.broadcast %310 : vector<1x32xf32> to vector<16x32xf32>
    %330 = arith.addf %328, %329 : vector<16x32xf32>
    %c1 = arith.constant 1 : index
    %c0_130 = arith.constant 0 : index
    %c0_131 = arith.constant 0 : index
    %331 = vector.load %arg9[%c1, %c0_130, %c0_131] : memref<2x32x96xf32, #tpu.memory_space<vmem>>, vector<1x32x96xf32>
    %332 = vector.shape_cast %331 : vector<1x32x96xf32> to vector<32x96xf32>
    %cst_132 = arith.constant dense<0.000000e+00> : vector<16x96xf32>
    %333 = tpu.matmul %330, %332, %cst_132 {dimension_numbers = #tpu.dot_dimension_numbers<[1], [0], [0], [1], [0, 0, 1, 1], [], []>} : vector<16x32xf32>, vector<32x96xf32>, vector<16x96xf32> -> vector<16x96xf32>
    %c1_133 = arith.constant 1 : index
    %c0_134 = arith.constant 0 : index
    %c0_135 = arith.constant 0 : index
    %334 = vector.load %arg10[%c1_133, %c0_134, %c0_135] : memref<2x1x96xf32, #tpu.memory_space<vmem>>, vector<1x1x96xf32>
    %335 = vector.shape_cast %334 : vector<1x1x96xf32> to vector<1x96xf32>
    %336 = vector.broadcast %335 : vector<1x96xf32> to vector<16x96xf32>
    %337 = arith.addf %333, %336 : vector<16x96xf32>
    %338 = vector.extract_strided_slice %55 {offsets = [0, 0], sizes = [1, 8], strides = [1, 1]} : vector<2x8xf32> to vector<1x8xf32>
    %339 = vector.extract_strided_slice %337 {offsets = [0, 0], sizes = [8, 8], strides = [1, 1]} : vector<16x96xf32> to vector<8x8xf32>
    %340 = vector.extract_strided_slice %337 {offsets = [0, 32], sizes = [8, 8], strides = [1, 1]} : vector<16x96xf32> to vector<8x8xf32>
    %341 = vector.extract_strided_slice %337 {offsets = [0, 64], sizes = [8, 8], strides = [1, 1]} : vector<16x96xf32> to vector<8x8xf32>
    %cst_136 = arith.constant dense<0.000000e+00> : vector<8x8xf32>
    %342 = tpu.matmul %339, %340, %cst_136 {dimension_numbers = #tpu.dot_dimension_numbers<[1], [1], [0], [0], [0, 0, 1, 0], [], []>} : vector<8x8xf32>, vector<8x8xf32>, vector<8x8xf32> -> vector<8x8xf32>
    %cst_137 = arith.constant 0.353553385 : f32
    %343 = vector.broadcast %cst_137 : f32 to vector<8x8xf32>
    %344 = arith.mulf %342, %343 : vector<8x8xf32>
    %345 = vector.broadcast %338 : vector<1x8xf32> to vector<8x8xf32>
    %346 = arith.addf %344, %345 : vector<8x8xf32>
    %cst_138 = arith.constant dense<0xFF800000> : vector<8xf32>
    %347 = vector.multi_reduction <maximumf>, %346, %cst_138 [1] : vector<8x8xf32> to vector<8xf32>
    %348 = vector.shape_cast %347 : vector<8xf32> to vector<8x1xf32>
    %349 = vector.broadcast %348 : vector<8x1xf32> to vector<8x8xf32>
    %350 = arith.subf %346, %349 : vector<8x8xf32>
    %351 = math.exp %350 : vector<8x8xf32>
    %cst_139 = arith.constant dense<0.000000e+00> : vector<8xf32>
    %352 = vector.multi_reduction <add>, %351, %cst_139 [1] : vector<8x8xf32> to vector<8xf32>
    %353 = vector.shape_cast %352 : vector<8xf32> to vector<8x1xf32>
    %354 = tpu.reciprocal %353 {approx = true} : vector<8x1xf32> -> vector<8x1xf32>
    %355 = vector.broadcast %354 : vector<8x1xf32> to vector<8x8xf32>
    %356 = arith.mulf %351, %355 : vector<8x8xf32>
    %cst_140 = arith.constant dense<0.000000e+00> : vector<8x8xf32>
    %357 = tpu.matmul %356, %341, %cst_140 {dimension_numbers = #tpu.dot_dimension_numbers<[1], [0], [0], [1], [0, 0, 1, 1], [], []>} : vector<8x8xf32>, vector<8x8xf32>, vector<8x8xf32> -> vector<8x8xf32>
    %358 = vector.extract_strided_slice %337 {offsets = [0, 8], sizes = [8, 8], strides = [1, 1]} : vector<16x96xf32> to vector<8x8xf32>
    %359 = vector.extract_strided_slice %337 {offsets = [0, 40], sizes = [8, 8], strides = [1, 1]} : vector<16x96xf32> to vector<8x8xf32>
    %360 = vector.extract_strided_slice %337 {offsets = [0, 72], sizes = [8, 8], strides = [1, 1]} : vector<16x96xf32> to vector<8x8xf32>
    %cst_141 = arith.constant dense<0.000000e+00> : vector<8x8xf32>
    %361 = tpu.matmul %358, %359, %cst_141 {dimension_numbers = #tpu.dot_dimension_numbers<[1], [1], [0], [0], [0, 0, 1, 0], [], []>} : vector<8x8xf32>, vector<8x8xf32>, vector<8x8xf32> -> vector<8x8xf32>
    %cst_142 = arith.constant 0.353553385 : f32
    %362 = vector.broadcast %cst_142 : f32 to vector<8x8xf32>
    %363 = arith.mulf %361, %362 : vector<8x8xf32>
    %364 = vector.broadcast %338 : vector<1x8xf32> to vector<8x8xf32>
    %365 = arith.addf %363, %364 : vector<8x8xf32>
    %cst_143 = arith.constant dense<0xFF800000> : vector<8xf32>
    %366 = vector.multi_reduction <maximumf>, %365, %cst_143 [1] : vector<8x8xf32> to vector<8xf32>
    %367 = vector.shape_cast %366 : vector<8xf32> to vector<8x1xf32>
    %368 = vector.broadcast %367 : vector<8x1xf32> to vector<8x8xf32>
    %369 = arith.subf %365, %368 : vector<8x8xf32>
    %370 = math.exp %369 : vector<8x8xf32>
    %cst_144 = arith.constant dense<0.000000e+00> : vector<8xf32>
    %371 = vector.multi_reduction <add>, %370, %cst_144 [1] : vector<8x8xf32> to vector<8xf32>
    %372 = vector.shape_cast %371 : vector<8xf32> to vector<8x1xf32>
    %373 = tpu.reciprocal %372 {approx = true} : vector<8x1xf32> -> vector<8x1xf32>
    %374 = vector.broadcast %373 : vector<8x1xf32> to vector<8x8xf32>
    %375 = arith.mulf %370, %374 : vector<8x8xf32>
    %cst_145 = arith.constant dense<0.000000e+00> : vector<8x8xf32>
    %376 = tpu.matmul %375, %360, %cst_145 {dimension_numbers = #tpu.dot_dimension_numbers<[1], [0], [0], [1], [0, 0, 1, 1], [], []>} : vector<8x8xf32>, vector<8x8xf32>, vector<8x8xf32> -> vector<8x8xf32>
    %377 = vector.extract_strided_slice %337 {offsets = [0, 16], sizes = [8, 8], strides = [1, 1]} : vector<16x96xf32> to vector<8x8xf32>
    %378 = vector.extract_strided_slice %337 {offsets = [0, 48], sizes = [8, 8], strides = [1, 1]} : vector<16x96xf32> to vector<8x8xf32>
    %379 = vector.extract_strided_slice %337 {offsets = [0, 80], sizes = [8, 8], strides = [1, 1]} : vector<16x96xf32> to vector<8x8xf32>
    %cst_146 = arith.constant dense<0.000000e+00> : vector<8x8xf32>
    %380 = tpu.matmul %377, %378, %cst_146 {dimension_numbers = #tpu.dot_dimension_numbers<[1], [1], [0], [0], [0, 0, 1, 0], [], []>} : vector<8x8xf32>, vector<8x8xf32>, vector<8x8xf32> -> vector<8x8xf32>
    %cst_147 = arith.constant 0.353553385 : f32
    %381 = vector.broadcast %cst_147 : f32 to vector<8x8xf32>
    %382 = arith.mulf %380, %381 : vector<8x8xf32>
    %383 = vector.broadcast %338 : vector<1x8xf32> to vector<8x8xf32>
    %384 = arith.addf %382, %383 : vector<8x8xf32>
    %cst_148 = arith.constant dense<0xFF800000> : vector<8xf32>
    %385 = vector.multi_reduction <maximumf>, %384, %cst_148 [1] : vector<8x8xf32> to vector<8xf32>
    %386 = vector.shape_cast %385 : vector<8xf32> to vector<8x1xf32>
    %387 = vector.broadcast %386 : vector<8x1xf32> to vector<8x8xf32>
    %388 = arith.subf %384, %387 : vector<8x8xf32>
    %389 = math.exp %388 : vector<8x8xf32>
    %cst_149 = arith.constant dense<0.000000e+00> : vector<8xf32>
    %390 = vector.multi_reduction <add>, %389, %cst_149 [1] : vector<8x8xf32> to vector<8xf32>
    %391 = vector.shape_cast %390 : vector<8xf32> to vector<8x1xf32>
    %392 = tpu.reciprocal %391 {approx = true} : vector<8x1xf32> -> vector<8x1xf32>
    %393 = vector.broadcast %392 : vector<8x1xf32> to vector<8x8xf32>
    %394 = arith.mulf %389, %393 : vector<8x8xf32>
    %cst_150 = arith.constant dense<0.000000e+00> : vector<8x8xf32>
    %395 = tpu.matmul %394, %379, %cst_150 {dimension_numbers = #tpu.dot_dimension_numbers<[1], [0], [0], [1], [0, 0, 1, 1], [], []>} : vector<8x8xf32>, vector<8x8xf32>, vector<8x8xf32> -> vector<8x8xf32>
    %396 = vector.extract_strided_slice %337 {offsets = [0, 24], sizes = [8, 8], strides = [1, 1]} : vector<16x96xf32> to vector<8x8xf32>
    %397 = vector.extract_strided_slice %337 {offsets = [0, 56], sizes = [8, 8], strides = [1, 1]} : vector<16x96xf32> to vector<8x8xf32>
    %398 = vector.extract_strided_slice %337 {offsets = [0, 88], sizes = [8, 8], strides = [1, 1]} : vector<16x96xf32> to vector<8x8xf32>
    %cst_151 = arith.constant dense<0.000000e+00> : vector<8x8xf32>
    %399 = tpu.matmul %396, %397, %cst_151 {dimension_numbers = #tpu.dot_dimension_numbers<[1], [1], [0], [0], [0, 0, 1, 0], [], []>} : vector<8x8xf32>, vector<8x8xf32>, vector<8x8xf32> -> vector<8x8xf32>
    %cst_152 = arith.constant 0.353553385 : f32
    %400 = vector.broadcast %cst_152 : f32 to vector<8x8xf32>
    %401 = arith.mulf %399, %400 : vector<8x8xf32>
    %402 = vector.broadcast %338 : vector<1x8xf32> to vector<8x8xf32>
    %403 = arith.addf %401, %402 : vector<8x8xf32>
    %cst_153 = arith.constant dense<0xFF800000> : vector<8xf32>
    %404 = vector.multi_reduction <maximumf>, %403, %cst_153 [1] : vector<8x8xf32> to vector<8xf32>
    %405 = vector.shape_cast %404 : vector<8xf32> to vector<8x1xf32>
    %406 = vector.broadcast %405 : vector<8x1xf32> to vector<8x8xf32>
    %407 = arith.subf %403, %406 : vector<8x8xf32>
    %408 = math.exp %407 : vector<8x8xf32>
    %cst_154 = arith.constant dense<0.000000e+00> : vector<8xf32>
    %409 = vector.multi_reduction <add>, %408, %cst_154 [1] : vector<8x8xf32> to vector<8xf32>
    %410 = vector.shape_cast %409 : vector<8xf32> to vector<8x1xf32>
    %411 = tpu.reciprocal %410 {approx = true} : vector<8x1xf32> -> vector<8x1xf32>
    %412 = vector.broadcast %411 : vector<8x1xf32> to vector<8x8xf32>
    %413 = arith.mulf %408, %412 : vector<8x8xf32>
    %cst_155 = arith.constant dense<0.000000e+00> : vector<8x8xf32>
    %414 = tpu.matmul %413, %398, %cst_155 {dimension_numbers = #tpu.dot_dimension_numbers<[1], [0], [0], [1], [0, 0, 1, 1], [], []>} : vector<8x8xf32>, vector<8x8xf32>, vector<8x8xf32> -> vector<8x8xf32>
    %415 = tpu.concatenate %357, %376, %395, %414 in 1 : vector<8x8xf32>, vector<8x8xf32>, vector<8x8xf32>, vector<8x8xf32> -> vector<8x32xf32>
    %416 = vector.extract_strided_slice %55 {offsets = [1, 0], sizes = [1, 8], strides = [1, 1]} : vector<2x8xf32> to vector<1x8xf32>
    %417 = vector.extract_strided_slice %337 {offsets = [8, 0], sizes = [8, 8], strides = [1, 1]} : vector<16x96xf32> to vector<8x8xf32>
    %418 = vector.extract_strided_slice %337 {offsets = [8, 32], sizes = [8, 8], strides = [1, 1]} : vector<16x96xf32> to vector<8x8xf32>
    %419 = vector.extract_strided_slice %337 {offsets = [8, 64], sizes = [8, 8], strides = [1, 1]} : vector<16x96xf32> to vector<8x8xf32>
    %cst_156 = arith.constant dense<0.000000e+00> : vector<8x8xf32>
    %420 = tpu.matmul %417, %418, %cst_156 {dimension_numbers = #tpu.dot_dimension_numbers<[1], [1], [0], [0], [0, 0, 1, 0], [], []>} : vector<8x8xf32>, vector<8x8xf32>, vector<8x8xf32> -> vector<8x8xf32>
    %cst_157 = arith.constant 0.353553385 : f32
    %421 = vector.broadcast %cst_157 : f32 to vector<8x8xf32>
    %422 = arith.mulf %420, %421 : vector<8x8xf32>
    %423 = vector.broadcast %416 : vector<1x8xf32> to vector<8x8xf32>
    %424 = arith.addf %422, %423 : vector<8x8xf32>
    %cst_158 = arith.constant dense<0xFF800000> : vector<8xf32>
    %425 = vector.multi_reduction <maximumf>, %424, %cst_158 [1] : vector<8x8xf32> to vector<8xf32>
    %426 = vector.shape_cast %425 : vector<8xf32> to vector<8x1xf32>
    %427 = vector.broadcast %426 : vector<8x1xf32> to vector<8x8xf32>
    %428 = arith.subf %424, %427 : vector<8x8xf32>
    %429 = math.exp %428 : vector<8x8xf32>
    %cst_159 = arith.constant dense<0.000000e+00> : vector<8xf32>
    %430 = vector.multi_reduction <add>, %429, %cst_159 [1] : vector<8x8xf32> to vector<8xf32>
    %431 = vector.shape_cast %430 : vector<8xf32> to vector<8x1xf32>
    %432 = tpu.reciprocal %431 {approx = true} : vector<8x1xf32> -> vector<8x1xf32>
    %433 = vector.broadcast %432 : vector<8x1xf32> to vector<8x8xf32>
    %434 = arith.mulf %429, %433 : vector<8x8xf32>
    %cst_160 = arith.constant dense<0.000000e+00> : vector<8x8xf32>
    %435 = tpu.matmul %434, %419, %cst_160 {dimension_numbers = #tpu.dot_dimension_numbers<[1], [0], [0], [1], [0, 0, 1, 1], [], []>} : vector<8x8xf32>, vector<8x8xf32>, vector<8x8xf32> -> vector<8x8xf32>
    %436 = vector.extract_strided_slice %337 {offsets = [8, 8], sizes = [8, 8], strides = [1, 1]} : vector<16x96xf32> to vector<8x8xf32>
    %437 = vector.extract_strided_slice %337 {offsets = [8, 40], sizes = [8, 8], strides = [1, 1]} : vector<16x96xf32> to vector<8x8xf32>
    %438 = vector.extract_strided_slice %337 {offsets = [8, 72], sizes = [8, 8], strides = [1, 1]} : vector<16x96xf32> to vector<8x8xf32>
    %cst_161 = arith.constant dense<0.000000e+00> : vector<8x8xf32>
    %439 = tpu.matmul %436, %437, %cst_161 {dimension_numbers = #tpu.dot_dimension_numbers<[1], [1], [0], [0], [0, 0, 1, 0], [], []>} : vector<8x8xf32>, vector<8x8xf32>, vector<8x8xf32> -> vector<8x8xf32>
    %cst_162 = arith.constant 0.353553385 : f32
    %440 = vector.broadcast %cst_162 : f32 to vector<8x8xf32>
    %441 = arith.mulf %439, %440 : vector<8x8xf32>
    %442 = vector.broadcast %416 : vector<1x8xf32> to vector<8x8xf32>
    %443 = arith.addf %441, %442 : vector<8x8xf32>
    %cst_163 = arith.constant dense<0xFF800000> : vector<8xf32>
    %444 = vector.multi_reduction <maximumf>, %443, %cst_163 [1] : vector<8x8xf32> to vector<8xf32>
    %445 = vector.shape_cast %444 : vector<8xf32> to vector<8x1xf32>
    %446 = vector.broadcast %445 : vector<8x1xf32> to vector<8x8xf32>
    %447 = arith.subf %443, %446 : vector<8x8xf32>
    %448 = math.exp %447 : vector<8x8xf32>
    %cst_164 = arith.constant dense<0.000000e+00> : vector<8xf32>
    %449 = vector.multi_reduction <add>, %448, %cst_164 [1] : vector<8x8xf32> to vector<8xf32>
    %450 = vector.shape_cast %449 : vector<8xf32> to vector<8x1xf32>
    %451 = tpu.reciprocal %450 {approx = true} : vector<8x1xf32> -> vector<8x1xf32>
    %452 = vector.broadcast %451 : vector<8x1xf32> to vector<8x8xf32>
    %453 = arith.mulf %448, %452 : vector<8x8xf32>
    %cst_165 = arith.constant dense<0.000000e+00> : vector<8x8xf32>
    %454 = tpu.matmul %453, %438, %cst_165 {dimension_numbers = #tpu.dot_dimension_numbers<[1], [0], [0], [1], [0, 0, 1, 1], [], []>} : vector<8x8xf32>, vector<8x8xf32>, vector<8x8xf32> -> vector<8x8xf32>
    %455 = vector.extract_strided_slice %337 {offsets = [8, 16], sizes = [8, 8], strides = [1, 1]} : vector<16x96xf32> to vector<8x8xf32>
    %456 = vector.extract_strided_slice %337 {offsets = [8, 48], sizes = [8, 8], strides = [1, 1]} : vector<16x96xf32> to vector<8x8xf32>
    %457 = vector.extract_strided_slice %337 {offsets = [8, 80], sizes = [8, 8], strides = [1, 1]} : vector<16x96xf32> to vector<8x8xf32>
    %cst_166 = arith.constant dense<0.000000e+00> : vector<8x8xf32>
    %458 = tpu.matmul %455, %456, %cst_166 {dimension_numbers = #tpu.dot_dimension_numbers<[1], [1], [0], [0], [0, 0, 1, 0], [], []>} : vector<8x8xf32>, vector<8x8xf32>, vector<8x8xf32> -> vector<8x8xf32>
    %cst_167 = arith.constant 0.353553385 : f32
    %459 = vector.broadcast %cst_167 : f32 to vector<8x8xf32>
    %460 = arith.mulf %458, %459 : vector<8x8xf32>
    %461 = vector.broadcast %416 : vector<1x8xf32> to vector<8x8xf32>
    %462 = arith.addf %460, %461 : vector<8x8xf32>
    %cst_168 = arith.constant dense<0xFF800000> : vector<8xf32>
    %463 = vector.multi_reduction <maximumf>, %462, %cst_168 [1] : vector<8x8xf32> to vector<8xf32>
    %464 = vector.shape_cast %463 : vector<8xf32> to vector<8x1xf32>
    %465 = vector.broadcast %464 : vector<8x1xf32> to vector<8x8xf32>
    %466 = arith.subf %462, %465 : vector<8x8xf32>
    %467 = math.exp %466 : vector<8x8xf32>
    %cst_169 = arith.constant dense<0.000000e+00> : vector<8xf32>
    %468 = vector.multi_reduction <add>, %467, %cst_169 [1] : vector<8x8xf32> to vector<8xf32>
    %469 = vector.shape_cast %468 : vector<8xf32> to vector<8x1xf32>
    %470 = tpu.reciprocal %469 {approx = true} : vector<8x1xf32> -> vector<8x1xf32>
    %471 = vector.broadcast %470 : vector<8x1xf32> to vector<8x8xf32>
    %472 = arith.mulf %467, %471 : vector<8x8xf32>
    %cst_170 = arith.constant dense<0.000000e+00> : vector<8x8xf32>
    %473 = tpu.matmul %472, %457, %cst_170 {dimension_numbers = #tpu.dot_dimension_numbers<[1], [0], [0], [1], [0, 0, 1, 1], [], []>} : vector<8x8xf32>, vector<8x8xf32>, vector<8x8xf32> -> vector<8x8xf32>
    %474 = vector.extract_strided_slice %337 {offsets = [8, 24], sizes = [8, 8], strides = [1, 1]} : vector<16x96xf32> to vector<8x8xf32>
    %475 = vector.extract_strided_slice %337 {offsets = [8, 56], sizes = [8, 8], strides = [1, 1]} : vector<16x96xf32> to vector<8x8xf32>
    %476 = vector.extract_strided_slice %337 {offsets = [8, 88], sizes = [8, 8], strides = [1, 1]} : vector<16x96xf32> to vector<8x8xf32>
    %cst_171 = arith.constant dense<0.000000e+00> : vector<8x8xf32>
    %477 = tpu.matmul %474, %475, %cst_171 {dimension_numbers = #tpu.dot_dimension_numbers<[1], [1], [0], [0], [0, 0, 1, 0], [], []>} : vector<8x8xf32>, vector<8x8xf32>, vector<8x8xf32> -> vector<8x8xf32>
    %cst_172 = arith.constant 0.353553385 : f32
    %478 = vector.broadcast %cst_172 : f32 to vector<8x8xf32>
    %479 = arith.mulf %477, %478 : vector<8x8xf32>
    %480 = vector.broadcast %416 : vector<1x8xf32> to vector<8x8xf32>
    %481 = arith.addf %479, %480 : vector<8x8xf32>
    %cst_173 = arith.constant dense<0xFF800000> : vector<8xf32>
    %482 = vector.multi_reduction <maximumf>, %481, %cst_173 [1] : vector<8x8xf32> to vector<8xf32>
    %483 = vector.shape_cast %482 : vector<8xf32> to vector<8x1xf32>
    %484 = vector.broadcast %483 : vector<8x1xf32> to vector<8x8xf32>
    %485 = arith.subf %481, %484 : vector<8x8xf32>
    %486 = math.exp %485 : vector<8x8xf32>
    %cst_174 = arith.constant dense<0.000000e+00> : vector<8xf32>
    %487 = vector.multi_reduction <add>, %486, %cst_174 [1] : vector<8x8xf32> to vector<8xf32>
    %488 = vector.shape_cast %487 : vector<8xf32> to vector<8x1xf32>
    %489 = tpu.reciprocal %488 {approx = true} : vector<8x1xf32> -> vector<8x1xf32>
    %490 = vector.broadcast %489 : vector<8x1xf32> to vector<8x8xf32>
    %491 = arith.mulf %486, %490 : vector<8x8xf32>
    %cst_175 = arith.constant dense<0.000000e+00> : vector<8x8xf32>
    %492 = tpu.matmul %491, %476, %cst_175 {dimension_numbers = #tpu.dot_dimension_numbers<[1], [0], [0], [1], [0, 0, 1, 1], [], []>} : vector<8x8xf32>, vector<8x8xf32>, vector<8x8xf32> -> vector<8x8xf32>
    %493 = tpu.concatenate %435, %454, %473, %492 in 1 : vector<8x8xf32>, vector<8x8xf32>, vector<8x8xf32>, vector<8x8xf32> -> vector<8x32xf32>
    %494 = tpu.concatenate %415, %493 in 0 : vector<8x32xf32>, vector<8x32xf32> -> vector<16x32xf32>
    %c1_176 = arith.constant 1 : index
    %c0_177 = arith.constant 0 : index
    %c0_178 = arith.constant 0 : index
    %495 = vector.load %arg11[%c1_176, %c0_177, %c0_178] : memref<2x32x32xf32, #tpu.memory_space<vmem>>, vector<1x32x32xf32>
    %496 = vector.shape_cast %495 : vector<1x32x32xf32> to vector<32x32xf32>
    %cst_179 = arith.constant dense<0.000000e+00> : vector<16x32xf32>
    %497 = tpu.matmul %494, %496, %cst_179 {dimension_numbers = #tpu.dot_dimension_numbers<[1], [0], [0], [1], [0, 0, 1, 1], [], []>} : vector<16x32xf32>, vector<32x32xf32>, vector<16x32xf32> -> vector<16x32xf32>
    %c1_180 = arith.constant 1 : index
    %c0_181 = arith.constant 0 : index
    %c0_182 = arith.constant 0 : index
    %498 = vector.load %arg12[%c1_180, %c0_181, %c0_182] : memref<2x1x32xf32, #tpu.memory_space<vmem>>, vector<1x1x32xf32>
    %499 = vector.shape_cast %498 : vector<1x1x32xf32> to vector<1x32xf32>
    %500 = vector.broadcast %499 : vector<1x32xf32> to vector<16x32xf32>
    %501 = arith.addf %497, %500 : vector<16x32xf32>
    %502 = arith.addf %330, %501 : vector<16x32xf32>
    %c1_183 = arith.constant 1 : index
    %c0_184 = arith.constant 0 : index
    %c0_185 = arith.constant 0 : index
    %503 = vector.load %arg13[%c1_183, %c0_184, %c0_185] : memref<2x1x32xf32, #tpu.memory_space<vmem>>, vector<1x1x32xf32>
    %504 = vector.shape_cast %503 : vector<1x1x32xf32> to vector<1x32xf32>
    %c1_186 = arith.constant 1 : index
    %c0_187 = arith.constant 0 : index
    %c0_188 = arith.constant 0 : index
    %505 = vector.load %arg14[%c1_186, %c0_187, %c0_188] : memref<2x1x32xf32, #tpu.memory_space<vmem>>, vector<1x1x32xf32>
    %506 = vector.shape_cast %505 : vector<1x1x32xf32> to vector<1x32xf32>
    %cst_189 = arith.constant dense<0.000000e+00> : vector<16xf32>
    %507 = vector.multi_reduction <add>, %502, %cst_189 [1] : vector<16x32xf32> to vector<16xf32>
    %508 = vector.shape_cast %507 : vector<16xf32> to vector<16x1xf32>
    %cst_190 = arith.constant 3.200000e+01 : f32
    %509 = vector.broadcast %cst_190 : f32 to vector<16x1xf32>
    %510 = arith.divf %508, %509 : vector<16x1xf32>
    %511 = vector.broadcast %510 : vector<16x1xf32> to vector<16x32xf32>
    %512 = arith.subf %502, %511 : vector<16x32xf32>
    %513 = arith.mulf %512, %512 : vector<16x32xf32>
    %cst_191 = arith.constant dense<0.000000e+00> : vector<16xf32>
    %514 = vector.multi_reduction <add>, %513, %cst_191 [1] : vector<16x32xf32> to vector<16xf32>
    %515 = vector.shape_cast %514 : vector<16xf32> to vector<16x1xf32>
    %cst_192 = arith.constant 3.200000e+01 : f32
    %516 = vector.broadcast %cst_192 : f32 to vector<16x1xf32>
    %517 = arith.divf %515, %516 : vector<16x1xf32>
    %cst_193 = arith.constant 9.99999996E-13 : f32
    %518 = vector.broadcast %cst_193 : f32 to vector<16x1xf32>
    %519 = arith.addf %517, %518 : vector<16x1xf32>
    %520 = math.rsqrt %519 : vector<16x1xf32>
    %521 = vector.broadcast %520 : vector<16x1xf32> to vector<16x32xf32>
    %522 = arith.mulf %512, %521 : vector<16x32xf32>
    %523 = vector.broadcast %504 : vector<1x32xf32> to vector<16x32xf32>
    %524 = arith.mulf %522, %523 : vector<16x32xf32>
    %525 = vector.broadcast %506 : vector<1x32xf32> to vector<16x32xf32>
    %526 = arith.addf %524, %525 : vector<16x32xf32>
    %c1_194 = arith.constant 1 : index
    %c0_195 = arith.constant 0 : index
    %c0_196 = arith.constant 0 : index
    %527 = vector.load %arg15[%c1_194, %c0_195, %c0_196] : memref<2x32x64xf32, #tpu.memory_space<vmem>>, vector<1x32x64xf32>
    %528 = vector.shape_cast %527 : vector<1x32x64xf32> to vector<32x64xf32>
    %cst_197 = arith.constant dense<0.000000e+00> : vector<16x64xf32>
    %529 = tpu.matmul %526, %528, %cst_197 {dimension_numbers = #tpu.dot_dimension_numbers<[1], [0], [0], [1], [0, 0, 1, 1], [], []>} : vector<16x32xf32>, vector<32x64xf32>, vector<16x64xf32> -> vector<16x64xf32>
    %c1_198 = arith.constant 1 : index
    %c0_199 = arith.constant 0 : index
    %c0_200 = arith.constant 0 : index
    %530 = vector.load %arg16[%c1_198, %c0_199, %c0_200] : memref<2x1x64xf32, #tpu.memory_space<vmem>>, vector<1x1x64xf32>
    %531 = vector.shape_cast %530 : vector<1x1x64xf32> to vector<1x64xf32>
    %532 = vector.broadcast %531 : vector<1x64xf32> to vector<16x64xf32>
    %533 = arith.addf %529, %532 : vector<16x64xf32>
    %cst_201 = arith.constant 5.000000e-01 : f32
    %534 = vector.broadcast %cst_201 : f32 to vector<16x64xf32>
    %535 = arith.mulf %534, %533 : vector<16x64xf32>
    %cst_202 = arith.constant 0.707106769 : f32
    %536 = vector.broadcast %cst_202 : f32 to vector<16x64xf32>
    %537 = arith.mulf %533, %536 : vector<16x64xf32>
    %538 = math.absf %537 : vector<16x64xf32>
    %cst_203 = arith.constant 0.327591091 : f32
    %539 = vector.broadcast %cst_203 : f32 to vector<16x64xf32>
    %540 = arith.mulf %539, %538 : vector<16x64xf32>
    %cst_204 = arith.constant 1.000000e+00 : f32
    %541 = vector.broadcast %cst_204 : f32 to vector<16x64xf32>
    %542 = arith.addf %541, %540 : vector<16x64xf32>
    %cst_205 = arith.constant 1.000000e+00 : f32
    %543 = vector.broadcast %cst_205 : f32 to vector<16x64xf32>
    %544 = arith.divf %543, %542 : vector<16x64xf32>
    %cst_206 = arith.constant 1.06140542 : f32
    %545 = vector.broadcast %cst_206 : f32 to vector<16x64xf32>
    %546 = arith.mulf %544, %545 : vector<16x64xf32>
    %cst_207 = arith.constant -1.45315206 : f32
    %547 = vector.broadcast %cst_207 : f32 to vector<16x64xf32>
    %548 = arith.addf %547, %546 : vector<16x64xf32>
    %549 = arith.mulf %544, %548 : vector<16x64xf32>
    %cst_208 = arith.constant 1.42141378 : f32
    %550 = vector.broadcast %cst_208 : f32 to vector<16x64xf32>
    %551 = arith.addf %550, %549 : vector<16x64xf32>
    %552 = arith.mulf %544, %551 : vector<16x64xf32>
    %cst_209 = arith.constant -0.284496725 : f32
    %553 = vector.broadcast %cst_209 : f32 to vector<16x64xf32>
    %554 = arith.addf %553, %552 : vector<16x64xf32>
    %555 = arith.mulf %544, %554 : vector<16x64xf32>
    %cst_210 = arith.constant 0.254829586 : f32
    %556 = vector.broadcast %cst_210 : f32 to vector<16x64xf32>
    %557 = arith.addf %556, %555 : vector<16x64xf32>
    %558 = arith.mulf %544, %557 : vector<16x64xf32>
    %cst_211 = arith.constant 0.000000e+00 : f32
    %559 = vector.broadcast %cst_211 : f32 to vector<16x64xf32>
    %560 = arith.subf %559, %538 : vector<16x64xf32>
    %561 = arith.mulf %560, %538 : vector<16x64xf32>
    %562 = math.exp %561 : vector<16x64xf32>
    %563 = arith.mulf %558, %562 : vector<16x64xf32>
    %cst_212 = arith.constant 1.000000e+00 : f32
    %564 = vector.broadcast %cst_212 : f32 to vector<16x64xf32>
    %565 = arith.subf %564, %563 : vector<16x64xf32>
    %cst_213 = arith.constant 0.000000e+00 : f32
    %566 = vector.broadcast %cst_213 : f32 to vector<16x64xf32>
    %567 = arith.cmpf oge, %537, %566 : vector<16x64xf32>
    %cst_214 = arith.constant 0.000000e+00 : f32
    %568 = vector.broadcast %cst_214 : f32 to vector<16x64xf32>
    %569 = arith.subf %568, %565 : vector<16x64xf32>
    %570 = arith.select %567, %565, %569 : vector<16x64xi1>, vector<16x64xf32>
    %cst_215 = arith.constant 1.000000e+00 : f32
    %571 = vector.broadcast %cst_215 : f32 to vector<16x64xf32>
    %572 = arith.addf %571, %570 : vector<16x64xf32>
    %573 = arith.mulf %535, %572 : vector<16x64xf32>
    %c1_216 = arith.constant 1 : index
    %c0_217 = arith.constant 0 : index
    %c0_218 = arith.constant 0 : index
    %574 = vector.load %arg17[%c1_216, %c0_217, %c0_218] : memref<2x64x32xf32, #tpu.memory_space<vmem>>, vector<1x64x32xf32>
    %575 = vector.shape_cast %574 : vector<1x64x32xf32> to vector<64x32xf32>
    %cst_219 = arith.constant dense<0.000000e+00> : vector<16x32xf32>
    %576 = tpu.matmul %573, %575, %cst_219 {dimension_numbers = #tpu.dot_dimension_numbers<[1], [0], [0], [1], [0, 0, 1, 1], [], []>} : vector<16x64xf32>, vector<64x32xf32>, vector<16x32xf32> -> vector<16x32xf32>
    %c1_220 = arith.constant 1 : index
    %c0_221 = arith.constant 0 : index
    %c0_222 = arith.constant 0 : index
    %577 = vector.load %arg18[%c1_220, %c0_221, %c0_222] : memref<2x1x32xf32, #tpu.memory_space<vmem>>, vector<1x1x32xf32>
    %578 = vector.shape_cast %577 : vector<1x1x32xf32> to vector<1x32xf32>
    %579 = vector.broadcast %578 : vector<1x32xf32> to vector<16x32xf32>
    %580 = arith.addf %576, %579 : vector<16x32xf32>
    %581 = arith.addf %526, %580 : vector<16x32xf32>
    %c1_223 = arith.constant 1 : index
    %c0_224 = arith.constant 0 : index
    %c0_225 = arith.constant 0 : index
    %582 = vector.load %arg19[%c1_223, %c0_224, %c0_225] : memref<2x1x32xf32, #tpu.memory_space<vmem>>, vector<1x1x32xf32>
    %583 = vector.shape_cast %582 : vector<1x1x32xf32> to vector<1x32xf32>
    %c1_226 = arith.constant 1 : index
    %c0_227 = arith.constant 0 : index
    %c0_228 = arith.constant 0 : index
    %584 = vector.load %arg20[%c1_226, %c0_227, %c0_228] : memref<2x1x32xf32, #tpu.memory_space<vmem>>, vector<1x1x32xf32>
    %585 = vector.shape_cast %584 : vector<1x1x32xf32> to vector<1x32xf32>
    %cst_229 = arith.constant dense<0.000000e+00> : vector<16xf32>
    %586 = vector.multi_reduction <add>, %581, %cst_229 [1] : vector<16x32xf32> to vector<16xf32>
    %587 = vector.shape_cast %586 : vector<16xf32> to vector<16x1xf32>
    %cst_230 = arith.constant 3.200000e+01 : f32
    %588 = vector.broadcast %cst_230 : f32 to vector<16x1xf32>
    %589 = arith.divf %587, %588 : vector<16x1xf32>
    %590 = vector.broadcast %589 : vector<16x1xf32> to vector<16x32xf32>
    %591 = arith.subf %581, %590 : vector<16x32xf32>
    %592 = arith.mulf %591, %591 : vector<16x32xf32>
    %cst_231 = arith.constant dense<0.000000e+00> : vector<16xf32>
    %593 = vector.multi_reduction <add>, %592, %cst_231 [1] : vector<16x32xf32> to vector<16xf32>
    %594 = vector.shape_cast %593 : vector<16xf32> to vector<16x1xf32>
    %cst_232 = arith.constant 3.200000e+01 : f32
    %595 = vector.broadcast %cst_232 : f32 to vector<16x1xf32>
    %596 = arith.divf %594, %595 : vector<16x1xf32>
    %cst_233 = arith.constant 9.99999996E-13 : f32
    %597 = vector.broadcast %cst_233 : f32 to vector<16x1xf32>
    %598 = arith.addf %596, %597 : vector<16x1xf32>
    %599 = math.rsqrt %598 : vector<16x1xf32>
    %600 = vector.broadcast %599 : vector<16x1xf32> to vector<16x32xf32>
    %601 = arith.mulf %591, %600 : vector<16x32xf32>
    %602 = vector.broadcast %583 : vector<1x32xf32> to vector<16x32xf32>
    %603 = arith.mulf %601, %602 : vector<16x32xf32>
    %604 = vector.broadcast %585 : vector<1x32xf32> to vector<16x32xf32>
    %605 = arith.addf %603, %604 : vector<16x32xf32>
    %c0_234 = arith.constant 0 : index
    %c0_235 = arith.constant 0 : index
    %606 = vector.load %arg21[%c0_234, %c0_235] : memref<32x32xf32, #tpu.memory_space<vmem>>, vector<32x32xf32>
    %cst_236 = arith.constant dense<0.000000e+00> : vector<16x32xf32>
    %607 = tpu.matmul %605, %606, %cst_236 {dimension_numbers = #tpu.dot_dimension_numbers<[1], [0], [0], [1], [0, 0, 1, 1], [], []>} : vector<16x32xf32>, vector<32x32xf32>, vector<16x32xf32> -> vector<16x32xf32>
    %c0_237 = arith.constant 0 : index
    %c0_238 = arith.constant 0 : index
    %608 = vector.load %arg22[%c0_237, %c0_238] : memref<1x32xf32, #tpu.memory_space<vmem>>, vector<1x32xf32>
    %609 = vector.broadcast %608 : vector<1x32xf32> to vector<16x32xf32>
    %610 = arith.addf %607, %609 : vector<16x32xf32>
    %cst_239 = arith.constant 5.000000e-01 : f32
    %611 = vector.broadcast %cst_239 : f32 to vector<16x32xf32>
    %612 = arith.mulf %611, %610 : vector<16x32xf32>
    %cst_240 = arith.constant 0.707106769 : f32
    %613 = vector.broadcast %cst_240 : f32 to vector<16x32xf32>
    %614 = arith.mulf %610, %613 : vector<16x32xf32>
    %615 = math.absf %614 : vector<16x32xf32>
    %cst_241 = arith.constant 0.327591091 : f32
    %616 = vector.broadcast %cst_241 : f32 to vector<16x32xf32>
    %617 = arith.mulf %616, %615 : vector<16x32xf32>
    %cst_242 = arith.constant 1.000000e+00 : f32
    %618 = vector.broadcast %cst_242 : f32 to vector<16x32xf32>
    %619 = arith.addf %618, %617 : vector<16x32xf32>
    %cst_243 = arith.constant 1.000000e+00 : f32
    %620 = vector.broadcast %cst_243 : f32 to vector<16x32xf32>
    %621 = arith.divf %620, %619 : vector<16x32xf32>
    %cst_244 = arith.constant 1.06140542 : f32
    %622 = vector.broadcast %cst_244 : f32 to vector<16x32xf32>
    %623 = arith.mulf %621, %622 : vector<16x32xf32>
    %cst_245 = arith.constant -1.45315206 : f32
    %624 = vector.broadcast %cst_245 : f32 to vector<16x32xf32>
    %625 = arith.addf %624, %623 : vector<16x32xf32>
    %626 = arith.mulf %621, %625 : vector<16x32xf32>
    %cst_246 = arith.constant 1.42141378 : f32
    %627 = vector.broadcast %cst_246 : f32 to vector<16x32xf32>
    %628 = arith.addf %627, %626 : vector<16x32xf32>
    %629 = arith.mulf %621, %628 : vector<16x32xf32>
    %cst_247 = arith.constant -0.284496725 : f32
    %630 = vector.broadcast %cst_247 : f32 to vector<16x32xf32>
    %631 = arith.addf %630, %629 : vector<16x32xf32>
    %632 = arith.mulf %621, %631 : vector<16x32xf32>
    %cst_248 = arith.constant 0.254829586 : f32
    %633 = vector.broadcast %cst_248 : f32 to vector<16x32xf32>
    %634 = arith.addf %633, %632 : vector<16x32xf32>
    %635 = arith.mulf %621, %634 : vector<16x32xf32>
    %cst_249 = arith.constant 0.000000e+00 : f32
    %636 = vector.broadcast %cst_249 : f32 to vector<16x32xf32>
    %637 = arith.subf %636, %615 : vector<16x32xf32>
    %638 = arith.mulf %637, %615 : vector<16x32xf32>
    %639 = math.exp %638 : vector<16x32xf32>
    %640 = arith.mulf %635, %639 : vector<16x32xf32>
    %cst_250 = arith.constant 1.000000e+00 : f32
    %641 = vector.broadcast %cst_250 : f32 to vector<16x32xf32>
    %642 = arith.subf %641, %640 : vector<16x32xf32>
    %cst_251 = arith.constant 0.000000e+00 : f32
    %643 = vector.broadcast %cst_251 : f32 to vector<16x32xf32>
    %644 = arith.cmpf oge, %614, %643 : vector<16x32xf32>
    %cst_252 = arith.constant 0.000000e+00 : f32
    %645 = vector.broadcast %cst_252 : f32 to vector<16x32xf32>
    %646 = arith.subf %645, %642 : vector<16x32xf32>
    %647 = arith.select %644, %642, %646 : vector<16x32xi1>, vector<16x32xf32>
    %cst_253 = arith.constant 1.000000e+00 : f32
    %648 = vector.broadcast %cst_253 : f32 to vector<16x32xf32>
    %649 = arith.addf %648, %647 : vector<16x32xf32>
    %650 = arith.mulf %612, %649 : vector<16x32xf32>
    %c0_254 = arith.constant 0 : index
    %c0_255 = arith.constant 0 : index
    %651 = vector.load %arg23[%c0_254, %c0_255] : memref<1x32xf32, #tpu.memory_space<vmem>>, vector<1x32xf32>
    %c0_256 = arith.constant 0 : index
    %c0_257 = arith.constant 0 : index
    %652 = vector.load %arg24[%c0_256, %c0_257] : memref<1x32xf32, #tpu.memory_space<vmem>>, vector<1x32xf32>
    %cst_258 = arith.constant dense<0.000000e+00> : vector<16xf32>
    %653 = vector.multi_reduction <add>, %650, %cst_258 [1] : vector<16x32xf32> to vector<16xf32>
    %654 = vector.shape_cast %653 : vector<16xf32> to vector<16x1xf32>
    %cst_259 = arith.constant 3.200000e+01 : f32
    %655 = vector.broadcast %cst_259 : f32 to vector<16x1xf32>
    %656 = arith.divf %654, %655 : vector<16x1xf32>
    %657 = vector.broadcast %656 : vector<16x1xf32> to vector<16x32xf32>
    %658 = arith.subf %650, %657 : vector<16x32xf32>
    %659 = arith.mulf %658, %658 : vector<16x32xf32>
    %cst_260 = arith.constant dense<0.000000e+00> : vector<16xf32>
    %660 = vector.multi_reduction <add>, %659, %cst_260 [1] : vector<16x32xf32> to vector<16xf32>
    %661 = vector.shape_cast %660 : vector<16xf32> to vector<16x1xf32>
    %cst_261 = arith.constant 3.200000e+01 : f32
    %662 = vector.broadcast %cst_261 : f32 to vector<16x1xf32>
    %663 = arith.divf %661, %662 : vector<16x1xf32>
    %cst_262 = arith.constant 9.99999996E-13 : f32
    %664 = vector.broadcast %cst_262 : f32 to vector<16x1xf32>
    %665 = arith.addf %663, %664 : vector<16x1xf32>
    %666 = math.rsqrt %665 : vector<16x1xf32>
    %667 = vector.broadcast %666 : vector<16x1xf32> to vector<16x32xf32>
    %668 = arith.mulf %658, %667 : vector<16x32xf32>
    %669 = vector.broadcast %651 : vector<1x32xf32> to vector<16x32xf32>
    %670 = arith.mulf %668, %669 : vector<16x32xf32>
    %671 = vector.broadcast %652 : vector<1x32xf32> to vector<16x32xf32>
    %672 = arith.addf %670, %671 : vector<16x32xf32>
    %cst_263 = arith.constant dense<0.000000e+00> : vector<16x128xf32>
    %673 = tpu.matmul %672, %6, %cst_263 {dimension_numbers = #tpu.dot_dimension_numbers<[1], [1], [0], [0], [0, 0, 1, 0], [], []>} : vector<16x32xf32>, vector<128x32xf32>, vector<16x128xf32> -> vector<16x128xf32>
    %c0_264 = arith.constant 0 : index
    %c0_265 = arith.constant 0 : index
    %674 = vector.load %arg25[%c0_264, %c0_265] : memref<1x128xf32, #tpu.memory_space<vmem>>, vector<1x128xf32>
    %675 = vector.broadcast %674 : vector<1x128xf32> to vector<16x128xf32>
    %676 = arith.addf %673, %675 : vector<16x128xf32>
    %c0_266 = arith.constant 0 : index
    %c0_267 = arith.constant 0 : index
    %677 = vector.load %arg26[%c0_266, %c0_267] : memref<16x128xf32, #tpu.memory_space<vmem>>, vector<16x128xf32>
    tpu.vector_store %arg26[%c0_266, %c0_267], %676 {strides = array<i32>} : memref<16x128xf32, #tpu.memory_space<vmem>>, vector<16x128xf32>,
    %cst_268 = arith.constant dense<0xFF800000> : vector<16xf32>
    %678 = vector.multi_reduction <maximumf>, %676, %cst_268 [1] : vector<16x128xf32> to vector<16xf32>
    %679 = vector.shape_cast %678 : vector<16xf32> to vector<16x1xf32>
    %680 = vector.broadcast %679 : vector<16x1xf32> to vector<16x128xf32>
    %681 = arith.subf %676, %680 : vector<16x128xf32>
    %682 = math.exp %681 : vector<16x128xf32>
    %cst_269 = arith.constant dense<0.000000e+00> : vector<16xf32>
    %683 = vector.multi_reduction <add>, %682, %cst_269 [1] : vector<16x128xf32> to vector<16xf32>
    %684 = vector.shape_cast %683 : vector<16xf32> to vector<16x1xf32>
    %685 = math.log %684 : vector<16x1xf32>
    %686 = vector.broadcast %685 : vector<16x1xf32> to vector<16x128xf32>
    %687 = arith.subf %681, %686 : vector<16x128xf32>
    %688 = vector.broadcast %5 : vector<16x1xi32> to vector<16x128xi32>
    %689 = arith.cmpi eq, %7, %688 : vector<16x128xi32>
    %690 = arith.extui %689 : vector<16x128xi1> to vector<16x128xi32>
    %691 = arith.sitofp %690 : vector<16x128xi32> to vector<16x128xf32>
    %692 = arith.mulf %687, %691 : vector<16x128xf32>
    %cst_270 = arith.constant dense<0.000000e+00> : vector<16xf32>
    %693 = vector.multi_reduction <add>, %692, %cst_270 [1] : vector<16x128xf32> to vector<16xf32>
    %694 = vector.shape_cast %693 : vector<16xf32> to vector<16x1xf32>
    %cst_271 = arith.constant 0.000000e+00 : f32
    %695 = vector.broadcast %cst_271 : f32 to vector<16x1xf32>
    %696 = arith.subf %695, %694 : vector<16x1xf32>
    %c-1_i32 = arith.constant -1 : i32
    %697 = vector.broadcast %c-1_i32 : i32 to vector<16x1xi32>
    %698 = arith.cmpi ne, %5, %697 : vector<16x1xi32>
    %699 = arith.extui %698 : vector<16x1xi1> to vector<16x1xi32>
    %700 = arith.sitofp %699 : vector<16x1xi32> to vector<16x1xf32>
    %cst_272 = arith.constant dense<0.000000e+00> : vector<1xf32>
    %701 = vector.multi_reduction <add>, %696, %cst_272 [0] : vector<16x1xf32> to vector<1xf32>
    %702 = vector.shape_cast %701 : vector<1xf32> to vector<1x1xf32>
    %cst_273 = arith.constant dense<0.000000e+00> : vector<1xf32>
    %703 = vector.multi_reduction <add>, %700, %cst_273 [0] : vector<16x1xf32> to vector<1xf32>
    %704 = vector.shape_cast %703 : vector<1xf32> to vector<1x1xf32>
    %cst_274 = arith.constant 1.000000e+00 : f32
    %705 = vector.broadcast %cst_274 : f32 to vector<1x1xf32>
    %706 = arith.maximumf %704, %705 : vector<1x1xf32>
    %707 = arith.divf %702, %706 : vector<1x1xf32>
    %c0_275 = arith.constant 0 : index
    %c0_276 = arith.constant 0 : index
    %708 = vector.load %arg27[%c0_275, %c0_276] : memref<1x1xf32, #tpu.memory_space<vmem>>, vector<1x1xf32>
    tpu.vector_store %arg27[%c0_275, %c0_276], %707 {strides = array<i32>} : memref<1x1xf32, #tpu.memory_space<vmem>>, vector<1x1xf32>,
    return
  }
}

</mosaic_0001>

<llo_original>
// kernel: bert_mlm_forward.1
$region0: #{bert_mlm_forward.1}
  #allocation0 [shape = 'u32[]', space=smem, size = 0x4, offset = 0x4, fixed_abs, tag = 'smem constant byte address 0x4 - core index']
  #allocation1 [shape = 'u32[144,128]{1,0:T(1,128)}', space=vmem, size = 0x12000, scoped, tag = 'internal scratch']
  %s0 = inlined_call_operand.vmem [shape: s32[16,1], index: 0, kind: input, shape index: {}]
  %s1 = inlined_call_operand.vmem [shape: s32[16,1], index: 1, kind: input, shape index: {}]
  %s2 = inlined_call_operand.vmem [shape: s32[2,8], index: 2, kind: input, shape index: {}]
  %s3 = inlined_call_operand.vmem [shape: s32[16,1], index: 3, kind: input, shape index: {}]
  %s4 = inlined_call_operand.vmem [shape: f32[128,32], index: 4, kind: input, shape index: {}]
  %s5 = inlined_call_operand.vmem [shape: f32[32,32], index: 5, kind: input, shape index: {}]
  %s6 = inlined_call_operand.vmem [shape: f32[2,32], index: 6, kind: input, shape index: {}]
  %s7 = inlined_call_operand.vmem [shape: f32[1,32], index: 7, kind: input, shape index: {}]
  %s8 = inlined_call_operand.vmem [shape: f32[1,32], index: 8, kind: input, shape index: {}]
  %s9 = inlined_call_operand.vmem [shape: f32[2,32,96], index: 9, kind: input, shape index: {}]
  %s10 = inlined_call_operand.vmem [shape: f32[2,1,96], index: 10, kind: input, shape index: {}]
  %s11 = inlined_call_operand.vmem [shape: f32[2,32,32], index: 11, kind: input, shape index: {}]
  %s12 = inlined_call_operand.vmem [shape: f32[2,1,32], index: 12, kind: input, shape index: {}]
  %s13 = inlined_call_operand.vmem [shape: f32[2,1,32], index: 13, kind: input, shape index: {}]
  %s14 = inlined_call_operand.vmem [shape: f32[2,1,32], index: 14, kind: input, shape index: {}]
  %s15 = inlined_call_operand.vmem [shape: f32[2,32,64], index: 15, kind: input, shape index: {}]
  %s16 = inlined_call_operand.vmem [shape: f32[2,1,64], index: 16, kind: input, shape index: {}]
  %s17 = inlined_call_operand.vmem [shape: f32[2,64,32], index: 17, kind: input, shape index: {}]
  %s18 = inlined_call_operand.vmem [shape: f32[2,1,32], index: 18, kind: input, shape index: {}]
  %s19 = inlined_call_operand.vmem [shape: f32[2,1,32], index: 19, kind: input, shape index: {}]
  %s20 = inlined_call_operand.vmem [shape: f32[2,1,32], index: 20, kind: input, shape index: {}]
  %s21 = inlined_call_operand.vmem [shape: f32[32,32], index: 21, kind: input, shape index: {}]
  %s22 = inlined_call_operand.vmem [shape: f32[1,32], index: 22, kind: input, shape index: {}]
  %s23 = inlined_call_operand.vmem [shape: f32[1,32], index: 23, kind: input, shape index: {}]
  %s24 = inlined_call_operand.vmem [shape: f32[1,32], index: 24, kind: input, shape index: {}]
  %s25 = inlined_call_operand.vmem [shape: f32[1,128], index: 25, kind: input, shape index: {}]
  %s26 = inlined_call_operand.hbm [shape: f32[16,128], index: 26, kind: output, shape index: {0}]
  %s27 = inlined_call_operand.hbm [shape: f32[1,1], index: 27, kind: output, shape index: {1}]
  %28 = xla_tuple %s26, %s27
  %s29 = sld [smem:[#allocation0]]
  $region122: #{bert_mlm_forward.1} parent=0
    _
  %s31 = ssub.s32 1, %s29
  %s32 = scalar_select 0, %s31, %s29
  $region1: #{bert_mlm_forward.1} parent=0
    #allocation2 [shape = 'u8[8192]{0}', space=vmem, size = 0x2000, scoped, tag = 'output window, operand 0, single buffered']
    #allocation3 [shape = 's32[1]{0}', space=sflag, size = 0x4, scoped, tag = 'scoped memory for bert_mlm_forward.1']
    #allocation4 [shape = 'u8[512]{0}', space=vmem, size = 0x400, scoped, tag = 'output window, operand 1, single buffered']
    #allocation5 [shape = 's32[1]{0}', space=sflag, size = 0x4, scoped, tag = 'scoped memory for bert_mlm_forward.1']
    %33 = vsyncpa [#allocation3], 0
    %34 = vsyncpa [#allocation5], 0
    // Predicated region
    $region2: #{bert_mlm_forward.1} parent=1 // pred_check
      _
    $region3: #{bert_mlm_forward.1} parent=1 // pred_check_branch
      %36 = sbr.rel (0) target = $region5
    $region4: #{bert_mlm_forward.1} parent=1 // pred_region
      _
    $region5: #{bert_mlm_forward.1} parent=1 // pred_fallthru
      _
    // Predicated region
    $region6: #{bert_mlm_forward.1} parent=1 // pred_check
      _
    $region7: #{bert_mlm_forward.1} parent=1 // pred_check_branch
      %38 = sbr.rel (0) target = $region9
    $region8: #{bert_mlm_forward.1} parent=1 // pred_region
      _
    $region9: #{bert_mlm_forward.1} parent=1 // pred_fallthru
      _
    // Predicated region
    $region10: #{bert_mlm_forward.1} parent=1 // pred_check
      _
    $region11: #{bert_mlm_forward.1} parent=1 // pred_check_branch
      %40 = sbr.rel (0) target = $region13
    $region12: #{bert_mlm_forward.1} parent=1 // pred_region
      _
    $region13: #{bert_mlm_forward.1} parent=1 // pred_fallthru
      _
    // Predicated region
    $region14: #{bert_mlm_forward.1} parent=1 // pred_check
      _
    $region15: #{bert_mlm_forward.1} parent=1 // pred_check_branch
      %42 = sbr.rel (0) target = $region17
    $region16: #{bert_mlm_forward.1} parent=1 // pred_region
      _
    $region17: #{bert_mlm_forward.1} parent=1 // pred_fallthru
      _
    // Predicated region
    $region18: #{bert_mlm_forward.1} parent=1 // pred_check
      _
    $region19: #{bert_mlm_forward.1} parent=1 // pred_check_branch
      %44 = sbr.rel (0) target = $region21
    $region20: #{bert_mlm_forward.1} parent=1 // pred_region
      _
    $region21: #{bert_mlm_forward.1} parent=1 // pred_fallthru
      _
    // Predicated region
    $region22: #{bert_mlm_forward.1} parent=1 // pred_check
      _
    $region23: #{bert_mlm_forward.1} parent=1 // pred_check_branch
      %46 = sbr.rel (0) target = $region25
    $region24: #{bert_mlm_forward.1} parent=1 // pred_region
      _
    $region25: #{bert_mlm_forward.1} parent=1 // pred_fallthru
      _
    // Predicated region
    $region26: #{bert_mlm_forward.1} parent=1 // pred_check
      _
    $region27: #{bert_mlm_forward.1} parent=1 // pred_check_branch
      %48 = sbr.rel (0) target = $region29
    $region28: #{bert_mlm_forward.1} parent=1 // pred_region
      _
    $region29: #{bert_mlm_forward.1} parent=1 // pred_fallthru
      _
    // Predicated region
    $region30: #{bert_mlm_forward.1} parent=1 // pred_check
      _
    $region31: #{bert_mlm_forward.1} parent=1 // pred_check_branch
      %50 = sbr.rel (0) target = $region33
    $region32: #{bert_mlm_forward.1} parent=1 // pred_region
      _
    $region33: #{bert_mlm_forward.1} parent=1 // pred_fallthru
      _
    // Predicated region
    $region34: #{bert_mlm_forward.1} parent=1 // pred_check
      _
    $region35: #{bert_mlm_forward.1} parent=1 // pred_check_branch
      %52 = sbr.rel (0) target = $region37
    $region36: #{bert_mlm_forward.1} parent=1 // pred_region
      _
    $region37: #{bert_mlm_forward.1} parent=1 // pred_fallthru
      _
    // Predicated region
    $region38: #{bert_mlm_forward.1} parent=1 // pred_check
      _
    $region39: #{bert_mlm_forward.1} parent=1 // pred_check_branch
      %54 = sbr.rel (0) target = $region41
    $region40: #{bert_mlm_forward.1} parent=1 // pred_region
      _
    $region41: #{bert_mlm_forward.1} parent=1 // pred_fallthru
      _
    // Predicated region
    $region42: #{bert_mlm_forward.1} parent=1 // pred_check
      _
    $region43: #{bert_mlm_forward.1} parent=1 // pred_check_branch
      %56 = sbr.rel (0) target = $region45
    $region44: #{bert_mlm_forward.1} parent=1 // pred_region
      _
    $region45: #{bert_mlm_forward.1} parent=1 // pred_fallthru
      _
    // Predicated region
    $region46: #{bert_mlm_forward.1} parent=1 // pred_check
      _
    $region47: #{bert_mlm_forward.1} parent=1 // pred_check_branch
      %58 = sbr.rel (0) target = $region49
    $region48: #{bert_mlm_forward.1} parent=1 // pred_region
      _
    $region49: #{bert_mlm_forward.1} parent=1 // pred_fallthru
      _
    // Predicated region
    $region50: #{bert_mlm_forward.1} parent=1 // pred_check
      _
    $region51: #{bert_mlm_forward.1} parent=1 // pred_check_branch
      %60 = sbr.rel (0) target = $region53
    $region52: #{bert_mlm_forward.1} parent=1 // pred_region
      _
    $region53: #{bert_mlm_forward.1} parent=1 // pred_fallthru
      _
    // Predicated region
    $region54: #{bert_mlm_forward.1} parent=1 // pred_check
      _
    $region55: #{bert_mlm_forward.1} parent=1 // pred_check_branch
      %62 = sbr.rel (0) target = $region57
    $region56: #{bert_mlm_forward.1} parent=1 // pred_region
      _
    $region57: #{bert_mlm_forward.1} parent=1 // pred_fallthru
      _
    // Predicated region
    $region58: #{bert_mlm_forward.1} parent=1 // pred_check
      _
    $region59: #{bert_mlm_forward.1} parent=1 // pred_check_branch
      %64 = sbr.rel (0) target = $region61
    $region60: #{bert_mlm_forward.1} parent=1 // pred_region
      _
    $region61: #{bert_mlm_forward.1} parent=1 // pred_fallthru
      _
    // Predicated region
    $region62: #{bert_mlm_forward.1} parent=1 // pred_check
      _
    $region63: #{bert_mlm_forward.1} parent=1 // pred_check_branch
      %66 = sbr.rel (0) target = $region65
    $region64: #{bert_mlm_forward.1} parent=1 // pred_region
      _
    $region65: #{bert_mlm_forward.1} parent=1 // pred_fallthru
      _
    // Predicated region
    $region66: #{bert_mlm_forward.1} parent=1 // pred_check
      _
    $region67: #{bert_mlm_forward.1} parent=1 // pred_check_branch
      %68 = sbr.rel (0) target = $region69
    $region68: #{bert_mlm_forward.1} parent=1 // pred_region
      _
    $region69: #{bert_mlm_forward.1} parent=1 // pred_fallthru
      _
    // Predicated region
    $region70: #{bert_mlm_forward.1} parent=1 // pred_check
      _
    $region71: #{bert_mlm_forward.1} parent=1 // pred_check_branch
      %70 = sbr.rel (0) target = $region73
    $region72: #{bert_mlm_forward.1} parent=1 // pred_region
      _
    $region73: #{bert_mlm_forward.1} parent=1 // pred_fallthru
      _
    // Predicated region
    $region74: #{bert_mlm_forward.1} parent=1 // pred_check
      _
    $region75: #{bert_mlm_forward.1} parent=1 // pred_check_branch
      %72 = sbr.rel (0) target = $region77
    $region76: #{bert_mlm_forward.1} parent=1 // pred_region
      _
    $region77: #{bert_mlm_forward.1} parent=1 // pred_fallthru
      _
    // Predicated region
    $region78: #{bert_mlm_forward.1} parent=1 // pred_check
      _
    $region79: #{bert_mlm_forward.1} parent=1 // pred_check_branch
      %74 = sbr.rel (0) target = $region81
    $region80: #{bert_mlm_forward.1} parent=1 // pred_region
      _
    $region81: #{bert_mlm_forward.1} parent=1 // pred_fallthru
      _
    // Predicated region
    $region82: #{bert_mlm_forward.1} parent=1 // pred_check
      _
    $region83: #{bert_mlm_forward.1} parent=1 // pred_check_branch
      %76 = sbr.rel (0) target = $region85
    $region84: #{bert_mlm_forward.1} parent=1 // pred_region
      _
    $region85: #{bert_mlm_forward.1} parent=1 // pred_fallthru
      _
    // Predicated region
    $region86: #{bert_mlm_forward.1} parent=1 // pred_check
      _
    $region87: #{bert_mlm_forward.1} parent=1 // pred_check_branch
      %78 = sbr.rel (0) target = $region89
    $region88: #{bert_mlm_forward.1} parent=1 // pred_region
      _
    $region89: #{bert_mlm_forward.1} parent=1 // pred_fallthru
      _
    // Predicated region
    $region90: #{bert_mlm_forward.1} parent=1 // pred_check
      _
    $region91: #{bert_mlm_forward.1} parent=1 // pred_check_branch
      %80 = sbr.rel (0) target = $region93
    $region92: #{bert_mlm_forward.1} parent=1 // pred_region
      _
    $region93: #{bert_mlm_forward.1} parent=1 // pred_fallthru
      _
    // Predicated region
    $region94: #{bert_mlm_forward.1} parent=1 // pred_check
      _
    $region95: #{bert_mlm_forward.1} parent=1 // pred_check_branch
      %82 = sbr.rel (0) target = $region97
    $region96: #{bert_mlm_forward.1} parent=1 // pred_region
      _
    $region97: #{bert_mlm_forward.1} parent=1 // pred_fallthru
      _
    // Predicated region
    $region98: #{bert_mlm_forward.1} parent=1 // pred_check
      _
    $region99: #{bert_mlm_forward.1} parent=1 // pred_check_branch
      %84 = sbr.rel (0) target = $region101
    $region100: #{bert_mlm_forward.1} parent=1 // pred_region
      _
    $region101: #{bert_mlm_forward.1} parent=1 // pred_fallthru
      _
    // Predicated region
    $region102: #{bert_mlm_forward.1} parent=1 // pred_check
      _
    $region103: #{bert_mlm_forward.1} parent=1 // pred_check_branch
      %86 = sbr.rel (0) target = $region105
    $region104: #{bert_mlm_forward.1} parent=1 // pred_region
      _
    $region105: #{bert_mlm_forward.1} parent=1 // pred_fallthru
      _
    %v87 = vld [vmem:[%s0] sm:$0xff]
    %v88 = vld [vmem:[%s0 + $0x8] sm:$0xff]
    %v89 = vld [vmem:[%s1] sm:$0xff]
    %v90 = vld [vmem:[%s1 + $0x8] sm:$0xff]
    %v91 = vcvt.s32.f32 %v89
    %v92 = vcvt.s32.f32 %v90
    %v93 = vld [vmem:[%s2] sm:$0x3]
    %v94 = vcvt.s32.f32 %v93
    %v95 = vld [vmem:[%s3] sm:$0xff]
    %v96 = vld [vmem:[%s3 + $0x8] sm:$0xff]
    %v97 = vld [vmem:[%s4] sm:$0xff]
    %v98 = vld [vmem:[%s4 + $0x8] sm:$0xff]
    %v99 = vld [vmem:[%s4 + $0x10] sm:$0xff]
    %v100 = vld [vmem:[%s4 + $0x18] sm:$0xff]
    %v101 = vld [vmem:[%s4 + $0x20] sm:$0xff]
    %v102 = vld [vmem:[%s4 + $0x28] sm:$0xff]
    %v103 = vld [vmem:[%s4 + $0x30] sm:$0xff]
    %v104 = vld [vmem:[%s4 + $0x38] sm:$0xff]
    %v105 = vld [vmem:[%s4 + $0x40] sm:$0xff]
    %v106 = vld [vmem:[%s4 + $0x48] sm:$0xff]
    %v107 = vld [vmem:[%s4 + $0x50] sm:$0xff]
    %v108 = vld [vmem:[%s4 + $0x58] sm:$0xff]
    %v109 = vld [vmem:[%s4 + $0x60] sm:$0xff]
    %v110 = vld [vmem:[%s4 + $0x68] sm:$0xff]
    %v111 = vld [vmem:[%s4 + $0x70] sm:$0xff]
    %v112 = vld [vmem:[%s4 + $0x78] sm:$0xff]
    %v113 = vlaneseq
    %v114 = vand.u32 %v113, 127
    %115 = vset.pattern.permute.xlu0 0
    %116 = vperm.xlu0 %115, %v87
    %v117 = vpop.permute.xlu0 %116
    %118 = vset.pattern.permute.xlu0 0
    %119 = vperm.xlu0 %118, %v88
    %v120 = vpop.permute.xlu0 %119
    %vm121 = vcmp.eq.s32.totalorder %v114, %v117
    %vm122 = vcmp.eq.s32.totalorder %v114, %v120
    %v123 = vsel %vm121, 1, 0
    %v124 = vsel %vm122, 1, 0
    %v125 = vcvt.s32.f32 %v123
    %v126 = vcvt.s32.f32 %v124
    %v127 = vld [vmem:[%s5] sm:$0xff]
    %128 = vmatprep.subr.mxu0 0.0
    %129 = vmatpush1.msra.mxu0 %v97
    %130 = vmatprep.subr.mxu0 0.0
    %131 = vmatpush1.msra.mxu0 %v98
    %132 = vmatprep.subr.mxu0 0.0
    %133 = vmatpush1.msra.mxu0 %v99
    %134 = vmatprep.subr.mxu0 0.0
    %135 = vmatpush1.msra.mxu0 %v100
    %136 = vmatprep.subr.mxu0 0.0
    %137 = vmatpush1.msra.mxu0 %v101
    %138 = vmatprep.subr.mxu0 0.0
    %139 = vmatpush1.msra.mxu0 %v102
    %140 = vmatprep.subr.mxu0 0.0
    %141 = vmatpush1.msra.mxu0 %v103
    %142 = vmatprep.subr.mxu0 0.0
    %143 = vmatpush1.msra.mxu0 %v104
    %144 = vmatprep.subr.mxu0 0.0
    %145 = vmatpush1.msra.mxu0 %v105
    %146 = vmatprep.subr.mxu0 0.0
    %147 = vmatpush1.msra.mxu0 %v106
    %148 = vmatprep.subr.mxu0 0.0
    %149 = vmatpush1.msra.mxu0 %v107
    %150 = vmatprep.subr.mxu0 0.0
    %151 = vmatpush1.msra.mxu0 %v108
    %152 = vmatprep.subr.mxu0 0.0
    %153 = vmatpush1.msra.mxu0 %v109
    %154 = vmatprep.subr.mxu0 0.0
    %155 = vmatpush1.msra.mxu0 %v110
    %156 = vmatprep.subr.mxu0 0.0
    %157 = vmatpush1.msra.mxu0 %v111
    %158 = vmatprep.subr.mxu0 0.0
    %159 = vmatpush1.msra.mxu0 %v112
    %160 = vmatprep.subr.mxu0 0.0
    %161 = vmatpush1.msra.mxu0 0.0
    %162 = vmatprep.subr.mxu0 0.0
    %163 = vmatpush1.msra.mxu0 0.0
    %164 = vmatprep.subr.mxu0 0.0
    %165 = vmatpush1.msra.mxu0 0.0
    %166 = vmatprep.subr.mxu0 0.0
    %167 = vmatpush1.msra.mxu0 0.0
    %168 = vmatprep.subr.mxu0 0.0
    %169 = vmatpush1.msra.mxu0 0.0
    %170 = vmatprep.subr.mxu0 0.0
    %171 = vmatpush1.msra.mxu0 0.0
    %172 = vmatprep.subr.mxu0 0.0
    %173 = vmatpush1.msra.mxu0 0.0
    %174 = vmatprep.subr.mxu0 0.0
    %175 = vmatpush1.msra.mxu0 0.0
    %176 = vmatprep.subr.mxu0 0.0
    %177 = vmatpush1.msra.mxu0 0.0
    %178 = vmatprep.subr.mxu0 0.0
    %179 = vmatpush1.msra.mxu0 0.0
    %180 = vmatprep.subr.mxu0 0.0
    %181 = vmatpush1.msra.mxu0 0.0
    %182 = vmatprep.subr.mxu0 0.0
    %183 = vmatpush1.msra.mxu0 0.0
    %184 = vmatprep.subr.mxu0 0.0
    %185 = vmatpush1.msra.mxu0 0.0
    %186 = vmatprep.subr.mxu0 0.0
    %187 = vmatpush1.msra.mxu0 0.0
    %188 = vmatprep.subr.mxu0 0.0
    %189 = vmatpush1.msra.mxu0 0.0
    %190 = vmatprep.subr.mxu0 0.0
    %191 = vmatpush1.msra.mxu0 0.0
    %192 = vmatprep.mubr.f32.mxu0 0.0
    %193 = vmatmul.mubr.f32.gmra.mrb[0].mxu0 %v125
    %v194 = vpop.f32.mrb[0].mxu0
    %v195 = vadd.f32 %v127, %v194
    %v196 = vpop.f32.mrb[0].mxu0
    %197 = vmatprep.mubr.f32.mxu0 0.0
    %198 = vmatmul.mubr.f32.gmra.mrb[0].mxu0 %v126
    %v199 = vpop.f32.mrb[0].mxu0
    %v200 = vadd.f32 %v127, %v199
    %v201 = vpop.f32.mrb[0].mxu0
    %202 = vdwg.mxu0
    %v203 = vld [vmem:[%s6] sm:$0x3]
    %v204 = vsub.f32 1.0, %v91
    %v205 = vsub.f32 1.0, %v92
    %207 = vset.pattern.permute.xlu0 0
    %208 = vperm.xlu0 %207, %v204
    %v209 = vpop.permute.xlu0 %208
    %212 = vset.pattern.permute.xlu0 0
    %213 = vperm.xlu0 %212, %v205
    %v214 = vpop.permute.xlu0 %213
    %v216 = vlaneseq
    %v217 = vshrl.u32 %v216, 7
    %v218 = vsub.s32 0, %v217
    %v219 = vrot.slane %v203, %v218
    %v220 = vmul.f32 %v209, %v219
    %v221 = vmul.f32 %v214, %v219
    %v222 = vadd.f32 %v195, %v220
    %v223 = vadd.f32 %v200, %v221
    %225 = vset.pattern.permute.xlu0 0
    %226 = vperm.xlu0 %225, %v91
    %v227 = vpop.permute.xlu0 %226
    %230 = vset.pattern.permute.xlu0 0
    %231 = vperm.xlu0 %230, %v92
    %v232 = vpop.permute.xlu0 %231
    %v234 = vlaneseq
    %v235 = vshrl.u32 %v234, 7
    %v236 = vsub.s32 1, %v235
    %v237 = vrot.slane %v203, %v236
    %v238 = vmul.f32 %v227, %v237
    %v239 = vmul.f32 %v232, %v237
    %v240 = vadd.f32 %v222, %v238
    %v241 = vadd.f32 %v223, %v239
    %v242 = vld [vmem:[%s7] sm:$0x1]
    %v243 = vld [vmem:[%s8] sm:$0x1]
    %vm244 = vcmask 261120
    %v245 = vsel %vm244, %v240, 0.0
    %246 = vadd.xlane.f32.xlu0 %v245
    %v247 = vpop.xlane.xlu0 %246
    %v248 = vsel %vm244, %v241, 0.0
    %249 = vadd.xlane.f32.xlu0 %v248
    %v250 = vpop.xlane.xlu0 %249
    %v251 = vrcp.pop 32.0
    %v252 = vmul.f32 %v247, %v251
    %v253 = vmul.f32 %v250, %v251
    %v254 = vsub.f32 %v240, %v252
    %v255 = vsub.f32 %v241, %v253
    %v256 = vmul.f32 %v254, %v254
    %v257 = vmul.f32 %v255, %v255
    %v258 = vsel %vm244, %v256, 0.0
    %259 = vadd.xlane.f32.xlu0 %v258
    %v260 = vpop.xlane.xlu0 %259
    %v261 = vsel %vm244, %v257, 0.0
    %262 = vadd.xlane.f32.xlu0 %v261
    %v263 = vpop.xlane.xlu0 %262
    %v264 = vmul.f32 %v260, %v251
    %v265 = vmul.f32 %v263, %v251
    %v266 = vadd.f32 %v264, 1e-12
    %v267 = vadd.f32 %v265, 1e-12
    %v268 = vrsqrt.pop %v266
    %v269 = vrsqrt.pop %v267
    %v270 = vmul.f32 %v254, %v268
    %v271 = vmul.f32 %v255, %v269
    %v273 = vlaneseq
    %v274 = vshrl.u32 %v273, 7
    %v275 = vsub.s32 0, %v274
    %v276 = vrot.slane %v242, %v275
    %v278 = vmul.f32 %v270, %v276
    %v279 = vmul.f32 %v271, %v276
    %v281 = vlaneseq
    %v282 = vshrl.u32 %v281, 7
    %v283 = vsub.s32 0, %v282
    %v284 = vrot.slane %v243, %v283
    %v286 = vadd.f32 %v278, %v284
    %v287 = vadd.f32 %v279, %v284
    %v288 = vsub.f32 1.0, %v94
    %v289 = vmul.f32 %v288, -10000.0
    %v290 = vld [vmem:[%s9] sm:$0xff]
    %v291 = vld [vmem:[%s9 + $0x8] sm:$0xff]
    %v292 = vld [vmem:[%s9 + $0x10] sm:$0xff]
    %v293 = vld [vmem:[%s9 + $0x18] sm:$0xff]
    %v294 = vld [vmem:[%s10] sm:$0x1]
    %v296 = vlaneseq
    %v297 = vshrl.u32 %v296, 7
    %v298 = vsub.s32 0, %v297
    %v299 = vrot.slane %v294, %v298
    %v302 = vsel %vm244, %v286, 0
    %v305 = vsel %vm244, %v287, 0
    %307 = vmatprep.subr.mxu0 0.0
    %308 = vmatpush1.msra.mxu0 %v290
    %309 = vmatprep.subr.mxu0 0.0
    %310 = vmatpush1.msra.mxu0 %v291
    %311 = vmatprep.subr.mxu0 0.0
    %312 = vmatpush1.msra.mxu0 %v292
    %313 = vmatprep.subr.mxu0 0.0
    %314 = vmatpush1.msra.mxu0 %v293
    %315 = vmatprep.subr.mxu0 0.0
    %316 = vmatpush1.msra.mxu0 0.0
    %317 = vmatprep.subr.mxu0 0.0
    %318 = vmatpush1.msra.mxu0 0.0
    %319 = vmatprep.subr.mxu0 0.0
    %320 = vmatpush1.msra.mxu0 0.0
    %321 = vmatprep.subr.mxu0 0.0
    %322 = vmatpush1.msra.mxu0 0.0
    %323 = vmatprep.subr.mxu0 0.0
    %324 = vmatpush1.msra.mxu0 0.0
    %325 = vmatprep.subr.mxu0 0.0
    %326 = vmatpush1.msra.mxu0 0.0
    %327 = vmatprep.subr.mxu0 0.0
    %328 = vmatpush1.msra.mxu0 0.0
    %329 = vmatprep.subr.mxu0 0.0
    %330 = vmatpush1.msra.mxu0 0.0
    %331 = vmatprep.subr.mxu0 0.0
    %332 = vmatpush1.msra.mxu0 0.0
    %333 = vmatprep.subr.mxu0 0.0
    %334 = vmatpush1.msra.mxu0 0.0
    %335 = vmatprep.subr.mxu0 0.0
    %336 = vmatpush1.msra.mxu0 0.0
    %337 = vmatprep.subr.mxu0 0.0
    %338 = vmatpush1.msra.mxu0 0.0
    %339 = vmatprep.subr.mxu0 0.0
    %340 = vmatpush1.msra.mxu0 0.0
    %341 = vmatprep.subr.mxu0 0.0
    %342 = vmatpush1.msra.mxu0 0.0
    %343 = vmatprep.subr.mxu0 0.0
    %344 = vmatpush1.msra.mxu0 0.0
    %345 = vmatprep.subr.mxu0 0.0
    %346 = vmatpush1.msra.mxu0 0.0
    %347 = vmatprep.subr.mxu0 0.0
    %348 = vmatpush1.msra.mxu0 0.0
    %349 = vmatprep.subr.mxu0 0.0
    %350 = vmatpush1.msra.mxu0 0.0
    %351 = vmatprep.subr.mxu0 0.0
    %352 = vmatpush1.msra.mxu0 0.0
    %353 = vmatprep.subr.mxu0 0.0
    %354 = vmatpush1.msra.mxu0 0.0
    %355 = vmatprep.subr.mxu0 0.0
    %356 = vmatpush1.msra.mxu0 0.0
    %357 = vmatprep.subr.mxu0 0.0
    %358 = vmatpush1.msra.mxu0 0.0
    %359 = vmatprep.subr.mxu0 0.0
    %360 = vmatpush1.msra.mxu0 0.0
    %361 = vmatprep.subr.mxu0 0.0
    %362 = vmatpush1.msra.mxu0 0.0
    %363 = vmatprep.subr.mxu0 0.0
    %364 = vmatpush1.msra.mxu0 0.0
    %365 = vmatprep.subr.mxu0 0.0
    %366 = vmatpush1.msra.mxu0 0.0
    %367 = vmatprep.subr.mxu0 0.0
    %368 = vmatpush1.msra.mxu0 0.0
    %369 = vmatprep.subr.mxu0 0.0
    %370 = vmatpush1.msra.mxu0 0.0
    %371 = vmatprep.mubr.f32.mxu0 0.0
    %372 = vmatmul.mubr.f32.gmra.mrb[0].mxu0 %v302
    %v373 = vpop.f32.mrb[0].mxu0
    %v374 = vadd.f32 %v299, %v373
    %v375 = vpop.f32.mrb[0].mxu0
    %376 = vmatprep.mubr.f32.mxu0 0.0
    %377 = vmatmul.mubr.f32.gmra.mrb[0].mxu0 %v305
    %v378 = vpop.f32.mrb[0].mxu0
    %v379 = vadd.f32 %v299, %v378
    %v380 = vpop.f32.mrb[0].mxu0
    %381 = vdwg.mxu0
    %383 = vrot.lane.b32.xlu0 %v374, 96
    %v384 = vpop.permute.xlu0 %383
    %vm385 = vcmask 64512
    %v386 = vsel %vm385, %v374, 0
    %v388 = vsel %vm385, %v384, 0
    %390 = vmatprep.subr.mxu0 0.0
    %391 = vmatpush1.xpose.msra.mxu0 %v388
    %392 = vmatprep.subr.mxu0 0.0
    %393 = vmatpush1.xpose.msra.mxu0 0.0
    %394 = vmatprep.subr.mxu0 0.0
    %395 = vmatpush1.xpose.msra.mxu0 0.0
    %396 = vmatprep.subr.mxu0 0.0
    %397 = vmatpush1.xpose.msra.mxu0 0.0
    %398 = vmatprep.subr.mxu0 0.0
    %399 = vmatpush1.xpose.msra.mxu0 0.0
    %400 = vmatprep.subr.mxu0 0.0
    %401 = vmatpush1.xpose.msra.mxu0 0.0
    %402 = vmatprep.subr.mxu0 0.0
    %403 = vmatpush1.xpose.msra.mxu0 0.0
    %404 = vmatprep.subr.mxu0 0.0
    %405 = vmatpush1.xpose.msra.mxu0 0.0
    %406 = vmatprep.subr.mxu0 0.0
    %407 = vmatpush1.xpose.msra.mxu0 0.0
    %408 = vmatprep.subr.mxu0 0.0
    %409 = vmatpush1.xpose.msra.mxu0 0.0
    %410 = vmatprep.subr.mxu0 0.0
    %411 = vmatpush1.xpose.msra.mxu0 0.0
    %412 = vmatprep.subr.mxu0 0.0
    %413 = vmatpush1.xpose.msra.mxu0 0.0
    %414 = vmatprep.subr.mxu0 0.0
    %415 = vmatpush1.xpose.msra.mxu0 0.0
    %416 = vmatprep.subr.mxu0 0.0
    %417 = vmatpush1.xpose.msra.mxu0 0.0
    %418 = vmatprep.subr.mxu0 0.0
    %419 = vmatpush1.xpose.msra.mxu0 0.0
    %420 = vmatprep.subr.mxu0 0.0
    %421 = vmatpush1.xpose.msra.mxu0 0.0
    %422 = vmatprep.subr.mxu0 0.0
    %423 = vmatpush1.xpose.msra.mxu0 0.0
    %424 = vmatprep.subr.mxu0 0.0
    %425 = vmatpush1.xpose.msra.mxu0 0.0
    %426 = vmatprep.subr.mxu0 0.0
    %427 = vmatpush1.xpose.msra.mxu0 0.0
    %428 = vmatprep.subr.mxu0 0.0
    %429 = vmatpush1.xpose.msra.mxu0 0.0
    %430 = vmatprep.subr.mxu0 0.0
    %431 = vmatpush1.xpose.msra.mxu0 0.0
    %432 = vmatprep.subr.mxu0 0.0
    %433 = vmatpush1.xpose.msra.mxu0 0.0
    %434 = vmatprep.subr.mxu0 0.0
    %435 = vmatpush1.xpose.msra.mxu0 0.0
    %436 = vmatprep.subr.mxu0 0.0
    %437 = vmatpush1.xpose.msra.mxu0 0.0
    %438 = vmatprep.subr.mxu0 0.0
    %439 = vmatpush1.xpose.msra.mxu0 0.0
    %440 = vmatprep.subr.mxu0 0.0
    %441 = vmatpush1.xpose.msra.mxu0 0.0
    %442 = vmatprep.subr.mxu0 0.0
    %443 = vmatpush1.xpose.msra.mxu0 0.0
    %444 = vmatprep.subr.mxu0 0.0
    %445 = vmatpush1.xpose.msra.mxu0 0.0
    %446 = vmatprep.subr.mxu0 0.0
    %447 = vmatpush1.xpose.msra.mxu0 0.0
    %448 = vmatprep.subr.mxu0 0.0
    %449 = vmatpush1.xpose.msra.mxu0 0.0
    %450 = vmatprep.subr.mxu0 0.0
    %451 = vmatpush1.xpose.msra.mxu0 0.0
    %452 = vmatprep.subr.mxu0 0.0
    %453 = vmatpush1.xpose.msra.mxu0 0.0
    %454 = vmatprep.mubr.f32.mxu0 0.0
    %455 = vmatmul.mubr.f32.gmra.mrb[0].mxu0 %v386
    %v456 = vpop.f32.mrb[0].mxu0
    %v457 = vadd.f32 0.0, %v456
    %v458 = vpop.f32.mrb[0].mxu0
    %459 = vdwg.mxu0
    %v460 = vmul.f32 %v457, 0.35355338
    %v461 = vlaneseq
    %v462 = vshrl.u32 %v461, 7
    %v463 = vsub.s32 0, %v462
    %v464 = vrot.slane %v289, %v463
    %v465 = vadd.f32 %v460, %v464
    %v466 = vsel %vm385, %v465, -inf
    %467 = vmax.xlane.f32.xlu0 %v466
    %v468 = vpop.xlane.xlu0 %467
    %v469 = vsub.f32 %v465, %v468
    %v470 = vmul.f32 %v469, 1.442695
    %v471 = vpow.pop %v470
    %v472 = vsel %vm385, %v471, 0.0
    %473 = vadd.xlane.f32.xlu0 %v472
    %v474 = vpop.xlane.xlu0 %473
    %v475 = vrcp.pop %v474
    %v476 = vmul.f32 %v471, %v475
    %477 = vrot.lane.b32.xlu0 %v374, 64
    %v478 = vpop.permute.xlu0 %477
    %v481 = vsel %vm385, %v476, 0
    %483 = vmatprep.subr.mxu0 0.0
    %484 = vmatpush1.msra.mxu0 %v478
    %485 = vmatprep.subr.mxu0 0.0
    %486 = vmatpush1.msra.mxu0 0.0
    %487 = vmatprep.subr.mxu0 0.0
    %488 = vmatpush1.msra.mxu0 0.0
    %489 = vmatprep.subr.mxu0 0.0
    %490 = vmatpush1.msra.mxu0 0.0
    %491 = vmatprep.subr.mxu0 0.0
    %492 = vmatpush1.msra.mxu0 0.0
    %493 = vmatprep.subr.mxu0 0.0
    %494 = vmatpush1.msra.mxu0 0.0
    %495 = vmatprep.subr.mxu0 0.0
    %496 = vmatpush1.msra.mxu0 0.0
    %497 = vmatprep.subr.mxu0 0.0
    %498 = vmatpush1.msra.mxu0 0.0
    %499 = vmatprep.subr.mxu0 0.0
    %500 = vmatpush1.msra.mxu0 0.0
    %501 = vmatprep.subr.mxu0 0.0
    %502 = vmatpush1.msra.mxu0 0.0
    %503 = vmatprep.subr.mxu0 0.0
    %504 = vmatpush1.msra.mxu0 0.0
    %505 = vmatprep.subr.mxu0 0.0
    %506 = vmatpush1.msra.mxu0 0.0
    %507 = vmatprep.subr.mxu0 0.0
    %508 = vmatpush1.msra.mxu0 0.0
    %509 = vmatprep.subr.mxu0 0.0
    %510 = vmatpush1.msra.mxu0 0.0
    %511 = vmatprep.subr.mxu0 0.0
    %512 = vmatpush1.msra.mxu0 0.0
    %513 = vmatprep.subr.mxu0 0.0
    %514 = vmatpush1.msra.mxu0 0.0
    %515 = vmatprep.subr.mxu0 0.0
    %516 = vmatpush1.msra.mxu0 0.0
    %517 = vmatprep.subr.mxu0 0.0
    %518 = vmatpush1.msra.mxu0 0.0
    %519 = vmatprep.subr.mxu0 0.0
    %520 = vmatpush1.msra.mxu0 0.0
    %521 = vmatprep.subr.mxu0 0.0
    %522 = vmatpush1.msra.mxu0 0.0
    %523 = vmatprep.subr.mxu0 0.0
    %524 = vmatpush1.msra.mxu0 0.0
    %525 = vmatprep.subr.mxu0 0.0
    %526 = vmatpush1.msra.mxu0 0.0
    %527 = vmatprep.subr.mxu0 0.0
    %528 = vmatpush1.msra.mxu0 0.0
    %529 = vmatprep.subr.mxu0 0.0
    %530 = vmatpush1.msra.mxu0 0.0
    %531 = vmatprep.subr.mxu0 0.0
    %532 = vmatpush1.msra.mxu0 0.0
    %533 = vmatprep.subr.mxu0 0.0
    %534 = vmatpush1.msra.mxu0 0.0
    %535 = vmatprep.subr.mxu0 0.0
    %536 = vmatpush1.msra.mxu0 0.0
    %537 = vmatprep.subr.mxu0 0.0
    %538 = vmatpush1.msra.mxu0 0.0
    %539 = vmatprep.subr.mxu0 0.0
    %540 = vmatpush1.msra.mxu0 0.0
    %541 = vmatprep.subr.mxu0 0.0
    %542 = vmatpush1.msra.mxu0 0.0
    %543 = vmatprep.subr.mxu0 0.0
    %544 = vmatpush1.msra.mxu0 0.0
    %545 = vmatprep.subr.mxu0 0.0
    %546 = vmatpush1.msra.mxu0 0.0
    %547 = vmatprep.mubr.f32.mxu0 0.0
    %548 = vmatmul.mubr.f32.gmra.mrb[0].mxu0 %v481
    %v549 = vpop.f32.mrb[0].mxu0
    %v550 = vadd.f32 0.0, %v549
    %v551 = vpop.f32.mrb[0].mxu0
    %552 = vdwg.mxu0
    %553 = vrot.lane.b32.xlu0 %v374, 120
    %v554 = vpop.permute.xlu0 %553
    %555 = vrot.lane.b32.xlu0 %v374, 88
    %v556 = vpop.permute.xlu0 %555
    %v557 = vsel %vm385, %v554, 0
    %v559 = vsel %vm385, %v556, 0
    %561 = vmatprep.subr.mxu0 0.0
    %562 = vmatpush1.xpose.msra.mxu0 %v559
    %563 = vmatprep.subr.mxu0 0.0
    %564 = vmatpush1.xpose.msra.mxu0 0.0
    %565 = vmatprep.subr.mxu0 0.0
    %566 = vmatpush1.xpose.msra.mxu0 0.0
    %567 = vmatprep.subr.mxu0 0.0
    %568 = vmatpush1.xpose.msra.mxu0 0.0
    %569 = vmatprep.subr.mxu0 0.0
    %570 = vmatpush1.xpose.msra.mxu0 0.0
    %571 = vmatprep.subr.mxu0 0.0
    %572 = vmatpush1.xpose.msra.mxu0 0.0
    %573 = vmatprep.subr.mxu0 0.0
    %574 = vmatpush1.xpose.msra.mxu0 0.0
    %575 = vmatprep.subr.mxu0 0.0
    %576 = vmatpush1.xpose.msra.mxu0 0.0
    %577 = vmatprep.subr.mxu0 0.0
    %578 = vmatpush1.xpose.msra.mxu0 0.0
    %579 = vmatprep.subr.mxu0 0.0
    %580 = vmatpush1.xpose.msra.mxu0 0.0
    %581 = vmatprep.subr.mxu0 0.0
    %582 = vmatpush1.xpose.msra.mxu0 0.0
    %583 = vmatprep.subr.mxu0 0.0
    %584 = vmatpush1.xpose.msra.mxu0 0.0
    %585 = vmatprep.subr.mxu0 0.0
    %586 = vmatpush1.xpose.msra.mxu0 0.0
    %587 = vmatprep.subr.mxu0 0.0
    %588 = vmatpush1.xpose.msra.mxu0 0.0
    %589 = vmatprep.subr.mxu0 0.0
    %590 = vmatpush1.xpose.msra.mxu0 0.0
    %591 = vmatprep.subr.mxu0 0.0
    %592 = vmatpush1.xpose.msra.mxu0 0.0
    %593 = vmatprep.subr.mxu0 0.0
    %594 = vmatpush1.xpose.msra.mxu0 0.0
    %595 = vmatprep.subr.mxu0 0.0
    %596 = vmatpush1.xpose.msra.mxu0 0.0
    %597 = vmatprep.subr.mxu0 0.0
    %598 = vmatpush1.xpose.msra.mxu0 0.0
    %599 = vmatprep.subr.mxu0 0.0
    %600 = vmatpush1.xpose.msra.mxu0 0.0
    %601 = vmatprep.subr.mxu0 0.0
    %602 = vmatpush1.xpose.msra.mxu0 0.0
    %603 = vmatprep.subr.mxu0 0.0
    %604 = vmatpush1.xpose.msra.mxu0 0.0
    %605 = vmatprep.subr.mxu0 0.0
    %606 = vmatpush1.xpose.msra.mxu0 0.0
    %607 = vmatprep.subr.mxu0 0.0
    %608 = vmatpush1.xpose.msra.mxu0 0.0
    %609 = vmatprep.subr.mxu0 0.0
    %610 = vmatpush1.xpose.msra.mxu0 0.0
    %611 = vmatprep.subr.mxu0 0.0
    %612 = vmatpush1.xpose.msra.mxu0 0.0
    %613 = vmatprep.subr.mxu0 0.0
    %614 = vmatpush1.xpose.msra.mxu0 0.0
    %615 = vmatprep.subr.mxu0 0.0
    %616 = vmatpush1.xpose.msra.mxu0 0.0
    %617 = vmatprep.subr.mxu0 0.0
    %618 = vmatpush1.xpose.msra.mxu0 0.0
    %619 = vmatprep.subr.mxu0 0.0
    %620 = vmatpush1.xpose.msra.mxu0 0.0
    %621 = vmatprep.subr.mxu0 0.0
    %622 = vmatpush1.xpose.msra.mxu0 0.0
    %623 = vmatprep.subr.mxu0 0.0
    %624 = vmatpush1.xpose.msra.mxu0 0.0
    %625 = vmatprep.mubr.f32.mxu0 0.0
    %626 = vmatmul.mubr.f32.gmra.mrb[0].mxu0 %v557
    %v627 = vpop.f32.mrb[0].mxu0
    %v628 = vadd.f32 0.0, %v627
    %v629 = vpop.f32.mrb[0].mxu0
    %630 = vdwg.mxu0
    %v631 = vmul.f32 %v628, 0.35355338
    %v632 = vadd.f32 %v631, %v464
    %v633 = vsel %vm385, %v632, -inf
    %634 = vmax.xlane.f32.xlu0 %v633
    %v635 = vpop.xlane.xlu0 %634
    %v636 = vsub.f32 %v632, %v635
    %v637 = vmul.f32 %v636, 1.442695
    %v638 = vpow.pop %v637
    %v639 = vsel %vm385, %v638, 0.0
    %640 = vadd.xlane.f32.xlu0 %v639
    %v641 = vpop.xlane.xlu0 %640
    %v642 = vrcp.pop %v641
    %v643 = vmul.f32 %v638, %v642
    %644 = vrot.lane.b32.xlu0 %v374, 56
    %v645 = vpop.permute.xlu0 %644
    %v648 = vsel %vm385, %v643, 0
    %650 = vmatprep.subr.mxu0 0.0
    %651 = vmatpush1.msra.mxu0 %v645
    %652 = vmatprep.subr.mxu0 0.0
    %653 = vmatpush1.msra.mxu0 0.0
    %654 = vmatprep.subr.mxu0 0.0
    %655 = vmatpush1.msra.mxu0 0.0
    %656 = vmatprep.subr.mxu0 0.0
    %657 = vmatpush1.msra.mxu0 0.0
    %658 = vmatprep.subr.mxu0 0.0
    %659 = vmatpush1.msra.mxu0 0.0
    %660 = vmatprep.subr.mxu0 0.0
    %661 = vmatpush1.msra.mxu0 0.0
    %662 = vmatprep.subr.mxu0 0.0
    %663 = vmatpush1.msra.mxu0 0.0
    %664 = vmatprep.subr.mxu0 0.0
    %665 = vmatpush1.msra.mxu0 0.0
    %666 = vmatprep.subr.mxu0 0.0
    %667 = vmatpush1.msra.mxu0 0.0
    %668 = vmatprep.subr.mxu0 0.0
    %669 = vmatpush1.msra.mxu0 0.0
    %670 = vmatprep.subr.mxu0 0.0
    %671 = vmatpush1.msra.mxu0 0.0
    %672 = vmatprep.subr.mxu0 0.0
    %673 = vmatpush1.msra.mxu0 0.0
    %674 = vmatprep.subr.mxu0 0.0
    %675 = vmatpush1.msra.mxu0 0.0
    %676 = vmatprep.subr.mxu0 0.0
    %677 = vmatpush1.msra.mxu0 0.0
    %678 = vmatprep.subr.mxu0 0.0
    %679 = vmatpush1.msra.mxu0 0.0
    %680 = vmatprep.subr.mxu0 0.0
    %681 = vmatpush1.msra.mxu0 0.0
    %682 = vmatprep.subr.mxu0 0.0
    %683 = vmatpush1.msra.mxu0 0.0
    %684 = vmatprep.subr.mxu0 0.0
    %685 = vmatpush1.msra.mxu0 0.0
    %686 = vmatprep.subr.mxu0 0.0
    %687 = vmatpush1.msra.mxu0 0.0
    %688 = vmatprep.subr.mxu0 0.0
    %689 = vmatpush1.msra.mxu0 0.0
    %690 = vmatprep.subr.mxu0 0.0
    %691 = vmatpush1.msra.mxu0 0.0
    %692 = vmatprep.subr.mxu0 0.0
    %693 = vmatpush1.msra.mxu0 0.0
    %694 = vmatprep.subr.mxu0 0.0
    %695 = vmatpush1.msra.mxu0 0.0
    %696 = vmatprep.subr.mxu0 0.0
    %697 = vmatpush1.msra.mxu0 0.0
    %698 = vmatprep.subr.mxu0 0.0
    %699 = vmatpush1.msra.mxu0 0.0
    %700 = vmatprep.subr.mxu0 0.0
    %701 = vmatpush1.msra.mxu0 0.0
    %702 = vmatprep.subr.mxu0 0.0
    %703 = vmatpush1.msra.mxu0 0.0
    %704 = vmatprep.subr.mxu0 0.0
    %705 = vmatpush1.msra.mxu0 0.0
    %706 = vmatprep.subr.mxu0 0.0
    %707 = vmatpush1.msra.mxu0 0.0
    %708 = vmatprep.subr.mxu0 0.0
    %709 = vmatpush1.msra.mxu0 0.0
    %710 = vmatprep.subr.mxu0 0.0
    %711 = vmatpush1.msra.mxu0 0.0
    %712 = vmatprep.subr.mxu0 0.0
    %713 = vmatpush1.msra.mxu0 0.0
    %714 = vmatprep.mubr.f32.mxu0 0.0
    %715 = vmatmul.mubr.f32.gmra.mrb[0].mxu0 %v648
    %v716 = vpop.f32.mrb[0].mxu0
    %v717 = vadd.f32 0.0, %v716
    %v718 = vpop.f32.mrb[0].mxu0
    %719 = vdwg.mxu0
    %720 = vrot.lane.b32.xlu0 %v374, 112
    %v721 = vpop.permute.xlu0 %720
    %722 = vrot.lane.b32.xlu0 %v374, 80
    %v723 = vpop.permute.xlu0 %722
    %v724 = vsel %vm385, %v721, 0
    %v726 = vsel %vm385, %v723, 0
    %728 = vmatprep.subr.mxu0 0.0
    %729 = vmatpush1.xpose.msra.mxu0 %v726
    %730 = vmatprep.subr.mxu0 0.0
    %731 = vmatpush1.xpose.msra.mxu0 0.0
    %732 = vmatprep.subr.mxu0 0.0
    %733 = vmatpush1.xpose.msra.mxu0 0.0
    %734 = vmatprep.subr.mxu0 0.0
    %735 = vmatpush1.xpose.msra.mxu0 0.0
    %736 = vmatprep.subr.mxu0 0.0
    %737 = vmatpush1.xpose.msra.mxu0 0.0
    %738 = vmatprep.subr.mxu0 0.0
    %739 = vmatpush1.xpose.msra.mxu0 0.0
    %740 = vmatprep.subr.mxu0 0.0
    %741 = vmatpush1.xpose.msra.mxu0 0.0
    %742 = vmatprep.subr.mxu0 0.0
    %743 = vmatpush1.xpose.msra.mxu0 0.0
    %744 = vmatprep.subr.mxu0 0.0
    %745 = vmatpush1.xpose.msra.mxu0 0.0
    %746 = vmatprep.subr.mxu0 0.0
    %747 = vmatpush1.xpose.msra.mxu0 0.0
    %748 = vmatprep.subr.mxu0 0.0
    %749 = vmatpush1.xpose.msra.mxu0 0.0
    %750 = vmatprep.subr.mxu0 0.0
    %751 = vmatpush1.xpose.msra.mxu0 0.0
    %752 = vmatprep.subr.mxu0 0.0
    %753 = vmatpush1.xpose.msra.mxu0 0.0
    %754 = vmatprep.subr.mxu0 0.0
    %755 = vmatpush1.xpose.msra.mxu0 0.0
    %756 = vmatprep.subr.mxu0 0.0
    %757 = vmatpush1.xpose.msra.mxu0 0.0
    %758 = vmatprep.subr.mxu0 0.0
    %759 = vmatpush1.xpose.msra.mxu0 0.0
    %760 = vmatprep.subr.mxu0 0.0
    %761 = vmatpush1.xpose.msra.mxu0 0.0
    %762 = vmatprep.subr.mxu0 0.0
    %763 = vmatpush1.xpose.msra.mxu0 0.0
    %764 = vmatprep.subr.mxu0 0.0
    %765 = vmatpush1.xpose.msra.mxu0 0.0
    %766 = vmatprep.subr.mxu0 0.0
    %767 = vmatpush1.xpose.msra.mxu0 0.0
    %768 = vmatprep.subr.mxu0 0.0
    %769 = vmatpush1.xpose.msra.mxu0 0.0
    %770 = vmatprep.subr.mxu0 0.0
    %771 = vmatpush1.xpose.msra.mxu0 0.0
    %772 = vmatprep.subr.mxu0 0.0
    %773 = vmatpush1.xpose.msra.mxu0 0.0
    %774 = vmatprep.subr.mxu0 0.0
    %775 = vmatpush1.xpose.msra.mxu0 0.0
    %776 = vmatprep.subr.mxu0 0.0
    %777 = vmatpush1.xpose.msra.mxu0 0.0
    %778 = vmatprep.subr.mxu0 0.0
    %779 = vmatpush1.xpose.msra.mxu0 0.0
    %780 = vmatprep.subr.mxu0 0.0
    %781 = vmatpush1.xpose.msra.mxu0 0.0
    %782 = vmatprep.subr.mxu0 0.0
    %783 = vmatpush1.xpose.msra.mxu0 0.0
    %784 = vmatprep.subr.mxu0 0.0
    %785 = vmatpush1.xpose.msra.mxu0 0.0
    %786 = vmatprep.subr.mxu0 0.0
    %787 = vmatpush1.xpose.msra.mxu0 0.0
    %788 = vmatprep.subr.mxu0 0.0
    %789 = vmatpush1.xpose.msra.mxu0 0.0
    %790 = vmatprep.subr.mxu0 0.0
    %791 = vmatpush1.xpose.msra.mxu0 0.0
    %792 = vmatprep.mubr.f32.mxu0 0.0
    %793 = vmatmul.mubr.f32.gmra.mrb[0].mxu0 %v724
    %v794 = vpop.f32.mrb[0].mxu0
    %v795 = vadd.f32 0.0, %v794
    %v796 = vpop.f32.mrb[0].mxu0
    %797 = vdwg.mxu0
    %v798 = vmul.f32 %v795, 0.35355338
    %v799 = vadd.f32 %v798, %v464
    %v800 = vsel %vm385, %v799, -inf
    %801 = vmax.xlane.f32.xlu0 %v800
    %v802 = vpop.xlane.xlu0 %801
    %v803 = vsub.f32 %v799, %v802
    %v804 = vmul.f32 %v803, 1.442695
    %v805 = vpow.pop %v804
    %v806 = vsel %vm385, %v805, 0.0
    %807 = vadd.xlane.f32.xlu0 %v806
    %v808 = vpop.xlane.xlu0 %807
    %v809 = vrcp.pop %v808
    %v810 = vmul.f32 %v805, %v809
    %811 = vrot.lane.b32.xlu0 %v374, 48
    %v812 = vpop.permute.xlu0 %811
    %v815 = vsel %vm385, %v810, 0
    %817 = vmatprep.subr.mxu0 0.0
    %818 = vmatpush1.msra.mxu0 %v812
    %819 = vmatprep.subr.mxu0 0.0
    %820 = vmatpush1.msra.mxu0 0.0
    %821 = vmatprep.subr.mxu0 0.0
    %822 = vmatpush1.msra.mxu0 0.0
    %823 = vmatprep.subr.mxu0 0.0
    %824 = vmatpush1.msra.mxu0 0.0
    %825 = vmatprep.subr.mxu0 0.0
    %826 = vmatpush1.msra.mxu0 0.0
    %827 = vmatprep.subr.mxu0 0.0
    %828 = vmatpush1.msra.mxu0 0.0
    %829 = vmatprep.subr.mxu0 0.0
    %830 = vmatpush1.msra.mxu0 0.0
    %831 = vmatprep.subr.mxu0 0.0
    %832 = vmatpush1.msra.mxu0 0.0
    %833 = vmatprep.subr.mxu0 0.0
    %834 = vmatpush1.msra.mxu0 0.0
    %835 = vmatprep.subr.mxu0 0.0
    %836 = vmatpush1.msra.mxu0 0.0
    %837 = vmatprep.subr.mxu0 0.0
    %838 = vmatpush1.msra.mxu0 0.0
    %839 = vmatprep.subr.mxu0 0.0
    %840 = vmatpush1.msra.mxu0 0.0
    %841 = vmatprep.subr.mxu0 0.0
    %842 = vmatpush1.msra.mxu0 0.0
    %843 = vmatprep.subr.mxu0 0.0
    %844 = vmatpush1.msra.mxu0 0.0
    %845 = vmatprep.subr.mxu0 0.0
    %846 = vmatpush1.msra.mxu0 0.0
    %847 = vmatprep.subr.mxu0 0.0
    %848 = vmatpush1.msra.mxu0 0.0
    %849 = vmatprep.subr.mxu0 0.0
    %850 = vmatpush1.msra.mxu0 0.0
    %851 = vmatprep.subr.mxu0 0.0
    %852 = vmatpush1.msra.mxu0 0.0
    %853 = vmatprep.subr.mxu0 0.0
    %854 = vmatpush1.msra.mxu0 0.0
    %855 = vmatprep.subr.mxu0 0.0
    %856 = vmatpush1.msra.mxu0 0.0
    %857 = vmatprep.subr.mxu0 0.0
    %858 = vmatpush1.msra.mxu0 0.0
    %859 = vmatprep.subr.mxu0 0.0
    %860 = vmatpush1.msra.mxu0 0.0
    %861 = vmatprep.subr.mxu0 0.0
    %862 = vmatpush1.msra.mxu0 0.0
    %863 = vmatprep.subr.mxu0 0.0
    %864 = vmatpush1.msra.mxu0 0.0
    %865 = vmatprep.subr.mxu0 0.0
    %866 = vmatpush1.msra.mxu0 0.0
    %867 = vmatprep.subr.mxu0 0.0
    %868 = vmatpush1.msra.mxu0 0.0
    %869 = vmatprep.subr.mxu0 0.0
    %870 = vmatpush1.msra.mxu0 0.0
    %871 = vmatprep.subr.mxu0 0.0
    %872 = vmatpush1.msra.mxu0 0.0
    %873 = vmatprep.subr.mxu0 0.0
    %874 = vmatpush1.msra.mxu0 0.0
    %875 = vmatprep.subr.mxu0 0.0
    %876 = vmatpush1.msra.mxu0 0.0
    %877 = vmatprep.subr.mxu0 0.0
    %878 = vmatpush1.msra.mxu0 0.0
    %879 = vmatprep.subr.mxu0 0.0
    %880 = vmatpush1.msra.mxu0 0.0
    %881 = vmatprep.mubr.f32.mxu0 0.0
    %882 = vmatmul.mubr.f32.gmra.mrb[0].mxu0 %v815
    %v883 = vpop.f32.mrb[0].mxu0
    %v884 = vadd.f32 0.0, %v883
    %v885 = vpop.f32.mrb[0].mxu0
    %886 = vdwg.mxu0
    %887 = vrot.lane.b32.xlu0 %v374, 104
    %v888 = vpop.permute.xlu0 %887
    %889 = vrot.lane.b32.xlu0 %v374, 72
    %v890 = vpop.permute.xlu0 %889
    %v891 = vsel %vm385, %v888, 0
    %v893 = vsel %vm385, %v890, 0
    %895 = vmatprep.subr.mxu0 0.0
    %896 = vmatpush1.xpose.msra.mxu0 %v893
    %897 = vmatprep.subr.mxu0 0.0
    %898 = vmatpush1.xpose.msra.mxu0 0.0
    %899 = vmatprep.subr.mxu0 0.0
    %900 = vmatpush1.xpose.msra.mxu0 0.0
    %901 = vmatprep.subr.mxu0 0.0
    %902 = vmatpush1.xpose.msra.mxu0 0.0
    %903 = vmatprep.subr.mxu0 0.0
    %904 = vmatpush1.xpose.msra.mxu0 0.0
    %905 = vmatprep.subr.mxu0 0.0
    %906 = vmatpush1.xpose.msra.mxu0 0.0
    %907 = vmatprep.subr.mxu0 0.0
    %908 = vmatpush1.xpose.msra.mxu0 0.0
    %909 = vmatprep.subr.mxu0 0.0
    %910 = vmatpush1.xpose.msra.mxu0 0.0
    %911 = vmatprep.subr.mxu0 0.0
    %912 = vmatpush1.xpose.msra.mxu0 0.0
    %913 = vmatprep.subr.mxu0 0.0
    %914 = vmatpush1.xpose.msra.mxu0 0.0
    %915 = vmatprep.subr.mxu0 0.0
    %916 = vmatpush1.xpose.msra.mxu0 0.0
    %917 = vmatprep.subr.mxu0 0.0
    %918 = vmatpush1.xpose.msra.mxu0 0.0
    %919 = vmatprep.subr.mxu0 0.0
    %920 = vmatpush1.xpose.msra.mxu0 0.0
    %921 = vmatprep.subr.mxu0 0.0
    %922 = vmatpush1.xpose.msra.mxu0 0.0
    %923 = vmatprep.subr.mxu0 0.0
    %924 = vmatpush1.xpose.msra.mxu0 0.0
    %925 = vmatprep.subr.mxu0 0.0
    %926 = vmatpush1.xpose.msra.mxu0 0.0
    %927 = vmatprep.subr.mxu0 0.0
    %928 = vmatpush1.xpose.msra.mxu0 0.0
    %929 = vmatprep.subr.mxu0 0.0
    %930 = vmatpush1.xpose.msra.mxu0 0.0
    %931 = vmatprep.subr.mxu0 0.0
    %932 = vmatpush1.xpose.msra.mxu0 0.0
    %933 = vmatprep.subr.mxu0 0.0
    %934 = vmatpush1.xpose.msra.mxu0 0.0
    %935 = vmatprep.subr.mxu0 0.0
    %936 = vmatpush1.xpose.msra.mxu0 0.0
    %937 = vmatprep.subr.mxu0 0.0
    %938 = vmatpush1.xpose.msra.mxu0 0.0
    %939 = vmatprep.subr.mxu0 0.0
    %940 = vmatpush1.xpose.msra.mxu0 0.0
    %941 = vmatprep.subr.mxu0 0.0
    %942 = vmatpush1.xpose.msra.mxu0 0.0
    %943 = vmatprep.subr.mxu0 0.0
    %944 = vmatpush1.xpose.msra.mxu0 0.0
    %945 = vmatprep.subr.mxu0 0.0
    %946 = vmatpush1.xpose.msra.mxu0 0.0
    %947 = vmatprep.subr.mxu0 0.0
    %948 = vmatpush1.xpose.msra.mxu0 0.0
    %949 = vmatprep.subr.mxu0 0.0
    %950 = vmatpush1.xpose.msra.mxu0 0.0
    %951 = vmatprep.subr.mxu0 0.0
    %952 = vmatpush1.xpose.msra.mxu0 0.0
    %953 = vmatprep.subr.mxu0 0.0
    %954 = vmatpush1.xpose.msra.mxu0 0.0
    %955 = vmatprep.subr.mxu0 0.0
    %956 = vmatpush1.xpose.msra.mxu0 0.0
    %957 = vmatprep.subr.mxu0 0.0
    %958 = vmatpush1.xpose.msra.mxu0 0.0
    %959 = vmatprep.mubr.f32.mxu0 0.0
    %960 = vmatmul.mubr.f32.gmra.mrb[0].mxu0 %v891
    %v961 = vpop.f32.mrb[0].mxu0
    %v962 = vadd.f32 0.0, %v961
    %v963 = vpop.f32.mrb[0].mxu0
    %964 = vdwg.mxu0
    %v965 = vmul.f32 %v962, 0.35355338
    %v966 = vadd.f32 %v965, %v464
    %v967 = vsel %vm385, %v966, -inf
    %968 = vmax.xlane.f32.xlu0 %v967
    %v969 = vpop.xlane.xlu0 %968
    %v970 = vsub.f32 %v966, %v969
    %v971 = vmul.f32 %v970, 1.442695
    %v972 = vpow.pop %v971
    %v973 = vsel %vm385, %v972, 0.0
    %974 = vadd.xlane.f32.xlu0 %v973
    %v975 = vpop.xlane.xlu0 %974
    %v976 = vrcp.pop %v975
    %v977 = vmul.f32 %v972, %v976
    %978 = vrot.lane.b32.xlu0 %v374, 40
    %v979 = vpop.permute.xlu0 %978
    %v982 = vsel %vm385, %v977, 0
    %984 = vmatprep.subr.mxu0 0.0
    %985 = vmatpush1.msra.mxu0 %v979
    %986 = vmatprep.subr.mxu0 0.0
    %987 = vmatpush1.msra.mxu0 0.0
    %988 = vmatprep.subr.mxu0 0.0
    %989 = vmatpush1.msra.mxu0 0.0
    %990 = vmatprep.subr.mxu0 0.0
    %991 = vmatpush1.msra.mxu0 0.0
    %992 = vmatprep.subr.mxu0 0.0
    %993 = vmatpush1.msra.mxu0 0.0
    %994 = vmatprep.subr.mxu0 0.0
    %995 = vmatpush1.msra.mxu0 0.0
    %996 = vmatprep.subr.mxu0 0.0
    %997 = vmatpush1.msra.mxu0 0.0
    %998 = vmatprep.subr.mxu0 0.0
    %999 = vmatpush1.msra.mxu0 0.0
    %1000 = vmatprep.subr.mxu0 0.0
    %1001 = vmatpush1.msra.mxu0 0.0
    %1002 = vmatprep.subr.mxu0 0.0
    %1003 = vmatpush1.msra.mxu0 0.0
    %1004 = vmatprep.subr.mxu0 0.0
    %1005 = vmatpush1.msra.mxu0 0.0
    %1006 = vmatprep.subr.mxu0 0.0
    %1007 = vmatpush1.msra.mxu0 0.0
    %1008 = vmatprep.subr.mxu0 0.0
    %1009 = vmatpush1.msra.mxu0 0.0
    %1010 = vmatprep.subr.mxu0 0.0
    %1011 = vmatpush1.msra.mxu0 0.0
    %1012 = vmatprep.subr.mxu0 0.0
    %1013 = vmatpush1.msra.mxu0 0.0
    %1014 = vmatprep.subr.mxu0 0.0
    %1015 = vmatpush1.msra.mxu0 0.0
    %1016 = vmatprep.subr.mxu0 0.0
    %1017 = vmatpush1.msra.mxu0 0.0
    %1018 = vmatprep.subr.mxu0 0.0
    %1019 = vmatpush1.msra.mxu0 0.0
    %1020 = vmatprep.subr.mxu0 0.0
    %1021 = vmatpush1.msra.mxu0 0.0
    %1022 = vmatprep.subr.mxu0 0.0
    %1023 = vmatpush1.msra.mxu0 0.0
    %1024 = vmatprep.subr.mxu0 0.0
    %1025 = vmatpush1.msra.mxu0 0.0
    %1026 = vmatprep.subr.mxu0 0.0
    %1027 = vmatpush1.msra.mxu0 0.0
    %1028 = vmatprep.subr.mxu0 0.0
    %1029 = vmatpush1.msra.mxu0 0.0
    %1030 = vmatprep.subr.mxu0 0.0
    %1031 = vmatpush1.msra.mxu0 0.0
    %1032 = vmatprep.subr.mxu0 0.0
    %1033 = vmatpush1.msra.mxu0 0.0
    %1034 = vmatprep.subr.mxu0 0.0
    %1035 = vmatpush1.msra.mxu0 0.0
    %1036 = vmatprep.subr.mxu0 0.0
    %1037 = vmatpush1.msra.mxu0 0.0
    %1038 = vmatprep.subr.mxu0 0.0
    %1039 = vmatpush1.msra.mxu0 0.0
    %1040 = vmatprep.subr.mxu0 0.0
    %1041 = vmatpush1.msra.mxu0 0.0
    %1042 = vmatprep.subr.mxu0 0.0
    %1043 = vmatpush1.msra.mxu0 0.0
    %1044 = vmatprep.subr.mxu0 0.0
    %1045 = vmatpush1.msra.mxu0 0.0
    %1046 = vmatprep.subr.mxu0 0.0
    %1047 = vmatpush1.msra.mxu0 0.0
    %1048 = vmatprep.mubr.f32.mxu0 0.0
    %1049 = vmatmul.mubr.f32.gmra.mrb[0].mxu0 %v982
    %v1050 = vpop.f32.mrb[0].mxu0
    %v1051 = vadd.f32 0.0, %v1050
    %v1052 = vpop.f32.mrb[0].mxu0
    %1053 = vdwg.mxu0
    %1055 = vrot.lane.b32.xlu0 %v717, 8
    %v1056 = vpop.permute.xlu0 %1055
    %1059 = vrot.lane.b32.xlu0 %v884, 16
    %v1060 = vpop.permute.xlu0 %1059
    %1063 = vrot.lane.b32.xlu0 %v1051, 24
    %v1064 = vpop.permute.xlu0 %1063
    %v1066 = vsel %vm385, %v550, %v1056
    %vm1067 = vcmask 130048
    %v1068 = vsel %vm1067, %v1066, %v1060
    %vm1069 = vcmask 195584
    %v1070 = vsel %vm1069, %v1068, %v1064
    %1072 = vrot.lane.b32.xlu0 %v379, 96
    %v1073 = vpop.permute.xlu0 %1072
    %v1074 = vsel %vm385, %v379, 0
    %v1076 = vsel %vm385, %v1073, 0
    %1078 = vmatprep.subr.mxu0 0.0
    %1079 = vmatpush1.xpose.msra.mxu0 %v1076
    %1080 = vmatprep.subr.mxu0 0.0
    %1081 = vmatpush1.xpose.msra.mxu0 0.0
    %1082 = vmatprep.subr.mxu0 0.0
    %1083 = vmatpush1.xpose.msra.mxu0 0.0
    %1084 = vmatprep.subr.mxu0 0.0
    %1085 = vmatpush1.xpose.msra.mxu0 0.0
    %1086 = vmatprep.subr.mxu0 0.0
    %1087 = vmatpush1.xpose.msra.mxu0 0.0
    %1088 = vmatprep.subr.mxu0 0.0
    %1089 = vmatpush1.xpose.msra.mxu0 0.0
    %1090 = vmatprep.subr.mxu0 0.0
    %1091 = vmatpush1.xpose.msra.mxu0 0.0
    %1092 = vmatprep.subr.mxu0 0.0
    %1093 = vmatpush1.xpose.msra.mxu0 0.0
    %1094 = vmatprep.subr.mxu0 0.0
    %1095 = vmatpush1.xpose.msra.mxu0 0.0
    %1096 = vmatprep.subr.mxu0 0.0
    %1097 = vmatpush1.xpose.msra.mxu0 0.0
    %1098 = vmatprep.subr.mxu0 0.0
    %1099 = vmatpush1.xpose.msra.mxu0 0.0
    %1100 = vmatprep.subr.mxu0 0.0
    %1101 = vmatpush1.xpose.msra.mxu0 0.0
    %1102 = vmatprep.subr.mxu0 0.0
    %1103 = vmatpush1.xpose.msra.mxu0 0.0
    %1104 = vmatprep.subr.mxu0 0.0
    %1105 = vmatpush1.xpose.msra.mxu0 0.0
    %1106 = vmatprep.subr.mxu0 0.0
    %1107 = vmatpush1.xpose.msra.mxu0 0.0
    %1108 = vmatprep.subr.mxu0 0.0
    %1109 = vmatpush1.xpose.msra.mxu0 0.0
    %1110 = vmatprep.subr.mxu0 0.0
    %1111 = vmatpush1.xpose.msra.mxu0 0.0
    %1112 = vmatprep.subr.mxu0 0.0
    %1113 = vmatpush1.xpose.msra.mxu0 0.0
    %1114 = vmatprep.subr.mxu0 0.0
    %1115 = vmatpush1.xpose.msra.mxu0 0.0
    %1116 = vmatprep.subr.mxu0 0.0
    %1117 = vmatpush1.xpose.msra.mxu0 0.0
    %1118 = vmatprep.subr.mxu0 0.0
    %1119 = vmatpush1.xpose.msra.mxu0 0.0
    %1120 = vmatprep.subr.mxu0 0.0
    %1121 = vmatpush1.xpose.msra.mxu0 0.0
    %1122 = vmatprep.subr.mxu0 0.0
    %1123 = vmatpush1.xpose.msra.mxu0 0.0
    %1124 = vmatprep.subr.mxu0 0.0
    %1125 = vmatpush1.xpose.msra.mxu0 0.0
    %1126 = vmatprep.subr.mxu0 0.0
    %1127 = vmatpush1.xpose.msra.mxu0 0.0
    %1128 = vmatprep.subr.mxu0 0.0
    %1129 = vmatpush1.xpose.msra.mxu0 0.0
    %1130 = vmatprep.subr.mxu0 0.0
    %1131 = vmatpush1.xpose.msra.mxu0 0.0
    %1132 = vmatprep.subr.mxu0 0.0
    %1133 = vmatpush1.xpose.msra.mxu0 0.0
    %1134 = vmatprep.subr.mxu0 0.0
    %1135 = vmatpush1.xpose.msra.mxu0 0.0
    %1136 = vmatprep.subr.mxu0 0.0
    %1137 = vmatpush1.xpose.msra.mxu0 0.0
    %1138 = vmatprep.subr.mxu0 0.0
    %1139 = vmatpush1.xpose.msra.mxu0 0.0
    %1140 = vmatprep.subr.mxu0 0.0
    %1141 = vmatpush1.xpose.msra.mxu0 0.0
    %1142 = vmatprep.mubr.f32.mxu0 0.0
    %1143 = vmatmul.mubr.f32.gmra.mrb[0].mxu0 %v1074
    %v1144 = vpop.f32.mrb[0].mxu0
    %v1145 = vadd.f32 0.0, %v1144
    %v1146 = vpop.f32.mrb[0].mxu0
    %1147 = vdwg.mxu0
    %v1148 = vmul.f32 %v1145, 0.35355338
    %v1149 = vlaneseq
    %v1150 = vshrl.u32 %v1149, 7
    %v1151 = vsub.s32 1, %v1150
    %v1152 = vrot.slane %v289, %v1151
    %v1153 = vadd.f32 %v1148, %v1152
    %v1154 = vsel %vm385, %v1153, -inf
    %1155 = vmax.xlane.f32.xlu0 %v1154
    %v1156 = vpop.xlane.xlu0 %1155
    %v1157 = vsub.f32 %v1153, %v1156
    %v1158 = vmul.f32 %v1157, 1.442695
    %v1159 = vpow.pop %v1158
    %v1160 = vsel %vm385, %v1159, 0.0
    %1161 = vadd.xlane.f32.xlu0 %v1160
    %v1162 = vpop.xlane.xlu0 %1161
    %v1163 = vrcp.pop %v1162
    %v1164 = vmul.f32 %v1159, %v1163
    %1165 = vrot.lane.b32.xlu0 %v379, 64
    %v1166 = vpop.permute.xlu0 %1165
    %v1169 = vsel %vm385, %v1164, 0
    %1171 = vmatprep.subr.mxu0 0.0
    %1172 = vmatpush1.msra.mxu0 %v1166
    %1173 = vmatprep.subr.mxu0 0.0
    %1174 = vmatpush1.msra.mxu0 0.0
    %1175 = vmatprep.subr.mxu0 0.0
    %1176 = vmatpush1.msra.mxu0 0.0
    %1177 = vmatprep.subr.mxu0 0.0
    %1178 = vmatpush1.msra.mxu0 0.0
    %1179 = vmatprep.subr.mxu0 0.0
    %1180 = vmatpush1.msra.mxu0 0.0
    %1181 = vmatprep.subr.mxu0 0.0
    %1182 = vmatpush1.msra.mxu0 0.0
    %1183 = vmatprep.subr.mxu0 0.0
    %1184 = vmatpush1.msra.mxu0 0.0
    %1185 = vmatprep.subr.mxu0 0.0
    %1186 = vmatpush1.msra.mxu0 0.0
    %1187 = vmatprep.subr.mxu0 0.0
    %1188 = vmatpush1.msra.mxu0 0.0
    %1189 = vmatprep.subr.mxu0 0.0
    %1190 = vmatpush1.msra.mxu0 0.0
    %1191 = vmatprep.subr.mxu0 0.0
    %1192 = vmatpush1.msra.mxu0 0.0
    %1193 = vmatprep.subr.mxu0 0.0
    %1194 = vmatpush1.msra.mxu0 0.0
    %1195 = vmatprep.subr.mxu0 0.0
    %1196 = vmatpush1.msra.mxu0 0.0
    %1197 = vmatprep.subr.mxu0 0.0
    %1198 = vmatpush1.msra.mxu0 0.0
    %1199 = vmatprep.subr.mxu0 0.0
    %1200 = vmatpush1.msra.mxu0 0.0
    %1201 = vmatprep.subr.mxu0 0.0
    %1202 = vmatpush1.msra.mxu0 0.0
    %1203 = vmatprep.subr.mxu0 0.0
    %1204 = vmatpush1.msra.mxu0 0.0
    %1205 = vmatprep.subr.mxu0 0.0
    %1206 = vmatpush1.msra.mxu0 0.0
    %1207 = vmatprep.subr.mxu0 0.0
    %1208 = vmatpush1.msra.mxu0 0.0
    %1209 = vmatprep.subr.mxu0 0.0
    %1210 = vmatpush1.msra.mxu0 0.0
    %1211 = vmatprep.subr.mxu0 0.0
    %1212 = vmatpush1.msra.mxu0 0.0
    %1213 = vmatprep.subr.mxu0 0.0
    %1214 = vmatpush1.msra.mxu0 0.0
    %1215 = vmatprep.subr.mxu0 0.0
    %1216 = vmatpush1.msra.mxu0 0.0
    %1217 = vmatprep.subr.mxu0 0.0
    %1218 = vmatpush1.msra.mxu0 0.0
    %1219 = vmatprep.subr.mxu0 0.0
    %1220 = vmatpush1.msra.mxu0 0.0
    %1221 = vmatprep.subr.mxu0 0.0
    %1222 = vmatpush1.msra.mxu0 0.0
    %1223 = vmatprep.subr.mxu0 0.0
    %1224 = vmatpush1.msra.mxu0 0.0
    %1225 = vmatprep.subr.mxu0 0.0
    %1226 = vmatpush1.msra.mxu0 0.0
    %1227 = vmatprep.subr.mxu0 0.0
    %1228 = vmatpush1.msra.mxu0 0.0
    %1229 = vmatprep.subr.mxu0 0.0
    %1230 = vmatpush1.msra.mxu0 0.0
    %1231 = vmatprep.subr.mxu0 0.0
    %1232 = vmatpush1.msra.mxu0 0.0
    %1233 = vmatprep.subr.mxu0 0.0
    %1234 = vmatpush1.msra.mxu0 0.0
    %1235 = vmatprep.mubr.f32.mxu0 0.0
    %1236 = vmatmul.mubr.f32.gmra.mrb[0].mxu0 %v1169
    %v1237 = vpop.f32.mrb[0].mxu0
    %v1238 = vadd.f32 0.0, %v1237
    %v1239 = vpop.f32.mrb[0].mxu0
    %1240 = vdwg.mxu0
    %1241 = vrot.lane.b32.xlu0 %v379, 120
    %v1242 = vpop.permute.xlu0 %1241
    %1243 = vrot.lane.b32.xlu0 %v379, 88
    %v1244 = vpop.permute.xlu0 %1243
    %v1245 = vsel %vm385, %v1242, 0
    %v1247 = vsel %vm385, %v1244, 0
    %1249 = vmatprep.subr.mxu0 0.0
    %1250 = vmatpush1.xpose.msra.mxu0 %v1247
    %1251 = vmatprep.subr.mxu0 0.0
    %1252 = vmatpush1.xpose.msra.mxu0 0.0
    %1253 = vmatprep.subr.mxu0 0.0
    %1254 = vmatpush1.xpose.msra.mxu0 0.0
    %1255 = vmatprep.subr.mxu0 0.0
    %1256 = vmatpush1.xpose.msra.mxu0 0.0
    %1257 = vmatprep.subr.mxu0 0.0
    %1258 = vmatpush1.xpose.msra.mxu0 0.0
    %1259 = vmatprep.subr.mxu0 0.0
    %1260 = vmatpush1.xpose.msra.mxu0 0.0
    %1261 = vmatprep.subr.mxu0 0.0
    %1262 = vmatpush1.xpose.msra.mxu0 0.0
    %1263 = vmatprep.subr.mxu0 0.0
    %1264 = vmatpush1.xpose.msra.mxu0 0.0
    %1265 = vmatprep.subr.mxu0 0.0
    %1266 = vmatpush1.xpose.msra.mxu0 0.0
    %1267 = vmatprep.subr.mxu0 0.0
    %1268 = vmatpush1.xpose.msra.mxu0 0.0
    %1269 = vmatprep.subr.mxu0 0.0
    %1270 = vmatpush1.xpose.msra.mxu0 0.0
    %1271 = vmatprep.subr.mxu0 0.0
    %1272 = vmatpush1.xpose.msra.mxu0 0.0
    %1273 = vmatprep.subr.mxu0 0.0
    %1274 = vmatpush1.xpose.msra.mxu0 0.0
    %1275 = vmatprep.subr.mxu0 0.0
    %1276 = vmatpush1.xpose.msra.mxu0 0.0
    %1277 = vmatprep.subr.mxu0 0.0
    %1278 = vmatpush1.xpose.msra.mxu0 0.0
    %1279 = vmatprep.subr.mxu0 0.0
    %1280 = vmatpush1.xpose.msra.mxu0 0.0
    %1281 = vmatprep.subr.mxu0 0.0
    %1282 = vmatpush1.xpose.msra.mxu0 0.0
    %1283 = vmatprep.subr.mxu0 0.0
    %1284 = vmatpush1.xpose.msra.mxu0 0.0
    %1285 = vmatprep.subr.mxu0 0.0
    %1286 = vmatpush1.xpose.msra.mxu0 0.0
    %1287 = vmatprep.subr.mxu0 0.0
    %1288 = vmatpush1.xpose.msra.mxu0 0.0
    %1289 = vmatprep.subr.mxu0 0.0
    %1290 = vmatpush1.xpose.msra.mxu0 0.0
    %1291 = vmatprep.subr.mxu0 0.0
    %1292 = vmatpush1.xpose.msra.mxu0 0.0
    %1293 = vmatprep.subr.mxu0 0.0
    %1294 = vmatpush1.xpose.msra.mxu0 0.0
    %1295 = vmatprep.subr.mxu0 0.0
    %1296 = vmatpush1.xpose.msra.mxu0 0.0
    %1297 = vmatprep.subr.mxu0 0.0
    %1298 = vmatpush1.xpose.msra.mxu0 0.0
    %1299 = vmatprep.subr.mxu0 0.0
    %1300 = vmatpush1.xpose.msra.mxu0 0.0
    %1301 = vmatprep.subr.mxu0 0.0
    %1302 = vmatpush1.xpose.msra.mxu0 0.0
    %1303 = vmatprep.subr.mxu0 0.0
    %1304 = vmatpush1.xpose.msra.mxu0 0.0
    %1305 = vmatprep.subr.mxu0 0.0
    %1306 = vmatpush1.xpose.msra.mxu0 0.0
    %1307 = vmatprep.subr.mxu0 0.0
    %1308 = vmatpush1.xpose.msra.mxu0 0.0
    %1309 = vmatprep.subr.mxu0 0.0
    %1310 = vmatpush1.xpose.msra.mxu0 0.0
    %1311 = vmatprep.subr.mxu0 0.0
    %1312 = vmatpush1.xpose.msra.mxu0 0.0
    %1313 = vmatprep.mubr.f32.mxu0 0.0
    %1314 = vmatmul.mubr.f32.gmra.mrb[0].mxu0 %v1245
    %v1315 = vpop.f32.mrb[0].mxu0
    %v1316 = vadd.f32 0.0, %v1315
    %v1317 = vpop.f32.mrb[0].mxu0
    %1318 = vdwg.mxu0
    %v1319 = vmul.f32 %v1316, 0.35355338
    %v1320 = vadd.f32 %v1319, %v1152
    %v1321 = vsel %vm385, %v1320, -inf
    %1322 = vmax.xlane.f32.xlu0 %v1321
    %v1323 = vpop.xlane.xlu0 %1322
    %v1324 = vsub.f32 %v1320, %v1323
    %v1325 = vmul.f32 %v1324, 1.442695
    %v1326 = vpow.pop %v1325
    %v1327 = vsel %vm385, %v1326, 0.0
    %1328 = vadd.xlane.f32.xlu0 %v1327
    %v1329 = vpop.xlane.xlu0 %1328
    %v1330 = vrcp.pop %v1329
    %v1331 = vmul.f32 %v1326, %v1330
    %1332 = vrot.lane.b32.xlu0 %v379, 56
    %v1333 = vpop.permute.xlu0 %1332
    %v1336 = vsel %vm385, %v1331, 0
    %1338 = vmatprep.subr.mxu0 0.0
    %1339 = vmatpush1.msra.mxu0 %v1333
    %1340 = vmatprep.subr.mxu0 0.0
    %1341 = vmatpush1.msra.mxu0 0.0
    %1342 = vmatprep.subr.mxu0 0.0
    %1343 = vmatpush1.msra.mxu0 0.0
    %1344 = vmatprep.subr.mxu0 0.0
    %1345 = vmatpush1.msra.mxu0 0.0
    %1346 = vmatprep.subr.mxu0 0.0
    %1347 = vmatpush1.msra.mxu0 0.0
    %1348 = vmatprep.subr.mxu0 0.0
    %1349 = vmatpush1.msra.mxu0 0.0
    %1350 = vmatprep.subr.mxu0 0.0
    %1351 = vmatpush1.msra.mxu0 0.0
    %1352 = vmatprep.subr.mxu0 0.0
    %1353 = vmatpush1.msra.mxu0 0.0
    %1354 = vmatprep.subr.mxu0 0.0
    %1355 = vmatpush1.msra.mxu0 0.0
    %1356 = vmatprep.subr.mxu0 0.0
    %1357 = vmatpush1.msra.mxu0 0.0
    %1358 = vmatprep.subr.mxu0 0.0
    %1359 = vmatpush1.msra.mxu0 0.0
    %1360 = vmatprep.subr.mxu0 0.0
    %1361 = vmatpush1.msra.mxu0 0.0
    %1362 = vmatprep.subr.mxu0 0.0
    %1363 = vmatpush1.msra.mxu0 0.0
    %1364 = vmatprep.subr.mxu0 0.0
    %1365 = vmatpush1.msra.mxu0 0.0
    %1366 = vmatprep.subr.mxu0 0.0
    %1367 = vmatpush1.msra.mxu0 0.0
    %1368 = vmatprep.subr.mxu0 0.0
    %1369 = vmatpush1.msra.mxu0 0.0
    %1370 = vmatprep.subr.mxu0 0.0
    %1371 = vmatpush1.msra.mxu0 0.0
    %1372 = vmatprep.subr.mxu0 0.0
    %1373 = vmatpush1.msra.mxu0 0.0
    %1374 = vmatprep.subr.mxu0 0.0
    %1375 = vmatpush1.msra.mxu0 0.0
    %1376 = vmatprep.subr.mxu0 0.0
    %1377 = vmatpush1.msra.mxu0 0.0
    %1378 = vmatprep.subr.mxu0 0.0
    %1379 = vmatpush1.msra.mxu0 0.0
    %1380 = vmatprep.subr.mxu0 0.0
    %1381 = vmatpush1.msra.mxu0 0.0
    %1382 = vmatprep.subr.mxu0 0.0
    %1383 = vmatpush1.msra.mxu0 0.0
    %1384 = vmatprep.subr.mxu0 0.0
    %1385 = vmatpush1.msra.mxu0 0.0
    %1386 = vmatprep.subr.mxu0 0.0
    %1387 = vmatpush1.msra.mxu0 0.0
    %1388 = vmatprep.subr.mxu0 0.0
    %1389 = vmatpush1.msra.mxu0 0.0
    %1390 = vmatprep.subr.mxu0 0.0
    %1391 = vmatpush1.msra.mxu0 0.0
    %1392 = vmatprep.subr.mxu0 0.0
    %1393 = vmatpush1.msra.mxu0 0.0
    %1394 = vmatprep.subr.mxu0 0.0
    %1395 = vmatpush1.msra.mxu0 0.0
    %1396 = vmatprep.subr.mxu0 0.0
    %1397 = vmatpush1.msra.mxu0 0.0
    %1398 = vmatprep.subr.mxu0 0.0
    %1399 = vmatpush1.msra.mxu0 0.0
    %1400 = vmatprep.subr.mxu0 0.0
    %1401 = vmatpush1.msra.mxu0 0.0
    %1402 = vmatprep.mubr.f32.mxu0 0.0
    %1403 = vmatmul.mubr.f32.gmra.mrb[0].mxu0 %v1336
    %v1404 = vpop.f32.mrb[0].mxu0
    %v1405 = vadd.f32 0.0, %v1404
    %v1406 = vpop.f32.mrb[0].mxu0
    %1407 = vdwg.mxu0
    %1408 = vrot.lane.b32.xlu0 %v379, 112
    %v1409 = vpop.permute.xlu0 %1408
    %1410 = vrot.lane.b32.xlu0 %v379, 80
    %v1411 = vpop.permute.xlu0 %1410
    %v1412 = vsel %vm385, %v1409, 0
    %v1414 = vsel %vm385, %v1411, 0
    %1416 = vmatprep.subr.mxu0 0.0
    %1417 = vmatpush1.xpose.msra.mxu0 %v1414
    %1418 = vmatprep.subr.mxu0 0.0
    %1419 = vmatpush1.xpose.msra.mxu0 0.0
    %1420 = vmatprep.subr.mxu0 0.0
    %1421 = vmatpush1.xpose.msra.mxu0 0.0
    %1422 = vmatprep.subr.mxu0 0.0
    %1423 = vmatpush1.xpose.msra.mxu0 0.0
    %1424 = vmatprep.subr.mxu0 0.0
    %1425 = vmatpush1.xpose.msra.mxu0 0.0
    %1426 = vmatprep.subr.mxu0 0.0
    %1427 = vmatpush1.xpose.msra.mxu0 0.0
    %1428 = vmatprep.subr.mxu0 0.0
    %1429 = vmatpush1.xpose.msra.mxu0 0.0
    %1430 = vmatprep.subr.mxu0 0.0
    %1431 = vmatpush1.xpose.msra.mxu0 0.0
    %1432 = vmatprep.subr.mxu0 0.0
    %1433 = vmatpush1.xpose.msra.mxu0 0.0
    %1434 = vmatprep.subr.mxu0 0.0
    %1435 = vmatpush1.xpose.msra.mxu0 0.0
    %1436 = vmatprep.subr.mxu0 0.0
    %1437 = vmatpush1.xpose.msra.mxu0 0.0
    %1438 = vmatprep.subr.mxu0 0.0
    %1439 = vmatpush1.xpose.msra.mxu0 0.0
    %1440 = vmatprep.subr.mxu0 0.0
    %1441 = vmatpush1.xpose.msra.mxu0 0.0
    %1442 = vmatprep.subr.mxu0 0.0
    %1443 = vmatpush1.xpose.msra.mxu0 0.0
    %1444 = vmatprep.subr.mxu0 0.0
    %1445 = vmatpush1.xpose.msra.mxu0 0.0
    %1446 = vmatprep.subr.mxu0 0.0
    %1447 = vmatpush1.xpose.msra.mxu0 0.0
    %1448 = vmatprep.subr.mxu0 0.0
    %1449 = vmatpush1.xpose.msra.mxu0 0.0
    %1450 = vmatprep.subr.mxu0 0.0
    %1451 = vmatpush1.xpose.msra.mxu0 0.0
    %1452 = vmatprep.subr.mxu0 0.0
    %1453 = vmatpush1.xpose.msra.mxu0 0.0
    %1454 = vmatprep.subr.mxu0 0.0
    %1455 = vmatpush1.xpose.msra.mxu0 0.0
    %1456 = vmatprep.subr.mxu0 0.0
    %1457 = vmatpush1.xpose.msra.mxu0 0.0
    %1458 = vmatprep.subr.mxu0 0.0
    %1459 = vmatpush1.xpose.msra.mxu0 0.0
    %1460 = vmatprep.subr.mxu0 0.0
    %1461 = vmatpush1.xpose.msra.mxu0 0.0
    %1462 = vmatprep.subr.mxu0 0.0
    %1463 = vmatpush1.xpose.msra.mxu0 0.0
    %1464 = vmatprep.subr.mxu0 0.0
    %1465 = vmatpush1.xpose.msra.mxu0 0.0
    %1466 = vmatprep.subr.mxu0 0.0
    %1467 = vmatpush1.xpose.msra.mxu0 0.0
    %1468 = vmatprep.subr.mxu0 0.0
    %1469 = vmatpush1.xpose.msra.mxu0 0.0
    %1470 = vmatprep.subr.mxu0 0.0
    %1471 = vmatpush1.xpose.msra.mxu0 0.0
    %1472 = vmatprep.subr.mxu0 0.0
    %1473 = vmatpush1.xpose.msra.mxu0 0.0
    %1474 = vmatprep.subr.mxu0 0.0
    %1475 = vmatpush1.xpose.msra.mxu0 0.0
    %1476 = vmatprep.subr.mxu0 0.0
    %1477 = vmatpush1.xpose.msra.mxu0 0.0
    %1478 = vmatprep.subr.mxu0 0.0
    %1479 = vmatpush1.xpose.msra.mxu0 0.0
    %1480 = vmatprep.mubr.f32.mxu0 0.0
    %1481 = vmatmul.mubr.f32.gmra.mrb[0].mxu0 %v1412
    %v1482 = vpop.f32.mrb[0].mxu0
    %v1483 = vadd.f32 0.0, %v1482
    %v1484 = vpop.f32.mrb[0].mxu0
    %1485 = vdwg.mxu0
    %v1486 = vmul.f32 %v1483, 0.35355338
    %v1487 = vadd.f32 %v1486, %v1152
    %v1488 = vsel %vm385, %v1487, -inf
    %1489 = vmax.xlane.f32.xlu0 %v1488
    %v1490 = vpop.xlane.xlu0 %1489
    %v1491 = vsub.f32 %v1487, %v1490
    %v1492 = vmul.f32 %v1491, 1.442695
    %v1493 = vpow.pop %v1492
    %v1494 = vsel %vm385, %v1493, 0.0
    %1495 = vadd.xlane.f32.xlu0 %v1494
    %v1496 = vpop.xlane.xlu0 %1495
    %v1497 = vrcp.pop %v1496
    %v1498 = vmul.f32 %v1493, %v1497
    %1499 = vrot.lane.b32.xlu0 %v379, 48
    %v1500 = vpop.permute.xlu0 %1499
    %v1503 = vsel %vm385, %v1498, 0
    %1505 = vmatprep.subr.mxu0 0.0
    %1506 = vmatpush1.msra.mxu0 %v1500
    %1507 = vmatprep.subr.mxu0 0.0
    %1508 = vmatpush1.msra.mxu0 0.0
    %1509 = vmatprep.subr.mxu0 0.0
    %1510 = vmatpush1.msra.mxu0 0.0
    %1511 = vmatprep.subr.mxu0 0.0
    %1512 = vmatpush1.msra.mxu0 0.0
    %1513 = vmatprep.subr.mxu0 0.0
    %1514 = vmatpush1.msra.mxu0 0.0
    %1515 = vmatprep.subr.mxu0 0.0
    %1516 = vmatpush1.msra.mxu0 0.0
    %1517 = vmatprep.subr.mxu0 0.0
    %1518 = vmatpush1.msra.mxu0 0.0
    %1519 = vmatprep.subr.mxu0 0.0
    %1520 = vmatpush1.msra.mxu0 0.0
    %1521 = vmatprep.subr.mxu0 0.0
    %1522 = vmatpush1.msra.mxu0 0.0
    %1523 = vmatprep.subr.mxu0 0.0
    %1524 = vmatpush1.msra.mxu0 0.0
    %1525 = vmatprep.subr.mxu0 0.0
    %1526 = vmatpush1.msra.mxu0 0.0
    %1527 = vmatprep.subr.mxu0 0.0
    %1528 = vmatpush1.msra.mxu0 0.0
    %1529 = vmatprep.subr.mxu0 0.0
    %1530 = vmatpush1.msra.mxu0 0.0
    %1531 = vmatprep.subr.mxu0 0.0
    %1532 = vmatpush1.msra.mxu0 0.0
    %1533 = vmatprep.subr.mxu0 0.0
    %1534 = vmatpush1.msra.mxu0 0.0
    %1535 = vmatprep.subr.mxu0 0.0
    %1536 = vmatpush1.msra.mxu0 0.0
    %1537 = vmatprep.subr.mxu0 0.0
    %1538 = vmatpush1.msra.mxu0 0.0
    %1539 = vmatprep.subr.mxu0 0.0
    %1540 = vmatpush1.msra.mxu0 0.0
    %1541 = vmatprep.subr.mxu0 0.0
    %1542 = vmatpush1.msra.mxu0 0.0
    %1543 = vmatprep.subr.mxu0 0.0
    %1544 = vmatpush1.msra.mxu0 0.0
    %1545 = vmatprep.subr.mxu0 0.0
    %1546 = vmatpush1.msra.mxu0 0.0
    %1547 = vmatprep.subr.mxu0 0.0
    %1548 = vmatpush1.msra.mxu0 0.0
    %1549 = vmatprep.subr.mxu0 0.0
    %1550 = vmatpush1.msra.mxu0 0.0
    %1551 = vmatprep.subr.mxu0 0.0
    %1552 = vmatpush1.msra.mxu0 0.0
    %1553 = vmatprep.subr.mxu0 0.0
    %1554 = vmatpush1.msra.mxu0 0.0
    %1555 = vmatprep.subr.mxu0 0.0
    %1556 = vmatpush1.msra.mxu0 0.0
    %1557 = vmatprep.subr.mxu0 0.0
    %1558 = vmatpush1.msra.mxu0 0.0
    %1559 = vmatprep.subr.mxu0 0.0
    %1560 = vmatpush1.msra.mxu0 0.0
    %1561 = vmatprep.subr.mxu0 0.0
    %1562 = vmatpush1.msra.mxu0 0.0
    %1563 = vmatprep.subr.mxu0 0.0
    %1564 = vmatpush1.msra.mxu0 0.0
    %1565 = vmatprep.subr.mxu0 0.0
    %1566 = vmatpush1.msra.mxu0 0.0
    %1567 = vmatprep.subr.mxu0 0.0
    %1568 = vmatpush1.msra.mxu0 0.0
    %1569 = vmatprep.mubr.f32.mxu0 0.0
    %1570 = vmatmul.mubr.f32.gmra.mrb[0].mxu0 %v1503
    %v1571 = vpop.f32.mrb[0].mxu0
    %v1572 = vadd.f32 0.0, %v1571
    %v1573 = vpop.f32.mrb[0].mxu0
    %1574 = vdwg.mxu0
    %1575 = vrot.lane.b32.xlu0 %v379, 104
    %v1576 = vpop.permute.xlu0 %1575
    %1577 = vrot.lane.b32.xlu0 %v379, 72
    %v1578 = vpop.permute.xlu0 %1577
    %v1579 = vsel %vm385, %v1576, 0
    %v1581 = vsel %vm385, %v1578, 0
    %1583 = vmatprep.subr.mxu0 0.0
    %1584 = vmatpush1.xpose.msra.mxu0 %v1581
    %1585 = vmatprep.subr.mxu0 0.0
    %1586 = vmatpush1.xpose.msra.mxu0 0.0
    %1587 = vmatprep.subr.mxu0 0.0
    %1588 = vmatpush1.xpose.msra.mxu0 0.0
    %1589 = vmatprep.subr.mxu0 0.0
    %1590 = vmatpush1.xpose.msra.mxu0 0.0
    %1591 = vmatprep.subr.mxu0 0.0
    %1592 = vmatpush1.xpose.msra.mxu0 0.0
    %1593 = vmatprep.subr.mxu0 0.0
    %1594 = vmatpush1.xpose.msra.mxu0 0.0
    %1595 = vmatprep.subr.mxu0 0.0
    %1596 = vmatpush1.xpose.msra.mxu0 0.0
    %1597 = vmatprep.subr.mxu0 0.0
    %1598 = vmatpush1.xpose.msra.mxu0 0.0
    %1599 = vmatprep.subr.mxu0 0.0
    %1600 = vmatpush1.xpose.msra.mxu0 0.0
    %1601 = vmatprep.subr.mxu0 0.0
    %1602 = vmatpush1.xpose.msra.mxu0 0.0
    %1603 = vmatprep.subr.mxu0 0.0
    %1604 = vmatpush1.xpose.msra.mxu0 0.0
    %1605 = vmatprep.subr.mxu0 0.0
    %1606 = vmatpush1.xpose.msra.mxu0 0.0
    %1607 = vmatprep.subr.mxu0 0.0
    %1608 = vmatpush1.xpose.msra.mxu0 0.0
    %1609 = vmatprep.subr.mxu0 0.0
    %1610 = vmatpush1.xpose.msra.mxu0 0.0
    %1611 = vmatprep.subr.mxu0 0.0
    %1612 = vmatpush1.xpose.msra.mxu0 0.0
    %1613 = vmatprep.subr.mxu0 0.0
    %1614 = vmatpush1.xpose.msra.mxu0 0.0
    %1615 = vmatprep.subr.mxu0 0.0
    %1616 = vmatpush1.xpose.msra.mxu0 0.0
    %1617 = vmatprep.subr.mxu0 0.0
    %1618 = vmatpush1.xpose.msra.mxu0 0.0
    %1619 = vmatprep.subr.mxu0 0.0
    %1620 = vmatpush1.xpose.msra.mxu0 0.0
    %1621 = vmatprep.subr.mxu0 0.0
    %1622 = vmatpush1.xpose.msra.mxu0 0.0
    %1623 = vmatprep.subr.mxu0 0.0
    %1624 = vmatpush1.xpose.msra.mxu0 0.0
    %1625 = vmatprep.subr.mxu0 0.0
    %1626 = vmatpush1.xpose.msra.mxu0 0.0
    %1627 = vmatprep.subr.mxu0 0.0
    %1628 = vmatpush1.xpose.msra.mxu0 0.0
    %1629 = vmatprep.subr.mxu0 0.0
    %1630 = vmatpush1.xpose.msra.mxu0 0.0
    %1631 = vmatprep.subr.mxu0 0.0
    %1632 = vmatpush1.xpose.msra.mxu0 0.0
    %1633 = vmatprep.subr.mxu0 0.0
    %1634 = vmatpush1.xpose.msra.mxu0 0.0
    %1635 = vmatprep.subr.mxu0 0.0
    %1636 = vmatpush1.xpose.msra.mxu0 0.0
    %1637 = vmatprep.subr.mxu0 0.0
    %1638 = vmatpush1.xpose.msra.mxu0 0.0
    %1639 = vmatprep.subr.mxu0 0.0
    %1640 = vmatpush1.xpose.msra.mxu0 0.0
    %1641 = vmatprep.subr.mxu0 0.0
    %1642 = vmatpush1.xpose.msra.mxu0 0.0
    %1643 = vmatprep.subr.mxu0 0.0
    %1644 = vmatpush1.xpose.msra.mxu0 0.0
    %1645 = vmatprep.subr.mxu0 0.0
    %1646 = vmatpush1.xpose.msra.mxu0 0.0
    %1647 = vmatprep.mubr.f32.mxu0 0.0
    %1648 = vmatmul.mubr.f32.gmra.mrb[0].mxu0 %v1579
    %v1649 = vpop.f32.mrb[0].mxu0
    %v1650 = vadd.f32 0.0, %v1649
    %v1651 = vpop.f32.mrb[0].mxu0
    %1652 = vdwg.mxu0
    %v1653 = vmul.f32 %v1650, 0.35355338
    %v1654 = vadd.f32 %v1653, %v1152
    %v1655 = vsel %vm385, %v1654, -inf
    %1656 = vmax.xlane.f32.xlu0 %v1655
    %v1657 = vpop.xlane.xlu0 %1656
    %v1658 = vsub.f32 %v1654, %v1657
    %v1659 = vmul.f32 %v1658, 1.442695
    %v1660 = vpow.pop %v1659
    %v1661 = vsel %vm385, %v1660, 0.0
    %1662 = vadd.xlane.f32.xlu0 %v1661
    %v1663 = vpop.xlane.xlu0 %1662
    %v1664 = vrcp.pop %v1663
    %v1665 = vmul.f32 %v1660, %v1664
    %1666 = vrot.lane.b32.xlu0 %v379, 40
    %v1667 = vpop.permute.xlu0 %1666
    %v1670 = vsel %vm385, %v1665, 0
    %1672 = vmatprep.subr.mxu0 0.0
    %1673 = vmatpush1.msra.mxu0 %v1667
    %1674 = vmatprep.subr.mxu0 0.0
    %1675 = vmatpush1.msra.mxu0 0.0
    %1676 = vmatprep.subr.mxu0 0.0
    %1677 = vmatpush1.msra.mxu0 0.0
    %1678 = vmatprep.subr.mxu0 0.0
    %1679 = vmatpush1.msra.mxu0 0.0
    %1680 = vmatprep.subr.mxu0 0.0
    %1681 = vmatpush1.msra.mxu0 0.0
    %1682 = vmatprep.subr.mxu0 0.0
    %1683 = vmatpush1.msra.mxu0 0.0
    %1684 = vmatprep.subr.mxu0 0.0
    %1685 = vmatpush1.msra.mxu0 0.0
    %1686 = vmatprep.subr.mxu0 0.0
    %1687 = vmatpush1.msra.mxu0 0.0
    %1688 = vmatprep.subr.mxu0 0.0
    %1689 = vmatpush1.msra.mxu0 0.0
    %1690 = vmatprep.subr.mxu0 0.0
    %1691 = vmatpush1.msra.mxu0 0.0
    %1692 = vmatprep.subr.mxu0 0.0
    %1693 = vmatpush1.msra.mxu0 0.0
    %1694 = vmatprep.subr.mxu0 0.0
    %1695 = vmatpush1.msra.mxu0 0.0
    %1696 = vmatprep.subr.mxu0 0.0
    %1697 = vmatpush1.msra.mxu0 0.0
    %1698 = vmatprep.subr.mxu0 0.0
    %1699 = vmatpush1.msra.mxu0 0.0
    %1700 = vmatprep.subr.mxu0 0.0
    %1701 = vmatpush1.msra.mxu0 0.0
    %1702 = vmatprep.subr.mxu0 0.0
    %1703 = vmatpush1.msra.mxu0 0.0
    %1704 = vmatprep.subr.mxu0 0.0
    %1705 = vmatpush1.msra.mxu0 0.0
    %1706 = vmatprep.subr.mxu0 0.0
    %1707 = vmatpush1.msra.mxu0 0.0
    %1708 = vmatprep.subr.mxu0 0.0
    %1709 = vmatpush1.msra.mxu0 0.0
    %1710 = vmatprep.subr.mxu0 0.0
    %1711 = vmatpush1.msra.mxu0 0.0
    %1712 = vmatprep.subr.mxu0 0.0
    %1713 = vmatpush1.msra.mxu0 0.0
    %1714 = vmatprep.subr.mxu0 0.0
    %1715 = vmatpush1.msra.mxu0 0.0
    %1716 = vmatprep.subr.mxu0 0.0
    %1717 = vmatpush1.msra.mxu0 0.0
    %1718 = vmatprep.subr.mxu0 0.0
    %1719 = vmatpush1.msra.mxu0 0.0
    %1720 = vmatprep.subr.mxu0 0.0
    %1721 = vmatpush1.msra.mxu0 0.0
    %1722 = vmatprep.subr.mxu0 0.0
    %1723 = vmatpush1.msra.mxu0 0.0
    %1724 = vmatprep.subr.mxu0 0.0
    %1725 = vmatpush1.msra.mxu0 0.0
    %1726 = vmatprep.subr.mxu0 0.0
    %1727 = vmatpush1.msra.mxu0 0.0
    %1728 = vmatprep.subr.mxu0 0.0
    %1729 = vmatpush1.msra.mxu0 0.0
    %1730 = vmatprep.subr.mxu0 0.0
    %1731 = vmatpush1.msra.mxu0 0.0
    %1732 = vmatprep.subr.mxu0 0.0
    %1733 = vmatpush1.msra.mxu0 0.0
    %1734 = vmatprep.subr.mxu0 0.0
    %1735 = vmatpush1.msra.mxu0 0.0
    %1736 = vmatprep.mubr.f32.mxu0 0.0
    %1737 = vmatmul.mubr.f32.gmra.mrb[0].mxu0 %v1670
    %v1738 = vpop.f32.mrb[0].mxu0
    %v1739 = vadd.f32 0.0, %v1738
    %v1740 = vpop.f32.mrb[0].mxu0
    %1741 = vdwg.mxu0
    %1743 = vrot.lane.b32.xlu0 %v1405, 8
    %v1744 = vpop.permute.xlu0 %1743
    %1747 = vrot.lane.b32.xlu0 %v1572, 16
    %v1748 = vpop.permute.xlu0 %1747
    %1751 = vrot.lane.b32.xlu0 %v1739, 24
    %v1752 = vpop.permute.xlu0 %1751
    %v1754 = vsel %vm385, %v1238, %v1744
    %v1755 = vsel %vm1067, %v1754, %v1748
    %v1756 = vsel %vm1069, %v1755, %v1752
    %v1757 = vld [vmem:[%s11] sm:$0xff]
    %v1758 = vld [vmem:[%s11 + $0x8] sm:$0xff]
    %v1759 = vld [vmem:[%s11 + $0x10] sm:$0xff]
    %v1760 = vld [vmem:[%s11 + $0x18] sm:$0xff]
    %v1761 = vld [vmem:[%s12] sm:$0x1]
    %v1763 = vlaneseq
    %v1764 = vshrl.u32 %v1763, 7
    %v1765 = vsub.s32 0, %v1764
    %v1766 = vrot.slane %v1761, %v1765
    %v1769 = vsel %vm244, %v1070, 0
    %v1772 = vsel %vm244, %v1756, 0
    %1774 = vmatprep.subr.mxu0 0.0
    %1775 = vmatpush1.msra.mxu0 %v1757
    %1776 = vmatprep.subr.mxu0 0.0
    %1777 = vmatpush1.msra.mxu0 %v1758
    %1778 = vmatprep.subr.mxu0 0.0
    %1779 = vmatpush1.msra.mxu0 %v1759
    %1780 = vmatprep.subr.mxu0 0.0
    %1781 = vmatpush1.msra.mxu0 %v1760
    %1782 = vmatprep.subr.mxu0 0.0
    %1783 = vmatpush1.msra.mxu0 0.0
    %1784 = vmatprep.subr.mxu0 0.0
    %1785 = vmatpush1.msra.mxu0 0.0
    %1786 = vmatprep.subr.mxu0 0.0
    %1787 = vmatpush1.msra.mxu0 0.0
    %1788 = vmatprep.subr.mxu0 0.0
    %1789 = vmatpush1.msra.mxu0 0.0
    %1790 = vmatprep.subr.mxu0 0.0
    %1791 = vmatpush1.msra.mxu0 0.0
    %1792 = vmatprep.subr.mxu0 0.0
    %1793 = vmatpush1.msra.mxu0 0.0
    %1794 = vmatprep.subr.mxu0 0.0
    %1795 = vmatpush1.msra.mxu0 0.0
    %1796 = vmatprep.subr.mxu0 0.0
    %1797 = vmatpush1.msra.mxu0 0.0
    %1798 = vmatprep.subr.mxu0 0.0
    %1799 = vmatpush1.msra.mxu0 0.0
    %1800 = vmatprep.subr.mxu0 0.0
    %1801 = vmatpush1.msra.mxu0 0.0
    %1802 = vmatprep.subr.mxu0 0.0
    %1803 = vmatpush1.msra.mxu0 0.0
    %1804 = vmatprep.subr.mxu0 0.0
    %1805 = vmatpush1.msra.mxu0 0.0
    %1806 = vmatprep.subr.mxu0 0.0
    %1807 = vmatpush1.msra.mxu0 0.0
    %1808 = vmatprep.subr.mxu0 0.0
    %1809 = vmatpush1.msra.mxu0 0.0
    %1810 = vmatprep.subr.mxu0 0.0
    %1811 = vmatpush1.msra.mxu0 0.0
    %1812 = vmatprep.subr.mxu0 0.0
    %1813 = vmatpush1.msra.mxu0 0.0
    %1814 = vmatprep.subr.mxu0 0.0
    %1815 = vmatpush1.msra.mxu0 0.0
    %1816 = vmatprep.subr.mxu0 0.0
    %1817 = vmatpush1.msra.mxu0 0.0
    %1818 = vmatprep.subr.mxu0 0.0
    %1819 = vmatpush1.msra.mxu0 0.0
    %1820 = vmatprep.subr.mxu0 0.0
    %1821 = vmatpush1.msra.mxu0 0.0
    %1822 = vmatprep.subr.mxu0 0.0
    %1823 = vmatpush1.msra.mxu0 0.0
    %1824 = vmatprep.subr.mxu0 0.0
    %1825 = vmatpush1.msra.mxu0 0.0
    %1826 = vmatprep.subr.mxu0 0.0
    %1827 = vmatpush1.msra.mxu0 0.0
    %1828 = vmatprep.subr.mxu0 0.0
    %1829 = vmatpush1.msra.mxu0 0.0
    %1830 = vmatprep.subr.mxu0 0.0
    %1831 = vmatpush1.msra.mxu0 0.0
    %1832 = vmatprep.subr.mxu0 0.0
    %1833 = vmatpush1.msra.mxu0 0.0
    %1834 = vmatprep.subr.mxu0 0.0
    %1835 = vmatpush1.msra.mxu0 0.0
    %1836 = vmatprep.subr.mxu0 0.0
    %1837 = vmatpush1.msra.mxu0 0.0
    %1838 = vmatprep.mubr.f32.mxu0 0.0
    %1839 = vmatmul.mubr.f32.gmra.mrb[0].mxu0 %v1769
    %v1840 = vpop.f32.mrb[0].mxu0
    %v1841 = vadd.f32 %v1766, %v1840
    %v1842 = vpop.f32.mrb[0].mxu0
    %1843 = vmatprep.mubr.f32.mxu0 0.0
    %1844 = vmatmul.mubr.f32.gmra.mrb[0].mxu0 %v1772
    %v1845 = vpop.f32.mrb[0].mxu0
    %v1846 = vadd.f32 %v1766, %v1845
    %v1847 = vpop.f32.mrb[0].mxu0
    %1848 = vdwg.mxu0
    %v1849 = vadd.f32 %v286, %v1841
    %v1850 = vadd.f32 %v287, %v1846
    %v1851 = vld [vmem:[%s13] sm:$0x1]
    %v1852 = vld [vmem:[%s14] sm:$0x1]
    %v1853 = vsel %vm244, %v1849, 0.0
    %1854 = vadd.xlane.f32.xlu0 %v1853
    %v1855 = vpop.xlane.xlu0 %1854
    %v1856 = vsel %vm244, %v1850, 0.0
    %1857 = vadd.xlane.f32.xlu0 %v1856
    %v1858 = vpop.xlane.xlu0 %1857
    %v1859 = vmul.f32 %v1855, %v251
    %v1860 = vmul.f32 %v1858, %v251
    %v1861 = vsub.f32 %v1849, %v1859
    %v1862 = vsub.f32 %v1850, %v1860
    %v1863 = vmul.f32 %v1861, %v1861
    %v1864 = vmul.f32 %v1862, %v1862
    %v1865 = vsel %vm244, %v1863, 0.0
    %1866 = vadd.xlane.f32.xlu0 %v1865
    %v1867 = vpop.xlane.xlu0 %1866
    %v1868 = vsel %vm244, %v1864, 0.0
    %1869 = vadd.xlane.f32.xlu0 %v1868
    %v1870 = vpop.xlane.xlu0 %1869
    %v1871 = vmul.f32 %v1867, %v251
    %v1872 = vmul.f32 %v1870, %v251
    %v1873 = vadd.f32 %v1871, 1e-12
    %v1874 = vadd.f32 %v1872, 1e-12
    %v1875 = vrsqrt.pop %v1873
    %v1876 = vrsqrt.pop %v1874
    %v1877 = vmul.f32 %v1861, %v1875
    %v1878 = vmul.f32 %v1862, %v1876
    %v1880 = vlaneseq
    %v1881 = vshrl.u32 %v1880, 7
    %v1882 = vsub.s32 0, %v1881
    %v1883 = vrot.slane %v1851, %v1882
    %v1885 = vmul.f32 %v1877, %v1883
    %v1886 = vmul.f32 %v1878, %v1883
    %v1888 = vlaneseq
    %v1889 = vshrl.u32 %v1888, 7
    %v1890 = vsub.s32 0, %v1889
    %v1891 = vrot.slane %v1852, %v1890
    %v1893 = vadd.f32 %v1885, %v1891
    %v1894 = vadd.f32 %v1886, %v1891
    %v1895 = vld [vmem:[%s15] sm:$0xff]
    %v1896 = vld [vmem:[%s15 + $0x8] sm:$0xff]
    %v1897 = vld [vmem:[%s15 + $0x10] sm:$0xff]
    %v1898 = vld [vmem:[%s15 + $0x18] sm:$0xff]
    %v1899 = vld [vmem:[%s16] sm:$0x1]
    %v1901 = vlaneseq
    %v1902 = vshrl.u32 %v1901, 7
    %v1903 = vsub.s32 0, %v1902
    %v1904 = vrot.slane %v1899, %v1903
    %v1907 = vsel %vm244, %v1893, 0
    %v1910 = vsel %vm244, %v1894, 0
    %1912 = vmatprep.subr.mxu0 0.0
    %1913 = vmatpush1.msra.mxu0 %v1895
    %1914 = vmatprep.subr.mxu0 0.0
    %1915 = vmatpush1.msra.mxu0 %v1896
    %1916 = vmatprep.subr.mxu0 0.0
    %1917 = vmatpush1.msra.mxu0 %v1897
    %1918 = vmatprep.subr.mxu0 0.0
    %1919 = vmatpush1.msra.mxu0 %v1898
    %1920 = vmatprep.subr.mxu0 0.0
    %1921 = vmatpush1.msra.mxu0 0.0
    %1922 = vmatprep.subr.mxu0 0.0
    %1923 = vmatpush1.msra.mxu0 0.0
    %1924 = vmatprep.subr.mxu0 0.0
    %1925 = vmatpush1.msra.mxu0 0.0
    %1926 = vmatprep.subr.mxu0 0.0
    %1927 = vmatpush1.msra.mxu0 0.0
    %1928 = vmatprep.subr.mxu0 0.0
    %1929 = vmatpush1.msra.mxu0 0.0
    %1930 = vmatprep.subr.mxu0 0.0
    %1931 = vmatpush1.msra.mxu0 0.0
    %1932 = vmatprep.subr.mxu0 0.0
    %1933 = vmatpush1.msra.mxu0 0.0
    %1934 = vmatprep.subr.mxu0 0.0
    %1935 = vmatpush1.msra.mxu0 0.0
    %1936 = vmatprep.subr.mxu0 0.0
    %1937 = vmatpush1.msra.mxu0 0.0
    %1938 = vmatprep.subr.mxu0 0.0
    %1939 = vmatpush1.msra.mxu0 0.0
    %1940 = vmatprep.subr.mxu0 0.0
    %1941 = vmatpush1.msra.mxu0 0.0
    %1942 = vmatprep.subr.mxu0 0.0
    %1943 = vmatpush1.msra.mxu0 0.0
    %1944 = vmatprep.subr.mxu0 0.0
    %1945 = vmatpush1.msra.mxu0 0.0
    %1946 = vmatprep.subr.mxu0 0.0
    %1947 = vmatpush1.msra.mxu0 0.0
    %1948 = vmatprep.subr.mxu0 0.0
    %1949 = vmatpush1.msra.mxu0 0.0
    %1950 = vmatprep.subr.mxu0 0.0
    %1951 = vmatpush1.msra.mxu0 0.0
    %1952 = vmatprep.subr.mxu0 0.0
    %1953 = vmatpush1.msra.mxu0 0.0
    %1954 = vmatprep.subr.mxu0 0.0
    %1955 = vmatpush1.msra.mxu0 0.0
    %1956 = vmatprep.subr.mxu0 0.0
    %1957 = vmatpush1.msra.mxu0 0.0
    %1958 = vmatprep.subr.mxu0 0.0
    %1959 = vmatpush1.msra.mxu0 0.0
    %1960 = vmatprep.subr.mxu0 0.0
    %1961 = vmatpush1.msra.mxu0 0.0
    %1962 = vmatprep.subr.mxu0 0.0
    %1963 = vmatpush1.msra.mxu0 0.0
    %1964 = vmatprep.subr.mxu0 0.0
    %1965 = vmatpush1.msra.mxu0 0.0
    %1966 = vmatprep.subr.mxu0 0.0
    %1967 = vmatpush1.msra.mxu0 0.0
    %1968 = vmatprep.subr.mxu0 0.0
    %1969 = vmatpush1.msra.mxu0 0.0
    %1970 = vmatprep.subr.mxu0 0.0
    %1971 = vmatpush1.msra.mxu0 0.0
    %1972 = vmatprep.subr.mxu0 0.0
    %1973 = vmatpush1.msra.mxu0 0.0
    %1974 = vmatprep.subr.mxu0 0.0
    %1975 = vmatpush1.msra.mxu0 0.0
    %1976 = vmatprep.mubr.f32.mxu0 0.0
    %1977 = vmatmul.mubr.f32.gmra.mrb[0].mxu0 %v1907
    %v1978 = vpop.f32.mrb[0].mxu0
    %v1979 = vadd.f32 %v1904, %v1978
    %v1980 = vpop.f32.mrb[0].mxu0
    %1981 = vmatprep.mubr.f32.mxu0 0.0
    %1982 = vmatmul.mubr.f32.gmra.mrb[0].mxu0 %v1910
    %v1983 = vpop.f32.mrb[0].mxu0
    %v1984 = vadd.f32 %v1904, %v1983
    %v1985 = vpop.f32.mrb[0].mxu0
    %1986 = vdwg.mxu0
    %v1987 = vmul.f32 %v1979, 0.5
    %v1988 = vmul.f32 %v1984, 0.5
    %v1989 = vmul.f32 %v1979, 0.70710677
    %v1990 = vmul.f32 %v1984, 0.70710677
    %v1991 = vand.u32 2147483647, %v1989
    %v1992 = vand.u32 2147483647, %v1990
    %v1993 = vmul.f32 %v1991, 0.3275911
    %v1994 = vmul.f32 %v1992, 0.3275911
    %v1995 = vadd.f32 %v1993, 1.0
    %v1996 = vadd.f32 %v1994, 1.0
    %v1997 = vrcp.pop %v1995
    %v1998 = vmul.f32 1.0, %v1997
    %v1999 = vrcp.pop %v1996
    %v2000 = vmul.f32 1.0, %v1999
    %v2001 = vmul.f32 %v1998, 1.0614054
    %v2002 = vmul.f32 %v2000, 1.0614054
    %v2003 = vadd.f32 %v2001, -1.4531521
    %v2004 = vadd.f32 %v2002, -1.4531521
    %v2005 = vmul.f32 %v1998, %v2003
    %v2006 = vmul.f32 %v2000, %v2004
    %v2007 = vadd.f32 %v2005, 1.4214138
    %v2008 = vadd.f32 %v2006, 1.4214138
    %v2009 = vmul.f32 %v1998, %v2007
    %v2010 = vmul.f32 %v2000, %v2008
    %v2011 = vadd.f32 %v2009, -0.28449672
    %v2012 = vadd.f32 %v2010, -0.28449672
    %v2013 = vmul.f32 %v1998, %v2011
    %v2014 = vmul.f32 %v2000, %v2012
    %v2015 = vadd.f32 %v2013, 0.2548296
    %v2016 = vadd.f32 %v2014, 0.2548296
    %v2017 = vmul.f32 %v1998, %v2015
    %v2018 = vmul.f32 %v2000, %v2016
    %v2019 = vsub.f32 0.0, %v1991
    %v2020 = vsub.f32 0.0, %v1992
    %v2021 = vmul.f32 %v2019, %v1991
    %v2022 = vmul.f32 %v2020, %v1992
    %v2023 = vmul.f32 %v2021, 1.442695
    %v2024 = vpow.pop %v2023
    %v2025 = vmul.f32 %v2022, 1.442695
    %v2026 = vpow.pop %v2025
    %v2027 = vmul.f32 %v2017, %v2024
    %v2028 = vmul.f32 %v2018, %v2026
    %v2029 = vsub.f32 1.0, %v2027
    %v2030 = vsub.f32 1.0, %v2028
    %vm2031 = vcmp.ge.f32.partialorder %v1989, 0.0
    %vm2032 = vcmp.ge.f32.partialorder %v1990, 0.0
    %v2033 = vsub.f32 0.0, %v2029
    %v2034 = vsub.f32 0.0, %v2030
    %v2035 = vsel %vm2031, %v2029, %v2033
    %v2036 = vsel %vm2032, %v2030, %v2034
    %v2037 = vadd.f32 %v2035, 1.0
    %v2038 = vadd.f32 %v2036, 1.0
    %v2039 = vmul.f32 %v1987, %v2037
    %v2040 = vmul.f32 %v1988, %v2038
    %v2041 = vld [vmem:[%s17] sm:$0xff]
    %v2042 = vld [vmem:[%s17 + $0x8] sm:$0xff]
    %v2043 = vld [vmem:[%s17 + $0x10] sm:$0xff]
    %v2044 = vld [vmem:[%s17 + $0x18] sm:$0xff]
    %v2045 = vld [vmem:[%s17 + $0x20] sm:$0xff]
    %v2046 = vld [vmem:[%s17 + $0x28] sm:$0xff]
    %v2047 = vld [vmem:[%s17 + $0x30] sm:$0xff]
    %v2048 = vld [vmem:[%s17 + $0x38] sm:$0xff]
    %v2049 = vld [vmem:[%s18] sm:$0x1]
    %v2051 = vlaneseq
    %v2052 = vshrl.u32 %v2051, 7
    %v2053 = vsub.s32 0, %v2052
    %v2054 = vrot.slane %v2049, %v2053
    %vm2056 = vcmask 523264
    %v2058 = vsel %vm2056, %v2039, 0
    %v2061 = vsel %vm2056, %v2040, 0
    %2063 = vmatprep.subr.mxu0 0.0
    %2064 = vmatpush1.msra.mxu0 %v2041
    %2065 = vmatprep.subr.mxu0 0.0
    %2066 = vmatpush1.msra.mxu0 %v2042
    %2067 = vmatprep.subr.mxu0 0.0
    %2068 = vmatpush1.msra.mxu0 %v2043
    %2069 = vmatprep.subr.mxu0 0.0
    %2070 = vmatpush1.msra.mxu0 %v2044
    %2071 = vmatprep.subr.mxu0 0.0
    %2072 = vmatpush1.msra.mxu0 %v2045
    %2073 = vmatprep.subr.mxu0 0.0
    %2074 = vmatpush1.msra.mxu0 %v2046
    %2075 = vmatprep.subr.mxu0 0.0
    %2076 = vmatpush1.msra.mxu0 %v2047
    %2077 = vmatprep.subr.mxu0 0.0
    %2078 = vmatpush1.msra.mxu0 %v2048
    %2079 = vmatprep.subr.mxu0 0.0
    %2080 = vmatpush1.msra.mxu0 0.0
    %2081 = vmatprep.subr.mxu0 0.0
    %2082 = vmatpush1.msra.mxu0 0.0
    %2083 = vmatprep.subr.mxu0 0.0
    %2084 = vmatpush1.msra.mxu0 0.0
    %2085 = vmatprep.subr.mxu0 0.0
    %2086 = vmatpush1.msra.mxu0 0.0
    %2087 = vmatprep.subr.mxu0 0.0
    %2088 = vmatpush1.msra.mxu0 0.0
    %2089 = vmatprep.subr.mxu0 0.0
    %2090 = vmatpush1.msra.mxu0 0.0
    %2091 = vmatprep.subr.mxu0 0.0
    %2092 = vmatpush1.msra.mxu0 0.0
    %2093 = vmatprep.subr.mxu0 0.0
    %2094 = vmatpush1.msra.mxu0 0.0
    %2095 = vmatprep.subr.mxu0 0.0
    %2096 = vmatpush1.msra.mxu0 0.0
    %2097 = vmatprep.subr.mxu0 0.0
    %2098 = vmatpush1.msra.mxu0 0.0
    %2099 = vmatprep.subr.mxu0 0.0
    %2100 = vmatpush1.msra.mxu0 0.0
    %2101 = vmatprep.subr.mxu0 0.0
    %2102 = vmatpush1.msra.mxu0 0.0
    %2103 = vmatprep.subr.mxu0 0.0
    %2104 = vmatpush1.msra.mxu0 0.0
    %2105 = vmatprep.subr.mxu0 0.0
    %2106 = vmatpush1.msra.mxu0 0.0
    %2107 = vmatprep.subr.mxu0 0.0
    %2108 = vmatpush1.msra.mxu0 0.0
    %2109 = vmatprep.subr.mxu0 0.0
    %2110 = vmatpush1.msra.mxu0 0.0
    %2111 = vmatprep.subr.mxu0 0.0
    %2112 = vmatpush1.msra.mxu0 0.0
    %2113 = vmatprep.subr.mxu0 0.0
    %2114 = vmatpush1.msra.mxu0 0.0
    %2115 = vmatprep.subr.mxu0 0.0
    %2116 = vmatpush1.msra.mxu0 0.0
    %2117 = vmatprep.subr.mxu0 0.0
    %2118 = vmatpush1.msra.mxu0 0.0
    %2119 = vmatprep.subr.mxu0 0.0
    %2120 = vmatpush1.msra.mxu0 0.0
    %2121 = vmatprep.subr.mxu0 0.0
    %2122 = vmatpush1.msra.mxu0 0.0
    %2123 = vmatprep.subr.mxu0 0.0
    %2124 = vmatpush1.msra.mxu0 0.0
    %2125 = vmatprep.subr.mxu0 0.0
    %2126 = vmatpush1.msra.mxu0 0.0
    %2127 = vmatprep.mubr.f32.mxu0 0.0
    %2128 = vmatmul.mubr.f32.gmra.mrb[0].mxu0 %v2058
    %v2129 = vpop.f32.mrb[0].mxu0
    %v2130 = vadd.f32 %v2054, %v2129
    %v2131 = vpop.f32.mrb[0].mxu0
    %2132 = vmatprep.mubr.f32.mxu0 0.0
    %2133 = vmatmul.mubr.f32.gmra.mrb[0].mxu0 %v2061
    %v2134 = vpop.f32.mrb[0].mxu0
    %v2135 = vadd.f32 %v2054, %v2134
    %v2136 = vpop.f32.mrb[0].mxu0
    %2137 = vdwg.mxu0
    %v2138 = vadd.f32 %v1893, %v2130
    %v2139 = vadd.f32 %v1894, %v2135
    %v2140 = vld [vmem:[%s19] sm:$0x1]
    %v2141 = vld [vmem:[%s20] sm:$0x1]
    %v2142 = vsel %vm244, %v2138, 0.0
    %2143 = vadd.xlane.f32.xlu0 %v2142
    %v2144 = vpop.xlane.xlu0 %2143
    %v2145 = vsel %vm244, %v2139, 0.0
    %2146 = vadd.xlane.f32.xlu0 %v2145
    %v2147 = vpop.xlane.xlu0 %2146
    %v2148 = vmul.f32 %v2144, %v251
    %v2149 = vmul.f32 %v2147, %v251
    %v2150 = vsub.f32 %v2138, %v2148
    %v2151 = vsub.f32 %v2139, %v2149
    %v2152 = vmul.f32 %v2150, %v2150
    %v2153 = vmul.f32 %v2151, %v2151
    %v2154 = vsel %vm244, %v2152, 0.0
    %2155 = vadd.xlane.f32.xlu0 %v2154
    %v2156 = vpop.xlane.xlu0 %2155
    %v2157 = vsel %vm244, %v2153, 0.0
    %2158 = vadd.xlane.f32.xlu0 %v2157
    %v2159 = vpop.xlane.xlu0 %2158
    %v2160 = vmul.f32 %v2156, %v251
    %v2161 = vmul.f32 %v2159, %v251
    %v2162 = vadd.f32 %v2160, 1e-12
    %v2163 = vadd.f32 %v2161, 1e-12
    %v2164 = vrsqrt.pop %v2162
    %v2165 = vrsqrt.pop %v2163
    %v2166 = vmul.f32 %v2150, %v2164
    %v2167 = vmul.f32 %v2151, %v2165
    %v2169 = vlaneseq
    %v2170 = vshrl.u32 %v2169, 7
    %v2171 = vsub.s32 0, %v2170
    %v2172 = vrot.slane %v2140, %v2171
    %v2174 = vmul.f32 %v2166, %v2172
    %v2175 = vmul.f32 %v2167, %v2172
    %v2177 = vlaneseq
    %v2178 = vshrl.u32 %v2177, 7
    %v2179 = vsub.s32 0, %v2178
    %v2180 = vrot.slane %v2141, %v2179
    %v2182 = vadd.f32 %v2174, %v2180
    %v2183 = vadd.f32 %v2175, %v2180
    %s2184 = scalar_lea.vmem %s9, 32
    %v2185 = vld [vmem:[%s2184] sm:$0xff]
    %v2186 = vld [vmem:[%s2184 + $0x8] sm:$0xff]
    %v2187 = vld [vmem:[%s2184 + $0x10] sm:$0xff]
    %v2188 = vld [vmem:[%s2184 + $0x18] sm:$0xff]
    %s2189 = scalar_lea.vmem %s10, 1
    %v2190 = vld [vmem:[%s2189] sm:$0x1]
    %v2192 = vlaneseq
    %v2193 = vshrl.u32 %v2192, 7
    %v2194 = vsub.s32 0, %v2193
    %v2195 = vrot.slane %v2190, %v2194
    %v2198 = vsel %vm244, %v2182, 0
    %v2201 = vsel %vm244, %v2183, 0
    %2203 = vmatprep.subr.mxu0 0.0
    %2204 = vmatpush1.msra.mxu0 %v2185
    %2205 = vmatprep.subr.mxu0 0.0
    %2206 = vmatpush1.msra.mxu0 %v2186
    %2207 = vmatprep.subr.mxu0 0.0
    %2208 = vmatpush1.msra.mxu0 %v2187
    %2209 = vmatprep.subr.mxu0 0.0
    %2210 = vmatpush1.msra.mxu0 %v2188
    %2211 = vmatprep.subr.mxu0 0.0
    %2212 = vmatpush1.msra.mxu0 0.0
    %2213 = vmatprep.subr.mxu0 0.0
    %2214 = vmatpush1.msra.mxu0 0.0
    %2215 = vmatprep.subr.mxu0 0.0
    %2216 = vmatpush1.msra.mxu0 0.0
    %2217 = vmatprep.subr.mxu0 0.0
    %2218 = vmatpush1.msra.mxu0 0.0
    %2219 = vmatprep.subr.mxu0 0.0
    %2220 = vmatpush1.msra.mxu0 0.0
    %2221 = vmatprep.subr.mxu0 0.0
    %2222 = vmatpush1.msra.mxu0 0.0
    %2223 = vmatprep.subr.mxu0 0.0
    %2224 = vmatpush1.msra.mxu0 0.0
    %2225 = vmatprep.subr.mxu0 0.0
    %2226 = vmatpush1.msra.mxu0 0.0
    %2227 = vmatprep.subr.mxu0 0.0
    %2228 = vmatpush1.msra.mxu0 0.0
    %2229 = vmatprep.subr.mxu0 0.0
    %2230 = vmatpush1.msra.mxu0 0.0
    %2231 = vmatprep.subr.mxu0 0.0
    %2232 = vmatpush1.msra.mxu0 0.0
    %2233 = vmatprep.subr.mxu0 0.0
    %2234 = vmatpush1.msra.mxu0 0.0
    %2235 = vmatprep.subr.mxu0 0.0
    %2236 = vmatpush1.msra.mxu0 0.0
    %2237 = vmatprep.subr.mxu0 0.0
    %2238 = vmatpush1.msra.mxu0 0.0
    %2239 = vmatprep.subr.mxu0 0.0
    %2240 = vmatpush1.msra.mxu0 0.0
    %2241 = vmatprep.subr.mxu0 0.0
    %2242 = vmatpush1.msra.mxu0 0.0
    %2243 = vmatprep.subr.mxu0 0.0
    %2244 = vmatpush1.msra.mxu0 0.0
    %2245 = vmatprep.subr.mxu0 0.0
    %2246 = vmatpush1.msra.mxu0 0.0
    %2247 = vmatprep.subr.mxu0 0.0
    %2248 = vmatpush1.msra.mxu0 0.0
    %2249 = vmatprep.subr.mxu0 0.0
    %2250 = vmatpush1.msra.mxu0 0.0
    %2251 = vmatprep.subr.mxu0 0.0
    %2252 = vmatpush1.msra.mxu0 0.0
    %2253 = vmatprep.subr.mxu0 0.0
    %2254 = vmatpush1.msra.mxu0 0.0
    %2255 = vmatprep.subr.mxu0 0.0
    %2256 = vmatpush1.msra.mxu0 0.0
    %2257 = vmatprep.subr.mxu0 0.0
    %2258 = vmatpush1.msra.mxu0 0.0
    %2259 = vmatprep.subr.mxu0 0.0
    %2260 = vmatpush1.msra.mxu0 0.0
    %2261 = vmatprep.subr.mxu0 0.0
    %2262 = vmatpush1.msra.mxu0 0.0
    %2263 = vmatprep.subr.mxu0 0.0
    %2264 = vmatpush1.msra.mxu0 0.0
    %2265 = vmatprep.subr.mxu0 0.0
    %2266 = vmatpush1.msra.mxu0 0.0
    %2267 = vmatprep.mubr.f32.mxu0 0.0
    %2268 = vmatmul.mubr.f32.gmra.mrb[0].mxu0 %v2198
    %v2269 = vpop.f32.mrb[0].mxu0
    %v2270 = vadd.f32 %v2195, %v2269
    %v2271 = vpop.f32.mrb[0].mxu0
    %2272 = vmatprep.mubr.f32.mxu0 0.0
    %2273 = vmatmul.mubr.f32.gmra.mrb[0].mxu0 %v2201
    %v2274 = vpop.f32.mrb[0].mxu0
    %v2275 = vadd.f32 %v2195, %v2274
    %v2276 = vpop.f32.mrb[0].mxu0
    %2277 = vdwg.mxu0
    %2279 = vrot.lane.b32.xlu0 %v2270, 96
    %v2280 = vpop.permute.xlu0 %2279
    %v2281 = vsel %vm385, %v2270, 0
    %v2283 = vsel %vm385, %v2280, 0
    %2285 = vmatprep.subr.mxu0 0.0
    %2286 = vmatpush1.xpose.msra.mxu0 %v2283
    %2287 = vmatprep.subr.mxu0 0.0
    %2288 = vmatpush1.xpose.msra.mxu0 0.0
    %2289 = vmatprep.subr.mxu0 0.0
    %2290 = vmatpush1.xpose.msra.mxu0 0.0
    %2291 = vmatprep.subr.mxu0 0.0
    %2292 = vmatpush1.xpose.msra.mxu0 0.0
    %2293 = vmatprep.subr.mxu0 0.0
    %2294 = vmatpush1.xpose.msra.mxu0 0.0
    %2295 = vmatprep.subr.mxu0 0.0
    %2296 = vmatpush1.xpose.msra.mxu0 0.0
    %2297 = vmatprep.subr.mxu0 0.0
    %2298 = vmatpush1.xpose.msra.mxu0 0.0
    %2299 = vmatprep.subr.mxu0 0.0
    %2300 = vmatpush1.xpose.msra.mxu0 0.0
    %2301 = vmatprep.subr.mxu0 0.0
    %2302 = vmatpush1.xpose.msra.mxu0 0.0
    %2303 = vmatprep.subr.mxu0 0.0
    %2304 = vmatpush1.xpose.msra.mxu0 0.0
    %2305 = vmatprep.subr.mxu0 0.0
    %2306 = vmatpush1.xpose.msra.mxu0 0.0
    %2307 = vmatprep.subr.mxu0 0.0
    %2308 = vmatpush1.xpose.msra.mxu0 0.0
    %2309 = vmatprep.subr.mxu0 0.0
    %2310 = vmatpush1.xpose.msra.mxu0 0.0
    %2311 = vmatprep.subr.mxu0 0.0
    %2312 = vmatpush1.xpose.msra.mxu0 0.0
    %2313 = vmatprep.subr.mxu0 0.0
    %2314 = vmatpush1.xpose.msra.mxu0 0.0
    %2315 = vmatprep.subr.mxu0 0.0
    %2316 = vmatpush1.xpose.msra.mxu0 0.0
    %2317 = vmatprep.subr.mxu0 0.0
    %2318 = vmatpush1.xpose.msra.mxu0 0.0
    %2319 = vmatprep.subr.mxu0 0.0
    %2320 = vmatpush1.xpose.msra.mxu0 0.0
    %2321 = vmatprep.subr.mxu0 0.0
    %2322 = vmatpush1.xpose.msra.mxu0 0.0
    %2323 = vmatprep.subr.mxu0 0.0
    %2324 = vmatpush1.xpose.msra.mxu0 0.0
    %2325 = vmatprep.subr.mxu0 0.0
    %2326 = vmatpush1.xpose.msra.mxu0 0.0
    %2327 = vmatprep.subr.mxu0 0.0
    %2328 = vmatpush1.xpose.msra.mxu0 0.0
    %2329 = vmatprep.subr.mxu0 0.0
    %2330 = vmatpush1.xpose.msra.mxu0 0.0
    %2331 = vmatprep.subr.mxu0 0.0
    %2332 = vmatpush1.xpose.msra.mxu0 0.0
    %2333 = vmatprep.subr.mxu0 0.0
    %2334 = vmatpush1.xpose.msra.mxu0 0.0
    %2335 = vmatprep.subr.mxu0 0.0
    %2336 = vmatpush1.xpose.msra.mxu0 0.0
    %2337 = vmatprep.subr.mxu0 0.0
    %2338 = vmatpush1.xpose.msra.mxu0 0.0
    %2339 = vmatprep.subr.mxu0 0.0
    %2340 = vmatpush1.xpose.msra.mxu0 0.0
    %2341 = vmatprep.subr.mxu0 0.0
    %2342 = vmatpush1.xpose.msra.mxu0 0.0
    %2343 = vmatprep.subr.mxu0 0.0
    %2344 = vmatpush1.xpose.msra.mxu0 0.0
    %2345 = vmatprep.subr.mxu0 0.0
    %2346 = vmatpush1.xpose.msra.mxu0 0.0
    %2347 = vmatprep.subr.mxu0 0.0
    %2348 = vmatpush1.xpose.msra.mxu0 0.0
    %2349 = vmatprep.mubr.f32.mxu0 0.0
    %2350 = vmatmul.mubr.f32.gmra.mrb[0].mxu0 %v2281
    %v2351 = vpop.f32.mrb[0].mxu0
    %v2352 = vadd.f32 0.0, %v2351
    %v2353 = vpop.f32.mrb[0].mxu0
    %2354 = vdwg.mxu0
    %v2355 = vmul.f32 %v2352, 0.35355338
    %v2356 = vadd.f32 %v2355, %v464
    %v2357 = vsel %vm385, %v2356, -inf
    %2358 = vmax.xlane.f32.xlu0 %v2357
    %v2359 = vpop.xlane.xlu0 %2358
    %v2360 = vsub.f32 %v2356, %v2359
    %v2361 = vmul.f32 %v2360, 1.442695
    %v2362 = vpow.pop %v2361
    %v2363 = vsel %vm385, %v2362, 0.0
    %2364 = vadd.xlane.f32.xlu0 %v2363
    %v2365 = vpop.xlane.xlu0 %2364
    %v2366 = vrcp.pop %v2365
    %v2367 = vmul.f32 %v2362, %v2366
    %2368 = vrot.lane.b32.xlu0 %v2270, 64
    %v2369 = vpop.permute.xlu0 %2368
    %v2372 = vsel %vm385, %v2367, 0
    %2374 = vmatprep.subr.mxu0 0.0
    %2375 = vmatpush1.msra.mxu0 %v2369
    %2376 = vmatprep.subr.mxu0 0.0
    %2377 = vmatpush1.msra.mxu0 0.0
    %2378 = vmatprep.subr.mxu0 0.0
    %2379 = vmatpush1.msra.mxu0 0.0
    %2380 = vmatprep.subr.mxu0 0.0
    %2381 = vmatpush1.msra.mxu0 0.0
    %2382 = vmatprep.subr.mxu0 0.0
    %2383 = vmatpush1.msra.mxu0 0.0
    %2384 = vmatprep.subr.mxu0 0.0
    %2385 = vmatpush1.msra.mxu0 0.0
    %2386 = vmatprep.subr.mxu0 0.0
    %2387 = vmatpush1.msra.mxu0 0.0
    %2388 = vmatprep.subr.mxu0 0.0
    %2389 = vmatpush1.msra.mxu0 0.0
    %2390 = vmatprep.subr.mxu0 0.0
    %2391 = vmatpush1.msra.mxu0 0.0
    %2392 = vmatprep.subr.mxu0 0.0
    %2393 = vmatpush1.msra.mxu0 0.0
    %2394 = vmatprep.subr.mxu0 0.0
    %2395 = vmatpush1.msra.mxu0 0.0
    %2396 = vmatprep.subr.mxu0 0.0
    %2397 = vmatpush1.msra.mxu0 0.0
    %2398 = vmatprep.subr.mxu0 0.0
    %2399 = vmatpush1.msra.mxu0 0.0
    %2400 = vmatprep.subr.mxu0 0.0
    %2401 = vmatpush1.msra.mxu0 0.0
    %2402 = vmatprep.subr.mxu0 0.0
    %2403 = vmatpush1.msra.mxu0 0.0
    %2404 = vmatprep.subr.mxu0 0.0
    %2405 = vmatpush1.msra.mxu0 0.0
    %2406 = vmatprep.subr.mxu0 0.0
    %2407 = vmatpush1.msra.mxu0 0.0
    %2408 = vmatprep.subr.mxu0 0.0
    %2409 = vmatpush1.msra.mxu0 0.0
    %2410 = vmatprep.subr.mxu0 0.0
    %2411 = vmatpush1.msra.mxu0 0.0
    %2412 = vmatprep.subr.mxu0 0.0
    %2413 = vmatpush1.msra.mxu0 0.0
    %2414 = vmatprep.subr.mxu0 0.0
    %2415 = vmatpush1.msra.mxu0 0.0
    %2416 = vmatprep.subr.mxu0 0.0
    %2417 = vmatpush1.msra.mxu0 0.0
    %2418 = vmatprep.subr.mxu0 0.0
    %2419 = vmatpush1.msra.mxu0 0.0
    %2420 = vmatprep.subr.mxu0 0.0
    %2421 = vmatpush1.msra.mxu0 0.0
    %2422 = vmatprep.subr.mxu0 0.0
    %2423 = vmatpush1.msra.mxu0 0.0
    %2424 = vmatprep.subr.mxu0 0.0
    %2425 = vmatpush1.msra.mxu0 0.0
    %2426 = vmatprep.subr.mxu0 0.0
    %2427 = vmatpush1.msra.mxu0 0.0
    %2428 = vmatprep.subr.mxu0 0.0
    %2429 = vmatpush1.msra.mxu0 0.0
    %2430 = vmatprep.subr.mxu0 0.0
    %2431 = vmatpush1.msra.mxu0 0.0
    %2432 = vmatprep.subr.mxu0 0.0
    %2433 = vmatpush1.msra.mxu0 0.0
    %2434 = vmatprep.subr.mxu0 0.0
    %2435 = vmatpush1.msra.mxu0 0.0
    %2436 = vmatprep.subr.mxu0 0.0
    %2437 = vmatpush1.msra.mxu0 0.0
    %2438 = vmatprep.mubr.f32.mxu0 0.0
    %2439 = vmatmul.mubr.f32.gmra.mrb[0].mxu0 %v2372
    %v2440 = vpop.f32.mrb[0].mxu0
    %v2441 = vadd.f32 0.0, %v2440
    %v2442 = vpop.f32.mrb[0].mxu0
    %2443 = vdwg.mxu0
    %2444 = vrot.lane.b32.xlu0 %v2270, 120
    %v2445 = vpop.permute.xlu0 %2444
    %2446 = vrot.lane.b32.xlu0 %v2270, 88
    %v2447 = vpop.permute.xlu0 %2446
    %v2448 = vsel %vm385, %v2445, 0
    %v2450 = vsel %vm385, %v2447, 0
    %2452 = vmatprep.subr.mxu0 0.0
    %2453 = vmatpush1.xpose.msra.mxu0 %v2450
    %2454 = vmatprep.subr.mxu0 0.0
    %2455 = vmatpush1.xpose.msra.mxu0 0.0
    %2456 = vmatprep.subr.mxu0 0.0
    %2457 = vmatpush1.xpose.msra.mxu0 0.0
    %2458 = vmatprep.subr.mxu0 0.0
    %2459 = vmatpush1.xpose.msra.mxu0 0.0
    %2460 = vmatprep.subr.mxu0 0.0
    %2461 = vmatpush1.xpose.msra.mxu0 0.0
    %2462 = vmatprep.subr.mxu0 0.0
    %2463 = vmatpush1.xpose.msra.mxu0 0.0
    %2464 = vmatprep.subr.mxu0 0.0
    %2465 = vmatpush1.xpose.msra.mxu0 0.0
    %2466 = vmatprep.subr.mxu0 0.0
    %2467 = vmatpush1.xpose.msra.mxu0 0.0
    %2468 = vmatprep.subr.mxu0 0.0
    %2469 = vmatpush1.xpose.msra.mxu0 0.0
    %2470 = vmatprep.subr.mxu0 0.0
    %2471 = vmatpush1.xpose.msra.mxu0 0.0
    %2472 = vmatprep.subr.mxu0 0.0
    %2473 = vmatpush1.xpose.msra.mxu0 0.0
    %2474 = vmatprep.subr.mxu0 0.0
    %2475 = vmatpush1.xpose.msra.mxu0 0.0
    %2476 = vmatprep.subr.mxu0 0.0
    %2477 = vmatpush1.xpose.msra.mxu0 0.0
    %2478 = vmatprep.subr.mxu0 0.0
    %2479 = vmatpush1.xpose.msra.mxu0 0.0
    %2480 = vmatprep.subr.mxu0 0.0
    %2481 = vmatpush1.xpose.msra.mxu0 0.0
    %2482 = vmatprep.subr.mxu0 0.0
    %2483 = vmatpush1.xpose.msra.mxu0 0.0
    %2484 = vmatprep.subr.mxu0 0.0
    %2485 = vmatpush1.xpose.msra.mxu0 0.0
    %2486 = vmatprep.subr.mxu0 0.0
    %2487 = vmatpush1.xpose.msra.mxu0 0.0
    %2488 = vmatprep.subr.mxu0 0.0
    %2489 = vmatpush1.xpose.msra.mxu0 0.0
    %2490 = vmatprep.subr.mxu0 0.0
    %2491 = vmatpush1.xpose.msra.mxu0 0.0
    %2492 = vmatprep.subr.mxu0 0.0
    %2493 = vmatpush1.xpose.msra.mxu0 0.0
    %2494 = vmatprep.subr.mxu0 0.0
    %2495 = vmatpush1.xpose.msra.mxu0 0.0
    %2496 = vmatprep.subr.mxu0 0.0
    %2497 = vmatpush1.xpose.msra.mxu0 0.0
    %2498 = vmatprep.subr.mxu0 0.0
    %2499 = vmatpush1.xpose.msra.mxu0 0.0
    %2500 = vmatprep.subr.mxu0 0.0
    %2501 = vmatpush1.xpose.msra.mxu0 0.0
    %2502 = vmatprep.subr.mxu0 0.0
    %2503 = vmatpush1.xpose.msra.mxu0 0.0
    %2504 = vmatprep.subr.mxu0 0.0
    %2505 = vmatpush1.xpose.msra.mxu0 0.0
    %2506 = vmatprep.subr.mxu0 0.0
    %2507 = vmatpush1.xpose.msra.mxu0 0.0
    %2508 = vmatprep.subr.mxu0 0.0
    %2509 = vmatpush1.xpose.msra.mxu0 0.0
    %2510 = vmatprep.subr.mxu0 0.0
    %2511 = vmatpush1.xpose.msra.mxu0 0.0
    %2512 = vmatprep.subr.mxu0 0.0
    %2513 = vmatpush1.xpose.msra.mxu0 0.0
    %2514 = vmatprep.subr.mxu0 0.0
    %2515 = vmatpush1.xpose.msra.mxu0 0.0
    %2516 = vmatprep.mubr.f32.mxu0 0.0
    %2517 = vmatmul.mubr.f32.gmra.mrb[0].mxu0 %v2448
    %v2518 = vpop.f32.mrb[0].mxu0
    %v2519 = vadd.f32 0.0, %v2518
    %v2520 = vpop.f32.mrb[0].mxu0
    %2521 = vdwg.mxu0
    %v2522 = vmul.f32 %v2519, 0.35355338
    %v2523 = vadd.f32 %v2522, %v464
    %v2524 = vsel %vm385, %v2523, -inf
    %2525 = vmax.xlane.f32.xlu0 %v2524
    %v2526 = vpop.xlane.xlu0 %2525
    %v2527 = vsub.f32 %v2523, %v2526
    %v2528 = vmul.f32 %v2527, 1.442695
    %v2529 = vpow.pop %v2528
    %v2530 = vsel %vm385, %v2529, 0.0
    %2531 = vadd.xlane.f32.xlu0 %v2530
    %v2532 = vpop.xlane.xlu0 %2531
    %v2533 = vrcp.pop %v2532
    %v2534 = vmul.f32 %v2529, %v2533
    %2535 = vrot.lane.b32.xlu0 %v2270, 56
    %v2536 = vpop.permute.xlu0 %2535
    %v2539 = vsel %vm385, %v2534, 0
    %2541 = vmatprep.subr.mxu0 0.0
    %2542 = vmatpush1.msra.mxu0 %v2536
    %2543 = vmatprep.subr.mxu0 0.0
    %2544 = vmatpush1.msra.mxu0 0.0
    %2545 = vmatprep.subr.mxu0 0.0
    %2546 = vmatpush1.msra.mxu0 0.0
    %2547 = vmatprep.subr.mxu0 0.0
    %2548 = vmatpush1.msra.mxu0 0.0
    %2549 = vmatprep.subr.mxu0 0.0
    %2550 = vmatpush1.msra.mxu0 0.0
    %2551 = vmatprep.subr.mxu0 0.0
    %2552 = vmatpush1.msra.mxu0 0.0
    %2553 = vmatprep.subr.mxu0 0.0
    %2554 = vmatpush1.msra.mxu0 0.0
    %2555 = vmatprep.subr.mxu0 0.0
    %2556 = vmatpush1.msra.mxu0 0.0
    %2557 = vmatprep.subr.mxu0 0.0
    %2558 = vmatpush1.msra.mxu0 0.0
    %2559 = vmatprep.subr.mxu0 0.0
    %2560 = vmatpush1.msra.mxu0 0.0
    %2561 = vmatprep.subr.mxu0 0.0
    %2562 = vmatpush1.msra.mxu0 0.0
    %2563 = vmatprep.subr.mxu0 0.0
    %2564 = vmatpush1.msra.mxu0 0.0
    %2565 = vmatprep.subr.mxu0 0.0
    %2566 = vmatpush1.msra.mxu0 0.0
    %2567 = vmatprep.subr.mxu0 0.0
    %2568 = vmatpush1.msra.mxu0 0.0
    %2569 = vmatprep.subr.mxu0 0.0
    %2570 = vmatpush1.msra.mxu0 0.0
    %2571 = vmatprep.subr.mxu0 0.0
    %2572 = vmatpush1.msra.mxu0 0.0
    %2573 = vmatprep.subr.mxu0 0.0
    %2574 = vmatpush1.msra.mxu0 0.0
    %2575 = vmatprep.subr.mxu0 0.0
    %2576 = vmatpush1.msra.mxu0 0.0
    %2577 = vmatprep.subr.mxu0 0.0
    %2578 = vmatpush1.msra.mxu0 0.0
    %2579 = vmatprep.subr.mxu0 0.0
    %2580 = vmatpush1.msra.mxu0 0.0
    %2581 = vmatprep.subr.mxu0 0.0
    %2582 = vmatpush1.msra.mxu0 0.0
    %2583 = vmatprep.subr.mxu0 0.0
    %2584 = vmatpush1.msra.mxu0 0.0
    %2585 = vmatprep.subr.mxu0 0.0
    %2586 = vmatpush1.msra.mxu0 0.0
    %2587 = vmatprep.subr.mxu0 0.0
    %2588 = vmatpush1.msra.mxu0 0.0
    %2589 = vmatprep.subr.mxu0 0.0
    %2590 = vmatpush1.msra.mxu0 0.0
    %2591 = vmatprep.subr.mxu0 0.0
    %2592 = vmatpush1.msra.mxu0 0.0
    %2593 = vmatprep.subr.mxu0 0.0
    %2594 = vmatpush1.msra.mxu0 0.0
    %2595 = vmatprep.subr.mxu0 0.0
    %2596 = vmatpush1.msra.mxu0 0.0
    %2597 = vmatprep.subr.mxu0 0.0
    %2598 = vmatpush1.msra.mxu0 0.0
    %2599 = vmatprep.subr.mxu0 0.0
    %2600 = vmatpush1.msra.mxu0 0.0
    %2601 = vmatprep.subr.mxu0 0.0
    %2602 = vmatpush1.msra.mxu0 0.0
    %2603 = vmatprep.subr.mxu0 0.0
    %2604 = vmatpush1.msra.mxu0 0.0
    %2605 = vmatprep.mubr.f32.mxu0 0.0
    %2606 = vmatmul.mubr.f32.gmra.mrb[0].mxu0 %v2539
    %v2607 = vpop.f32.mrb[0].mxu0
    %v2608 = vadd.f32 0.0, %v2607
    %v2609 = vpop.f32.mrb[0].mxu0
    %2610 = vdwg.mxu0
    %2611 = vrot.lane.b32.xlu0 %v2270, 112
    %v2612 = vpop.permute.xlu0 %2611
    %2613 = vrot.lane.b32.xlu0 %v2270, 80
    %v2614 = vpop.permute.xlu0 %2613
    %v2615 = vsel %vm385, %v2612, 0
    %v2617 = vsel %vm385, %v2614, 0
    %2619 = vmatprep.subr.mxu0 0.0
    %2620 = vmatpush1.xpose.msra.mxu0 %v2617
    %2621 = vmatprep.subr.mxu0 0.0
    %2622 = vmatpush1.xpose.msra.mxu0 0.0
    %2623 = vmatprep.subr.mxu0 0.0
    %2624 = vmatpush1.xpose.msra.mxu0 0.0
    %2625 = vmatprep.subr.mxu0 0.0
    %2626 = vmatpush1.xpose.msra.mxu0 0.0
    %2627 = vmatprep.subr.mxu0 0.0
    %2628 = vmatpush1.xpose.msra.mxu0 0.0
    %2629 = vmatprep.subr.mxu0 0.0
    %2630 = vmatpush1.xpose.msra.mxu0 0.0
    %2631 = vmatprep.subr.mxu0 0.0
    %2632 = vmatpush1.xpose.msra.mxu0 0.0
    %2633 = vmatprep.subr.mxu0 0.0
    %2634 = vmatpush1.xpose.msra.mxu0 0.0
    %2635 = vmatprep.subr.mxu0 0.0
    %2636 = vmatpush1.xpose.msra.mxu0 0.0
    %2637 = vmatprep.subr.mxu0 0.0
    %2638 = vmatpush1.xpose.msra.mxu0 0.0
    %2639 = vmatprep.subr.mxu0 0.0
    %2640 = vmatpush1.xpose.msra.mxu0 0.0
    %2641 = vmatprep.subr.mxu0 0.0
    %2642 = vmatpush1.xpose.msra.mxu0 0.0
    %2643 = vmatprep.subr.mxu0 0.0
    %2644 = vmatpush1.xpose.msra.mxu0 0.0
    %2645 = vmatprep.subr.mxu0 0.0
    %2646 = vmatpush1.xpose.msra.mxu0 0.0
    %2647 = vmatprep.subr.mxu0 0.0
    %2648 = vmatpush1.xpose.msra.mxu0 0.0
    %2649 = vmatprep.subr.mxu0 0.0
    %2650 = vmatpush1.xpose.msra.mxu0 0.0
    %2651 = vmatprep.subr.mxu0 0.0
    %2652 = vmatpush1.xpose.msra.mxu0 0.0
    %2653 = vmatprep.subr.mxu0 0.0
    %2654 = vmatpush1.xpose.msra.mxu0 0.0
    %2655 = vmatprep.subr.mxu0 0.0
    %2656 = vmatpush1.xpose.msra.mxu0 0.0
    %2657 = vmatprep.subr.mxu0 0.0
    %2658 = vmatpush1.xpose.msra.mxu0 0.0
    %2659 = vmatprep.subr.mxu0 0.0
    %2660 = vmatpush1.xpose.msra.mxu0 0.0
    %2661 = vmatprep.subr.mxu0 0.0
    %2662 = vmatpush1.xpose.msra.mxu0 0.0
    %2663 = vmatprep.subr.mxu0 0.0
    %2664 = vmatpush1.xpose.msra.mxu0 0.0
    %2665 = vmatprep.subr.mxu0 0.0
    %2666 = vmatpush1.xpose.msra.mxu0 0.0
    %2667 = vmatprep.subr.mxu0 0.0
    %2668 = vmatpush1.xpose.msra.mxu0 0.0
    %2669 = vmatprep.subr.mxu0 0.0
    %2670 = vmatpush1.xpose.msra.mxu0 0.0
    %2671 = vmatprep.subr.mxu0 0.0
    %2672 = vmatpush1.xpose.msra.mxu0 0.0
    %2673 = vmatprep.subr.mxu0 0.0
    %2674 = vmatpush1.xpose.msra.mxu0 0.0
    %2675 = vmatprep.subr.mxu0 0.0
    %2676 = vmatpush1.xpose.msra.mxu0 0.0
    %2677 = vmatprep.subr.mxu0 0.0
    %2678 = vmatpush1.xpose.msra.mxu0 0.0
    %2679 = vmatprep.subr.mxu0 0.0
    %2680 = vmatpush1.xpose.msra.mxu0 0.0
    %2681 = vmatprep.subr.mxu0 0.0
    %2682 = vmatpush1.xpose.msra.mxu0 0.0
    %2683 = vmatprep.mubr.f32.mxu0 0.0
    %2684 = vmatmul.mubr.f32.gmra.mrb[0].mxu0 %v2615
    %v2685 = vpop.f32.mrb[0].mxu0
    %v2686 = vadd.f32 0.0, %v2685
    %v2687 = vpop.f32.mrb[0].mxu0
    %2688 = vdwg.mxu0
    %v2689 = vmul.f32 %v2686, 0.35355338
    %v2690 = vadd.f32 %v2689, %v464
    %v2691 = vsel %vm385, %v2690, -inf
    %2692 = vmax.xlane.f32.xlu0 %v2691
    %v2693 = vpop.xlane.xlu0 %2692
    %v2694 = vsub.f32 %v2690, %v2693
    %v2695 = vmul.f32 %v2694, 1.442695
    %v2696 = vpow.pop %v2695
    %v2697 = vsel %vm385, %v2696, 0.0
    %2698 = vadd.xlane.f32.xlu0 %v2697
    %v2699 = vpop.xlane.xlu0 %2698
    %v2700 = vrcp.pop %v2699
    %v2701 = vmul.f32 %v2696, %v2700
    %2702 = vrot.lane.b32.xlu0 %v2270, 48
    %v2703 = vpop.permute.xlu0 %2702
    %v2706 = vsel %vm385, %v2701, 0
    %2708 = vmatprep.subr.mxu0 0.0
    %2709 = vmatpush1.msra.mxu0 %v2703
    %2710 = vmatprep.subr.mxu0 0.0
    %2711 = vmatpush1.msra.mxu0 0.0
    %2712 = vmatprep.subr.mxu0 0.0
    %2713 = vmatpush1.msra.mxu0 0.0
    %2714 = vmatprep.subr.mxu0 0.0
    %2715 = vmatpush1.msra.mxu0 0.0
    %2716 = vmatprep.subr.mxu0 0.0
    %2717 = vmatpush1.msra.mxu0 0.0
    %2718 = vmatprep.subr.mxu0 0.0
    %2719 = vmatpush1.msra.mxu0 0.0
    %2720 = vmatprep.subr.mxu0 0.0
    %2721 = vmatpush1.msra.mxu0 0.0
    %2722 = vmatprep.subr.mxu0 0.0
    %2723 = vmatpush1.msra.mxu0 0.0
    %2724 = vmatprep.subr.mxu0 0.0
    %2725 = vmatpush1.msra.mxu0 0.0
    %2726 = vmatprep.subr.mxu0 0.0
    %2727 = vmatpush1.msra.mxu0 0.0
    %2728 = vmatprep.subr.mxu0 0.0
    %2729 = vmatpush1.msra.mxu0 0.0
    %2730 = vmatprep.subr.mxu0 0.0
    %2731 = vmatpush1.msra.mxu0 0.0
    %2732 = vmatprep.subr.mxu0 0.0
    %2733 = vmatpush1.msra.mxu0 0.0
    %2734 = vmatprep.subr.mxu0 0.0
    %2735 = vmatpush1.msra.mxu0 0.0
    %2736 = vmatprep.subr.mxu0 0.0
    %2737 = vmatpush1.msra.mxu0 0.0
    %2738 = vmatprep.subr.mxu0 0.0
    %2739 = vmatpush1.msra.mxu0 0.0
    %2740 = vmatprep.subr.mxu0 0.0
    %2741 = vmatpush1.msra.mxu0 0.0
    %2742 = vmatprep.subr.mxu0 0.0
    %2743 = vmatpush1.msra.mxu0 0.0
    %2744 = vmatprep.subr.mxu0 0.0
    %2745 = vmatpush1.msra.mxu0 0.0
    %2746 = vmatprep.subr.mxu0 0.0
    %2747 = vmatpush1.msra.mxu0 0.0
    %2748 = vmatprep.subr.mxu0 0.0
    %2749 = vmatpush1.msra.mxu0 0.0
    %2750 = vmatprep.subr.mxu0 0.0
    %2751 = vmatpush1.msra.mxu0 0.0
    %2752 = vmatprep.subr.mxu0 0.0
    %2753 = vmatpush1.msra.mxu0 0.0
    %2754 = vmatprep.subr.mxu0 0.0
    %2755 = vmatpush1.msra.mxu0 0.0
    %2756 = vmatprep.subr.mxu0 0.0
    %2757 = vmatpush1.msra.mxu0 0.0
    %2758 = vmatprep.subr.mxu0 0.0
    %2759 = vmatpush1.msra.mxu0 0.0
    %2760 = vmatprep.subr.mxu0 0.0
    %2761 = vmatpush1.msra.mxu0 0.0
    %2762 = vmatprep.subr.mxu0 0.0
    %2763 = vmatpush1.msra.mxu0 0.0
    %2764 = vmatprep.subr.mxu0 0.0
    %2765 = vmatpush1.msra.mxu0 0.0
    %2766 = vmatprep.subr.mxu0 0.0
    %2767 = vmatpush1.msra.mxu0 0.0
    %2768 = vmatprep.subr.mxu0 0.0
    %2769 = vmatpush1.msra.mxu0 0.0
    %2770 = vmatprep.subr.mxu0 0.0
    %2771 = vmatpush1.msra.mxu0 0.0
    %2772 = vmatprep.mubr.f32.mxu0 0.0
    %2773 = vmatmul.mubr.f32.gmra.mrb[0].mxu0 %v2706
    %v2774 = vpop.f32.mrb[0].mxu0
    %v2775 = vadd.f32 0.0, %v2774
    %v2776 = vpop.f32.mrb[0].mxu0
    %2777 = vdwg.mxu0
    %2778 = vrot.lane.b32.xlu0 %v2270, 104
    %v2779 = vpop.permute.xlu0 %2778
    %2780 = vrot.lane.b32.xlu0 %v2270, 72
    %v2781 = vpop.permute.xlu0 %2780
    %v2782 = vsel %vm385, %v2779, 0
    %v2784 = vsel %vm385, %v2781, 0
    %2786 = vmatprep.subr.mxu0 0.0
    %2787 = vmatpush1.xpose.msra.mxu0 %v2784
    %2788 = vmatprep.subr.mxu0 0.0
    %2789 = vmatpush1.xpose.msra.mxu0 0.0
    %2790 = vmatprep.subr.mxu0 0.0
    %2791 = vmatpush1.xpose.msra.mxu0 0.0
    %2792 = vmatprep.subr.mxu0 0.0
    %2793 = vmatpush1.xpose.msra.mxu0 0.0
    %2794 = vmatprep.subr.mxu0 0.0
    %2795 = vmatpush1.xpose.msra.mxu0 0.0
    %2796 = vmatprep.subr.mxu0 0.0
    %2797 = vmatpush1.xpose.msra.mxu0 0.0
    %2798 = vmatprep.subr.mxu0 0.0
    %2799 = vmatpush1.xpose.msra.mxu0 0.0
    %2800 = vmatprep.subr.mxu0 0.0
    %2801 = vmatpush1.xpose.msra.mxu0 0.0
    %2802 = vmatprep.subr.mxu0 0.0
    %2803 = vmatpush1.xpose.msra.mxu0 0.0
    %2804 = vmatprep.subr.mxu0 0.0
    %2805 = vmatpush1.xpose.msra.mxu0 0.0
    %2806 = vmatprep.subr.mxu0 0.0
    %2807 = vmatpush1.xpose.msra.mxu0 0.0
    %2808 = vmatprep.subr.mxu0 0.0
    %2809 = vmatpush1.xpose.msra.mxu0 0.0
    %2810 = vmatprep.subr.mxu0 0.0
    %2811 = vmatpush1.xpose.msra.mxu0 0.0
    %2812 = vmatprep.subr.mxu0 0.0
    %2813 = vmatpush1.xpose.msra.mxu0 0.0
    %2814 = vmatprep.subr.mxu0 0.0
    %2815 = vmatpush1.xpose.msra.mxu0 0.0
    %2816 = vmatprep.subr.mxu0 0.0
    %2817 = vmatpush1.xpose.msra.mxu0 0.0
    %2818 = vmatprep.subr.mxu0 0.0
    %2819 = vmatpush1.xpose.msra.mxu0 0.0
    %2820 = vmatprep.subr.mxu0 0.0
    %2821 = vmatpush1.xpose.msra.mxu0 0.0
    %2822 = vmatprep.subr.mxu0 0.0
    %2823 = vmatpush1.xpose.msra.mxu0 0.0
    %2824 = vmatprep.subr.mxu0 0.0
    %2825 = vmatpush1.xpose.msra.mxu0 0.0
    %2826 = vmatprep.subr.mxu0 0.0
    %2827 = vmatpush1.xpose.msra.mxu0 0.0
    %2828 = vmatprep.subr.mxu0 0.0
    %2829 = vmatpush1.xpose.msra.mxu0 0.0
    %2830 = vmatprep.subr.mxu0 0.0
    %2831 = vmatpush1.xpose.msra.mxu0 0.0
    %2832 = vmatprep.subr.mxu0 0.0
    %2833 = vmatpush1.xpose.msra.mxu0 0.0
    %2834 = vmatprep.subr.mxu0 0.0
    %2835 = vmatpush1.xpose.msra.mxu0 0.0
    %2836 = vmatprep.subr.mxu0 0.0
    %2837 = vmatpush1.xpose.msra.mxu0 0.0
    %2838 = vmatprep.subr.mxu0 0.0
    %2839 = vmatpush1.xpose.msra.mxu0 0.0
    %2840 = vmatprep.subr.mxu0 0.0
    %2841 = vmatpush1.xpose.msra.mxu0 0.0
    %2842 = vmatprep.subr.mxu0 0.0
    %2843 = vmatpush1.xpose.msra.mxu0 0.0
    %2844 = vmatprep.subr.mxu0 0.0
    %2845 = vmatpush1.xpose.msra.mxu0 0.0
    %2846 = vmatprep.subr.mxu0 0.0
    %2847 = vmatpush1.xpose.msra.mxu0 0.0
    %2848 = vmatprep.subr.mxu0 0.0
    %2849 = vmatpush1.xpose.msra.mxu0 0.0
    %2850 = vmatprep.mubr.f32.mxu0 0.0
    %2851 = vmatmul.mubr.f32.gmra.mrb[0].mxu0 %v2782
    %v2852 = vpop.f32.mrb[0].mxu0
    %v2853 = vadd.f32 0.0, %v2852
    %v2854 = vpop.f32.mrb[0].mxu0
    %2855 = vdwg.mxu0
    %v2856 = vmul.f32 %v2853, 0.35355338
    %v2857 = vadd.f32 %v2856, %v464
    %v2858 = vsel %vm385, %v2857, -inf
    %2859 = vmax.xlane.f32.xlu0 %v2858
    %v2860 = vpop.xlane.xlu0 %2859
    %v2861 = vsub.f32 %v2857, %v2860
    %v2862 = vmul.f32 %v2861, 1.442695
    %v2863 = vpow.pop %v2862
    %v2864 = vsel %vm385, %v2863, 0.0
    %2865 = vadd.xlane.f32.xlu0 %v2864
    %v2866 = vpop.xlane.xlu0 %2865
    %v2867 = vrcp.pop %v2866
    %v2868 = vmul.f32 %v2863, %v2867
    %2869 = vrot.lane.b32.xlu0 %v2270, 40
    %v2870 = vpop.permute.xlu0 %2869
    %v2873 = vsel %vm385, %v2868, 0
    %2875 = vmatprep.subr.mxu0 0.0
    %2876 = vmatpush1.msra.mxu0 %v2870
    %2877 = vmatprep.subr.mxu0 0.0
    %2878 = vmatpush1.msra.mxu0 0.0
    %2879 = vmatprep.subr.mxu0 0.0
    %2880 = vmatpush1.msra.mxu0 0.0
    %2881 = vmatprep.subr.mxu0 0.0
    %2882 = vmatpush1.msra.mxu0 0.0
    %2883 = vmatprep.subr.mxu0 0.0
    %2884 = vmatpush1.msra.mxu0 0.0
    %2885 = vmatprep.subr.mxu0 0.0
    %2886 = vmatpush1.msra.mxu0 0.0
    %2887 = vmatprep.subr.mxu0 0.0
    %2888 = vmatpush1.msra.mxu0 0.0
    %2889 = vmatprep.subr.mxu0 0.0
    %2890 = vmatpush1.msra.mxu0 0.0
    %2891 = vmatprep.subr.mxu0 0.0
    %2892 = vmatpush1.msra.mxu0 0.0
    %2893 = vmatprep.subr.mxu0 0.0
    %2894 = vmatpush1.msra.mxu0 0.0
    %2895 = vmatprep.subr.mxu0 0.0
    %2896 = vmatpush1.msra.mxu0 0.0
    %2897 = vmatprep.subr.mxu0 0.0
    %2898 = vmatpush1.msra.mxu0 0.0
    %2899 = vmatprep.subr.mxu0 0.0
    %2900 = vmatpush1.msra.mxu0 0.0
    %2901 = vmatprep.subr.mxu0 0.0
    %2902 = vmatpush1.msra.mxu0 0.0
    %2903 = vmatprep.subr.mxu0 0.0
    %2904 = vmatpush1.msra.mxu0 0.0
    %2905 = vmatprep.subr.mxu0 0.0
    %2906 = vmatpush1.msra.mxu0 0.0
    %2907 = vmatprep.subr.mxu0 0.0
    %2908 = vmatpush1.msra.mxu0 0.0
    %2909 = vmatprep.subr.mxu0 0.0
    %2910 = vmatpush1.msra.mxu0 0.0
    %2911 = vmatprep.subr.mxu0 0.0
    %2912 = vmatpush1.msra.mxu0 0.0
    %2913 = vmatprep.subr.mxu0 0.0
    %2914 = vmatpush1.msra.mxu0 0.0
    %2915 = vmatprep.subr.mxu0 0.0
    %2916 = vmatpush1.msra.mxu0 0.0
    %2917 = vmatprep.subr.mxu0 0.0
    %2918 = vmatpush1.msra.mxu0 0.0
    %2919 = vmatprep.subr.mxu0 0.0
    %2920 = vmatpush1.msra.mxu0 0.0
    %2921 = vmatprep.subr.mxu0 0.0
    %2922 = vmatpush1.msra.mxu0 0.0
    %2923 = vmatprep.subr.mxu0 0.0
    %2924 = vmatpush1.msra.mxu0 0.0
    %2925 = vmatprep.subr.mxu0 0.0
    %2926 = vmatpush1.msra.mxu0 0.0
    %2927 = vmatprep.subr.mxu0 0.0
    %2928 = vmatpush1.msra.mxu0 0.0
    %2929 = vmatprep.subr.mxu0 0.0
    %2930 = vmatpush1.msra.mxu0 0.0
    %2931 = vmatprep.subr.mxu0 0.0
    %2932 = vmatpush1.msra.mxu0 0.0
    %2933 = vmatprep.subr.mxu0 0.0
    %2934 = vmatpush1.msra.mxu0 0.0
    %2935 = vmatprep.subr.mxu0 0.0
    %2936 = vmatpush1.msra.mxu0 0.0
    %2937 = vmatprep.subr.mxu0 0.0
    %2938 = vmatpush1.msra.mxu0 0.0
    %2939 = vmatprep.mubr.f32.mxu0 0.0
    %2940 = vmatmul.mubr.f32.gmra.mrb[0].mxu0 %v2873
    %v2941 = vpop.f32.mrb[0].mxu0
    %v2942 = vadd.f32 0.0, %v2941
    %v2943 = vpop.f32.mrb[0].mxu0
    %2944 = vdwg.mxu0
    %2946 = vrot.lane.b32.xlu0 %v2608, 8
    %v2947 = vpop.permute.xlu0 %2946
    %2950 = vrot.lane.b32.xlu0 %v2775, 16
    %v2951 = vpop.permute.xlu0 %2950
    %2954 = vrot.lane.b32.xlu0 %v2942, 24
    %v2955 = vpop.permute.xlu0 %2954
    %v2957 = vsel %vm385, %v2441, %v2947
    %v2958 = vsel %vm1067, %v2957, %v2951
    %v2959 = vsel %vm1069, %v2958, %v2955
    %2961 = vrot.lane.b32.xlu0 %v2275, 96
    %v2962 = vpop.permute.xlu0 %2961
    %v2963 = vsel %vm385, %v2275, 0
    %v2965 = vsel %vm385, %v2962, 0
    %2967 = vmatprep.subr.mxu0 0.0
    %2968 = vmatpush1.xpose.msra.mxu0 %v2965
    %2969 = vmatprep.subr.mxu0 0.0
    %2970 = vmatpush1.xpose.msra.mxu0 0.0
    %2971 = vmatprep.subr.mxu0 0.0
    %2972 = vmatpush1.xpose.msra.mxu0 0.0
    %2973 = vmatprep.subr.mxu0 0.0
    %2974 = vmatpush1.xpose.msra.mxu0 0.0
    %2975 = vmatprep.subr.mxu0 0.0
    %2976 = vmatpush1.xpose.msra.mxu0 0.0
    %2977 = vmatprep.subr.mxu0 0.0
    %2978 = vmatpush1.xpose.msra.mxu0 0.0
    %2979 = vmatprep.subr.mxu0 0.0
    %2980 = vmatpush1.xpose.msra.mxu0 0.0
    %2981 = vmatprep.subr.mxu0 0.0
    %2982 = vmatpush1.xpose.msra.mxu0 0.0
    %2983 = vmatprep.subr.mxu0 0.0
    %2984 = vmatpush1.xpose.msra.mxu0 0.0
    %2985 = vmatprep.subr.mxu0 0.0
    %2986 = vmatpush1.xpose.msra.mxu0 0.0
    %2987 = vmatprep.subr.mxu0 0.0
    %2988 = vmatpush1.xpose.msra.mxu0 0.0
    %2989 = vmatprep.subr.mxu0 0.0
    %2990 = vmatpush1.xpose.msra.mxu0 0.0
    %2991 = vmatprep.subr.mxu0 0.0
    %2992 = vmatpush1.xpose.msra.mxu0 0.0
    %2993 = vmatprep.subr.mxu0 0.0
    %2994 = vmatpush1.xpose.msra.mxu0 0.0
    %2995 = vmatprep.subr.mxu0 0.0
    %2996 = vmatpush1.xpose.msra.mxu0 0.0
    %2997 = vmatprep.subr.mxu0 0.0
    %2998 = vmatpush1.xpose.msra.mxu0 0.0
    %2999 = vmatprep.subr.mxu0 0.0
    %3000 = vmatpush1.xpose.msra.mxu0 0.0
    %3001 = vmatprep.subr.mxu0 0.0
    %3002 = vmatpush1.xpose.msra.mxu0 0.0
    %3003 = vmatprep.subr.mxu0 0.0
    %3004 = vmatpush1.xpose.msra.mxu0 0.0
    %3005 = vmatprep.subr.mxu0 0.0
    %3006 = vmatpush1.xpose.msra.mxu0 0.0
    %3007 = vmatprep.subr.mxu0 0.0
    %3008 = vmatpush1.xpose.msra.mxu0 0.0
    %3009 = vmatprep.subr.mxu0 0.0
    %3010 = vmatpush1.xpose.msra.mxu0 0.0
    %3011 = vmatprep.subr.mxu0 0.0
    %3012 = vmatpush1.xpose.msra.mxu0 0.0
    %3013 = vmatprep.subr.mxu0 0.0
    %3014 = vmatpush1.xpose.msra.mxu0 0.0
    %3015 = vmatprep.subr.mxu0 0.0
    %3016 = vmatpush1.xpose.msra.mxu0 0.0
    %3017 = vmatprep.subr.mxu0 0.0
    %3018 = vmatpush1.xpose.msra.mxu0 0.0
    %3019 = vmatprep.subr.mxu0 0.0
    %3020 = vmatpush1.xpose.msra.mxu0 0.0
    %3021 = vmatprep.subr.mxu0 0.0
    %3022 = vmatpush1.xpose.msra.mxu0 0.0
    %3023 = vmatprep.subr.mxu0 0.0
    %3024 = vmatpush1.xpose.msra.mxu0 0.0
    %3025 = vmatprep.subr.mxu0 0.0
    %3026 = vmatpush1.xpose.msra.mxu0 0.0
    %3027 = vmatprep.subr.mxu0 0.0
    %3028 = vmatpush1.xpose.msra.mxu0 0.0
    %3029 = vmatprep.subr.mxu0 0.0
    %3030 = vmatpush1.xpose.msra.mxu0 0.0
    %3031 = vmatprep.mubr.f32.mxu0 0.0
    %3032 = vmatmul.mubr.f32.gmra.mrb[0].mxu0 %v2963
    %v3033 = vpop.f32.mrb[0].mxu0
    %v3034 = vadd.f32 0.0, %v3033
    %v3035 = vpop.f32.mrb[0].mxu0
    %3036 = vdwg.mxu0
    %v3037 = vmul.f32 %v3034, 0.35355338
    %v3038 = vadd.f32 %v3037, %v1152
    %v3039 = vsel %vm385, %v3038, -inf
    %3040 = vmax.xlane.f32.xlu0 %v3039
    %v3041 = vpop.xlane.xlu0 %3040
    %v3042 = vsub.f32 %v3038, %v3041
    %v3043 = vmul.f32 %v3042, 1.442695
    %v3044 = vpow.pop %v3043
    %v3045 = vsel %vm385, %v3044, 0.0
    %3046 = vadd.xlane.f32.xlu0 %v3045
    %v3047 = vpop.xlane.xlu0 %3046
    %v3048 = vrcp.pop %v3047
    %v3049 = vmul.f32 %v3044, %v3048
    %3050 = vrot.lane.b32.xlu0 %v2275, 64
    %v3051 = vpop.permute.xlu0 %3050
    %v3054 = vsel %vm385, %v3049, 0
    %3056 = vmatprep.subr.mxu0 0.0
    %3057 = vmatpush1.msra.mxu0 %v3051
    %3058 = vmatprep.subr.mxu0 0.0
    %3059 = vmatpush1.msra.mxu0 0.0
    %3060 = vmatprep.subr.mxu0 0.0
    %3061 = vmatpush1.msra.mxu0 0.0
    %3062 = vmatprep.subr.mxu0 0.0
    %3063 = vmatpush1.msra.mxu0 0.0
    %3064 = vmatprep.subr.mxu0 0.0
    %3065 = vmatpush1.msra.mxu0 0.0
    %3066 = vmatprep.subr.mxu0 0.0
    %3067 = vmatpush1.msra.mxu0 0.0
    %3068 = vmatprep.subr.mxu0 0.0
    %3069 = vmatpush1.msra.mxu0 0.0
    %3070 = vmatprep.subr.mxu0 0.0
    %3071 = vmatpush1.msra.mxu0 0.0
    %3072 = vmatprep.subr.mxu0 0.0
    %3073 = vmatpush1.msra.mxu0 0.0
    %3074 = vmatprep.subr.mxu0 0.0
    %3075 = vmatpush1.msra.mxu0 0.0
    %3076 = vmatprep.subr.mxu0 0.0
    %3077 = vmatpush1.msra.mxu0 0.0
    %3078 = vmatprep.subr.mxu0 0.0
    %3079 = vmatpush1.msra.mxu0 0.0
    %3080 = vmatprep.subr.mxu0 0.0
    %3081 = vmatpush1.msra.mxu0 0.0
    %3082 = vmatprep.subr.mxu0 0.0
    %3083 = vmatpush1.msra.mxu0 0.0
    %3084 = vmatprep.subr.mxu0 0.0
    %3085 = vmatpush1.msra.mxu0 0.0
    %3086 = vmatprep.subr.mxu0 0.0
    %3087 = vmatpush1.msra.mxu0 0.0
    %3088 = vmatprep.subr.mxu0 0.0
    %3089 = vmatpush1.msra.mxu0 0.0
    %3090 = vmatprep.subr.mxu0 0.0
    %3091 = vmatpush1.msra.mxu0 0.0
    %3092 = vmatprep.subr.mxu0 0.0
    %3093 = vmatpush1.msra.mxu0 0.0
    %3094 = vmatprep.subr.mxu0 0.0
    %3095 = vmatpush1.msra.mxu0 0.0
    %3096 = vmatprep.subr.mxu0 0.0
    %3097 = vmatpush1.msra.mxu0 0.0
    %3098 = vmatprep.subr.mxu0 0.0
    %3099 = vmatpush1.msra.mxu0 0.0
    %3100 = vmatprep.subr.mxu0 0.0
    %3101 = vmatpush1.msra.mxu0 0.0
    %3102 = vmatprep.subr.mxu0 0.0
    %3103 = vmatpush1.msra.mxu0 0.0
    %3104 = vmatprep.subr.mxu0 0.0
    %3105 = vmatpush1.msra.mxu0 0.0
    %3106 = vmatprep.subr.mxu0 0.0
    %3107 = vmatpush1.msra.mxu0 0.0
    %3108 = vmatprep.subr.mxu0 0.0
    %3109 = vmatpush1.msra.mxu0 0.0
    %3110 = vmatprep.subr.mxu0 0.0
    %3111 = vmatpush1.msra.mxu0 0.0
    %3112 = vmatprep.subr.mxu0 0.0
    %3113 = vmatpush1.msra.mxu0 0.0
    %3114 = vmatprep.subr.mxu0 0.0
    %3115 = vmatpush1.msra.mxu0 0.0
    %3116 = vmatprep.subr.mxu0 0.0
    %3117 = vmatpush1.msra.mxu0 0.0
    %3118 = vmatprep.subr.mxu0 0.0
    %3119 = vmatpush1.msra.mxu0 0.0
    %3120 = vmatprep.mubr.f32.mxu0 0.0
    %3121 = vmatmul.mubr.f32.gmra.mrb[0].mxu0 %v3054
    %v3122 = vpop.f32.mrb[0].mxu0
    %v3123 = vadd.f32 0.0, %v3122
    %v3124 = vpop.f32.mrb[0].mxu0
    %3125 = vdwg.mxu0
    %3126 = vrot.lane.b32.xlu0 %v2275, 120
    %v3127 = vpop.permute.xlu0 %3126
    %3128 = vrot.lane.b32.xlu0 %v2275, 88
    %v3129 = vpop.permute.xlu0 %3128
    %v3130 = vsel %vm385, %v3127, 0
    %v3132 = vsel %vm385, %v3129, 0
    %3134 = vmatprep.subr.mxu0 0.0
    %3135 = vmatpush1.xpose.msra.mxu0 %v3132
    %3136 = vmatprep.subr.mxu0 0.0
    %3137 = vmatpush1.xpose.msra.mxu0 0.0
    %3138 = vmatprep.subr.mxu0 0.0
    %3139 = vmatpush1.xpose.msra.mxu0 0.0
    %3140 = vmatprep.subr.mxu0 0.0
    %3141 = vmatpush1.xpose.msra.mxu0 0.0
    %3142 = vmatprep.subr.mxu0 0.0
    %3143 = vmatpush1.xpose.msra.mxu0 0.0
    %3144 = vmatprep.subr.mxu0 0.0
    %3145 = vmatpush1.xpose.msra.mxu0 0.0
    %3146 = vmatprep.subr.mxu0 0.0
    %3147 = vmatpush1.xpose.msra.mxu0 0.0
    %3148 = vmatprep.subr.mxu0 0.0
    %3149 = vmatpush1.xpose.msra.mxu0 0.0
    %3150 = vmatprep.subr.mxu0 0.0
    %3151 = vmatpush1.xpose.msra.mxu0 0.0
    %3152 = vmatprep.subr.mxu0 0.0
    %3153 = vmatpush1.xpose.msra.mxu0 0.0
    %3154 = vmatprep.subr.mxu0 0.0
    %3155 = vmatpush1.xpose.msra.mxu0 0.0
    %3156 = vmatprep.subr.mxu0 0.0
    %3157 = vmatpush1.xpose.msra.mxu0 0.0
    %3158 = vmatprep.subr.mxu0 0.0
    %3159 = vmatpush1.xpose.msra.mxu0 0.0
    %3160 = vmatprep.subr.mxu0 0.0
    %3161 = vmatpush1.xpose.msra.mxu0 0.0
    %3162 = vmatprep.subr.mxu0 0.0
    %3163 = vmatpush1.xpose.msra.mxu0 0.0
    %3164 = vmatprep.subr.mxu0 0.0
    %3165 = vmatpush1.xpose.msra.mxu0 0.0
    %3166 = vmatprep.subr.mxu0 0.0
    %3167 = vmatpush1.xpose.msra.mxu0 0.0
    %3168 = vmatprep.subr.mxu0 0.0
    %3169 = vmatpush1.xpose.msra.mxu0 0.0
    %3170 = vmatprep.subr.mxu0 0.0
    %3171 = vmatpush1.xpose.msra.mxu0 0.0
    %3172 = vmatprep.subr.mxu0 0.0
    %3173 = vmatpush1.xpose.msra.mxu0 0.0
    %3174 = vmatprep.subr.mxu0 0.0
    %3175 = vmatpush1.xpose.msra.mxu0 0.0
    %3176 = vmatprep.subr.mxu0 0.0
    %3177 = vmatpush1.xpose.msra.mxu0 0.0
    %3178 = vmatprep.subr.mxu0 0.0
    %3179 = vmatpush1.xpose.msra.mxu0 0.0
    %3180 = vmatprep.subr.mxu0 0.0
    %3181 = vmatpush1.xpose.msra.mxu0 0.0
    %3182 = vmatprep.subr.mxu0 0.0
    %3183 = vmatpush1.xpose.msra.mxu0 0.0
    %3184 = vmatprep.subr.mxu0 0.0
    %3185 = vmatpush1.xpose.msra.mxu0 0.0
    %3186 = vmatprep.subr.mxu0 0.0
    %3187 = vmatpush1.xpose.msra.mxu0 0.0
    %3188 = vmatprep.subr.mxu0 0.0
    %3189 = vmatpush1.xpose.msra.mxu0 0.0
    %3190 = vmatprep.subr.mxu0 0.0
    %3191 = vmatpush1.xpose.msra.mxu0 0.0
    %3192 = vmatprep.subr.mxu0 0.0
    %3193 = vmatpush1.xpose.msra.mxu0 0.0
    %3194 = vmatprep.subr.mxu0 0.0
    %3195 = vmatpush1.xpose.msra.mxu0 0.0
    %3196 = vmatprep.subr.mxu0 0.0
    %3197 = vmatpush1.xpose.msra.mxu0 0.0
    %3198 = vmatprep.mubr.f32.mxu0 0.0
    %3199 = vmatmul.mubr.f32.gmra.mrb[0].mxu0 %v3130
    %v3200 = vpop.f32.mrb[0].mxu0
    %v3201 = vadd.f32 0.0, %v3200
    %v3202 = vpop.f32.mrb[0].mxu0
    %3203 = vdwg.mxu0
    %v3204 = vmul.f32 %v3201, 0.35355338
    %v3205 = vadd.f32 %v3204, %v1152
    %v3206 = vsel %vm385, %v3205, -inf
    %3207 = vmax.xlane.f32.xlu0 %v3206
    %v3208 = vpop.xlane.xlu0 %3207
    %v3209 = vsub.f32 %v3205, %v3208
    %v3210 = vmul.f32 %v3209, 1.442695
    %v3211 = vpow.pop %v3210
    %v3212 = vsel %vm385, %v3211, 0.0
    %3213 = vadd.xlane.f32.xlu0 %v3212
    %v3214 = vpop.xlane.xlu0 %3213
    %v3215 = vrcp.pop %v3214
    %v3216 = vmul.f32 %v3211, %v3215
    %3217 = vrot.lane.b32.xlu0 %v2275, 56
    %v3218 = vpop.permute.xlu0 %3217
    %v3221 = vsel %vm385, %v3216, 0
    %3223 = vmatprep.subr.mxu0 0.0
    %3224 = vmatpush1.msra.mxu0 %v3218
    %3225 = vmatprep.subr.mxu0 0.0
    %3226 = vmatpush1.msra.mxu0 0.0
    %3227 = vmatprep.subr.mxu0 0.0
    %3228 = vmatpush1.msra.mxu0 0.0
    %3229 = vmatprep.subr.mxu0 0.0
    %3230 = vmatpush1.msra.mxu0 0.0
    %3231 = vmatprep.subr.mxu0 0.0
    %3232 = vmatpush1.msra.mxu0 0.0
    %3233 = vmatprep.subr.mxu0 0.0
    %3234 = vmatpush1.msra.mxu0 0.0
    %3235 = vmatprep.subr.mxu0 0.0
    %3236 = vmatpush1.msra.mxu0 0.0
    %3237 = vmatprep.subr.mxu0 0.0
    %3238 = vmatpush1.msra.mxu0 0.0
    %3239 = vmatprep.subr.mxu0 0.0
    %3240 = vmatpush1.msra.mxu0 0.0
    %3241 = vmatprep.subr.mxu0 0.0
    %3242 = vmatpush1.msra.mxu0 0.0
    %3243 = vmatprep.subr.mxu0 0.0
    %3244 = vmatpush1.msra.mxu0 0.0
    %3245 = vmatprep.subr.mxu0 0.0
    %3246 = vmatpush1.msra.mxu0 0.0
    %3247 = vmatprep.subr.mxu0 0.0
    %3248 = vmatpush1.msra.mxu0 0.0
    %3249 = vmatprep.subr.mxu0 0.0
    %3250 = vmatpush1.msra.mxu0 0.0
    %3251 = vmatprep.subr.mxu0 0.0
    %3252 = vmatpush1.msra.mxu0 0.0
    %3253 = vmatprep.subr.mxu0 0.0
    %3254 = vmatpush1.msra.mxu0 0.0
    %3255 = vmatprep.subr.mxu0 0.0
    %3256 = vmatpush1.msra.mxu0 0.0
    %3257 = vmatprep.subr.mxu0 0.0
    %3258 = vmatpush1.msra.mxu0 0.0
    %3259 = vmatprep.subr.mxu0 0.0
    %3260 = vmatpush1.msra.mxu0 0.0
    %3261 = vmatprep.subr.mxu0 0.0
    %3262 = vmatpush1.msra.mxu0 0.0
    %3263 = vmatprep.subr.mxu0 0.0
    %3264 = vmatpush1.msra.mxu0 0.0
    %3265 = vmatprep.subr.mxu0 0.0
    %3266 = vmatpush1.msra.mxu0 0.0
    %3267 = vmatprep.subr.mxu0 0.0
    %3268 = vmatpush1.msra.mxu0 0.0
    %3269 = vmatprep.subr.mxu0 0.0
    %3270 = vmatpush1.msra.mxu0 0.0
    %3271 = vmatprep.subr.mxu0 0.0
    %3272 = vmatpush1.msra.mxu0 0.0
    %3273 = vmatprep.subr.mxu0 0.0
    %3274 = vmatpush1.msra.mxu0 0.0
    %3275 = vmatprep.subr.mxu0 0.0
    %3276 = vmatpush1.msra.mxu0 0.0
    %3277 = vmatprep.subr.mxu0 0.0
    %3278 = vmatpush1.msra.mxu0 0.0
    %3279 = vmatprep.subr.mxu0 0.0
    %3280 = vmatpush1.msra.mxu0 0.0
    %3281 = vmatprep.subr.mxu0 0.0
    %3282 = vmatpush1.msra.mxu0 0.0
    %3283 = vmatprep.subr.mxu0 0.0
    %3284 = vmatpush1.msra.mxu0 0.0
    %3285 = vmatprep.subr.mxu0 0.0
    %3286 = vmatpush1.msra.mxu0 0.0
    %3287 = vmatprep.mubr.f32.mxu0 0.0
    %3288 = vmatmul.mubr.f32.gmra.mrb[0].mxu0 %v3221
    %v3289 = vpop.f32.mrb[0].mxu0
    %v3290 = vadd.f32 0.0, %v3289
    %v3291 = vpop.f32.mrb[0].mxu0
    %3292 = vdwg.mxu0
    %3293 = vrot.lane.b32.xlu0 %v2275, 112
    %v3294 = vpop.permute.xlu0 %3293
    %3295 = vrot.lane.b32.xlu0 %v2275, 80
    %v3296 = vpop.permute.xlu0 %3295
    %v3297 = vsel %vm385, %v3294, 0
    %v3299 = vsel %vm385, %v3296, 0
    %3301 = vmatprep.subr.mxu0 0.0
    %3302 = vmatpush1.xpose.msra.mxu0 %v3299
    %3303 = vmatprep.subr.mxu0 0.0
    %3304 = vmatpush1.xpose.msra.mxu0 0.0
    %3305 = vmatprep.subr.mxu0 0.0
    %3306 = vmatpush1.xpose.msra.mxu0 0.0
    %3307 = vmatprep.subr.mxu0 0.0
    %3308 = vmatpush1.xpose.msra.mxu0 0.0
    %3309 = vmatprep.subr.mxu0 0.0
    %3310 = vmatpush1.xpose.msra.mxu0 0.0
    %3311 = vmatprep.subr.mxu0 0.0
    %3312 = vmatpush1.xpose.msra.mxu0 0.0
    %3313 = vmatprep.subr.mxu0 0.0
    %3314 = vmatpush1.xpose.msra.mxu0 0.0
    %3315 = vmatprep.subr.mxu0 0.0
    %3316 = vmatpush1.xpose.msra.mxu0 0.0
    %3317 = vmatprep.subr.mxu0 0.0
    %3318 = vmatpush1.xpose.msra.mxu0 0.0
    %3319 = vmatprep.subr.mxu0 0.0
    %3320 = vmatpush1.xpose.msra.mxu0 0.0
    %3321 = vmatprep.subr.mxu0 0.0
    %3322 = vmatpush1.xpose.msra.mxu0 0.0
    %3323 = vmatprep.subr.mxu0 0.0
    %3324 = vmatpush1.xpose.msra.mxu0 0.0
    %3325 = vmatprep.subr.mxu0 0.0
    %3326 = vmatpush1.xpose.msra.mxu0 0.0
    %3327 = vmatprep.subr.mxu0 0.0
    %3328 = vmatpush1.xpose.msra.mxu0 0.0
    %3329 = vmatprep.subr.mxu0 0.0
    %3330 = vmatpush1.xpose.msra.mxu0 0.0
    %3331 = vmatprep.subr.mxu0 0.0
    %3332 = vmatpush1.xpose.msra.mxu0 0.0
    %3333 = vmatprep.subr.mxu0 0.0
    %3334 = vmatpush1.xpose.msra.mxu0 0.0
    %3335 = vmatprep.subr.mxu0 0.0
    %3336 = vmatpush1.xpose.msra.mxu0 0.0
    %3337 = vmatprep.subr.mxu0 0.0
    %3338 = vmatpush1.xpose.msra.mxu0 0.0
    %3339 = vmatprep.subr.mxu0 0.0
    %3340 = vmatpush1.xpose.msra.mxu0 0.0
    %3341 = vmatprep.subr.mxu0 0.0
    %3342 = vmatpush1.xpose.msra.mxu0 0.0
    %3343 = vmatprep.subr.mxu0 0.0
    %3344 = vmatpush1.xpose.msra.mxu0 0.0
    %3345 = vmatprep.subr.mxu0 0.0
    %3346 = vmatpush1.xpose.msra.mxu0 0.0
    %3347 = vmatprep.subr.mxu0 0.0
    %3348 = vmatpush1.xpose.msra.mxu0 0.0
    %3349 = vmatprep.subr.mxu0 0.0
    %3350 = vmatpush1.xpose.msra.mxu0 0.0
    %3351 = vmatprep.subr.mxu0 0.0
    %3352 = vmatpush1.xpose.msra.mxu0 0.0
    %3353 = vmatprep.subr.mxu0 0.0
    %3354 = vmatpush1.xpose.msra.mxu0 0.0
    %3355 = vmatprep.subr.mxu0 0.0
    %3356 = vmatpush1.xpose.msra.mxu0 0.0
    %3357 = vmatprep.subr.mxu0 0.0
    %3358 = vmatpush1.xpose.msra.mxu0 0.0
    %3359 = vmatprep.subr.mxu0 0.0
    %3360 = vmatpush1.xpose.msra.mxu0 0.0
    %3361 = vmatprep.subr.mxu0 0.0
    %3362 = vmatpush1.xpose.msra.mxu0 0.0
    %3363 = vmatprep.subr.mxu0 0.0
    %3364 = vmatpush1.xpose.msra.mxu0 0.0
    %3365 = vmatprep.mubr.f32.mxu0 0.0
    %3366 = vmatmul.mubr.f32.gmra.mrb[0].mxu0 %v3297
    %v3367 = vpop.f32.mrb[0].mxu0
    %v3368 = vadd.f32 0.0, %v3367
    %v3369 = vpop.f32.mrb[0].mxu0
    %3370 = vdwg.mxu0
    %v3371 = vmul.f32 %v3368, 0.35355338
    %v3372 = vadd.f32 %v3371, %v1152
    %v3373 = vsel %vm385, %v3372, -inf
    %3374 = vmax.xlane.f32.xlu0 %v3373
    %v3375 = vpop.xlane.xlu0 %3374
    %v3376 = vsub.f32 %v3372, %v3375
    %v3377 = vmul.f32 %v3376, 1.442695
    %v3378 = vpow.pop %v3377
    %v3379 = vsel %vm385, %v3378, 0.0
    %3380 = vadd.xlane.f32.xlu0 %v3379
    %v3381 = vpop.xlane.xlu0 %3380
    %v3382 = vrcp.pop %v3381
    %v3383 = vmul.f32 %v3378, %v3382
    %3384 = vrot.lane.b32.xlu0 %v2275, 48
    %v3385 = vpop.permute.xlu0 %3384
    %v3388 = vsel %vm385, %v3383, 0
    %3390 = vmatprep.subr.mxu0 0.0
    %3391 = vmatpush1.msra.mxu0 %v3385
    %3392 = vmatprep.subr.mxu0 0.0
    %3393 = vmatpush1.msra.mxu0 0.0
    %3394 = vmatprep.subr.mxu0 0.0
    %3395 = vmatpush1.msra.mxu0 0.0
    %3396 = vmatprep.subr.mxu0 0.0
    %3397 = vmatpush1.msra.mxu0 0.0
    %3398 = vmatprep.subr.mxu0 0.0
    %3399 = vmatpush1.msra.mxu0 0.0
    %3400 = vmatprep.subr.mxu0 0.0
    %3401 = vmatpush1.msra.mxu0 0.0
    %3402 = vmatprep.subr.mxu0 0.0
    %3403 = vmatpush1.msra.mxu0 0.0
    %3404 = vmatprep.subr.mxu0 0.0
    %3405 = vmatpush1.msra.mxu0 0.0
    %3406 = vmatprep.subr.mxu0 0.0
    %3407 = vmatpush1.msra.mxu0 0.0
    %3408 = vmatprep.subr.mxu0 0.0
    %3409 = vmatpush1.msra.mxu0 0.0
    %3410 = vmatprep.subr.mxu0 0.0
    %3411 = vmatpush1.msra.mxu0 0.0
    %3412 = vmatprep.subr.mxu0 0.0
    %3413 = vmatpush1.msra.mxu0 0.0
    %3414 = vmatprep.subr.mxu0 0.0
    %3415 = vmatpush1.msra.mxu0 0.0
    %3416 = vmatprep.subr.mxu0 0.0
    %3417 = vmatpush1.msra.mxu0 0.0
    %3418 = vmatprep.subr.mxu0 0.0
    %3419 = vmatpush1.msra.mxu0 0.0
    %3420 = vmatprep.subr.mxu0 0.0
    %3421 = vmatpush1.msra.mxu0 0.0
    %3422 = vmatprep.subr.mxu0 0.0
    %3423 = vmatpush1.msra.mxu0 0.0
    %3424 = vmatprep.subr.mxu0 0.0
    %3425 = vmatpush1.msra.mxu0 0.0
    %3426 = vmatprep.subr.mxu0 0.0
    %3427 = vmatpush1.msra.mxu0 0.0
    %3428 = vmatprep.subr.mxu0 0.0
    %3429 = vmatpush1.msra.mxu0 0.0
    %3430 = vmatprep.subr.mxu0 0.0
    %3431 = vmatpush1.msra.mxu0 0.0
    %3432 = vmatprep.subr.mxu0 0.0
    %3433 = vmatpush1.msra.mxu0 0.0
    %3434 = vmatprep.subr.mxu0 0.0
    %3435 = vmatpush1.msra.mxu0 0.0
    %3436 = vmatprep.subr.mxu0 0.0
    %3437 = vmatpush1.msra.mxu0 0.0
    %3438 = vmatprep.subr.mxu0 0.0
    %3439 = vmatpush1.msra.mxu0 0.0
    %3440 = vmatprep.subr.mxu0 0.0
    %3441 = vmatpush1.msra.mxu0 0.0
    %3442 = vmatprep.subr.mxu0 0.0
    %3443 = vmatpush1.msra.mxu0 0.0
    %3444 = vmatprep.subr.mxu0 0.0
    %3445 = vmatpush1.msra.mxu0 0.0
    %3446 = vmatprep.subr.mxu0 0.0
    %3447 = vmatpush1.msra.mxu0 0.0
    %3448 = vmatprep.subr.mxu0 0.0
    %3449 = vmatpush1.msra.mxu0 0.0
    %3450 = vmatprep.subr.mxu0 0.0
    %3451 = vmatpush1.msra.mxu0 0.0
    %3452 = vmatprep.subr.mxu0 0.0
    %3453 = vmatpush1.msra.mxu0 0.0
    %3454 = vmatprep.mubr.f32.mxu0 0.0
    %3455 = vmatmul.mubr.f32.gmra.mrb[0].mxu0 %v3388
    %v3456 = vpop.f32.mrb[0].mxu0
    %v3457 = vadd.f32 0.0, %v3456
    %v3458 = vpop.f32.mrb[0].mxu0
    %3459 = vdwg.mxu0
    %3460 = vrot.lane.b32.xlu0 %v2275, 104
    %v3461 = vpop.permute.xlu0 %3460
    %3462 = vrot.lane.b32.xlu0 %v2275, 72
    %v3463 = vpop.permute.xlu0 %3462
    %v3464 = vsel %vm385, %v3461, 0
    %v3466 = vsel %vm385, %v3463, 0
    %3468 = vmatprep.subr.mxu0 0.0
    %3469 = vmatpush1.xpose.msra.mxu0 %v3466
    %3470 = vmatprep.subr.mxu0 0.0
    %3471 = vmatpush1.xpose.msra.mxu0 0.0
    %3472 = vmatprep.subr.mxu0 0.0
    %3473 = vmatpush1.xpose.msra.mxu0 0.0
    %3474 = vmatprep.subr.mxu0 0.0
    %3475 = vmatpush1.xpose.msra.mxu0 0.0
    %3476 = vmatprep.subr.mxu0 0.0
    %3477 = vmatpush1.xpose.msra.mxu0 0.0
    %3478 = vmatprep.subr.mxu0 0.0
    %3479 = vmatpush1.xpose.msra.mxu0 0.0
    %3480 = vmatprep.subr.mxu0 0.0
    %3481 = vmatpush1.xpose.msra.mxu0 0.0
    %3482 = vmatprep.subr.mxu0 0.0
    %3483 = vmatpush1.xpose.msra.mxu0 0.0
    %3484 = vmatprep.subr.mxu0 0.0
    %3485 = vmatpush1.xpose.msra.mxu0 0.0
    %3486 = vmatprep.subr.mxu0 0.0
    %3487 = vmatpush1.xpose.msra.mxu0 0.0
    %3488 = vmatprep.subr.mxu0 0.0
    %3489 = vmatpush1.xpose.msra.mxu0 0.0
    %3490 = vmatprep.subr.mxu0 0.0
    %3491 = vmatpush1.xpose.msra.mxu0 0.0
    %3492 = vmatprep.subr.mxu0 0.0
    %3493 = vmatpush1.xpose.msra.mxu0 0.0
    %3494 = vmatprep.subr.mxu0 0.0
    %3495 = vmatpush1.xpose.msra.mxu0 0.0
    %3496 = vmatprep.subr.mxu0 0.0
    %3497 = vmatpush1.xpose.msra.mxu0 0.0
    %3498 = vmatprep.subr.mxu0 0.0
    %3499 = vmatpush1.xpose.msra.mxu0 0.0
    %3500 = vmatprep.subr.mxu0 0.0
    %3501 = vmatpush1.xpose.msra.mxu0 0.0
    %3502 = vmatprep.subr.mxu0 0.0
    %3503 = vmatpush1.xpose.msra.mxu0 0.0
    %3504 = vmatprep.subr.mxu0 0.0
    %3505 = vmatpush1.xpose.msra.mxu0 0.0
    %3506 = vmatprep.subr.mxu0 0.0
    %3507 = vmatpush1.xpose.msra.mxu0 0.0
    %3508 = vmatprep.subr.mxu0 0.0
    %3509 = vmatpush1.xpose.msra.mxu0 0.0
    %3510 = vmatprep.subr.mxu0 0.0
    %3511 = vmatpush1.xpose.msra.mxu0 0.0
    %3512 = vmatprep.subr.mxu0 0.0
    %3513 = vmatpush1.xpose.msra.mxu0 0.0
    %3514 = vmatprep.subr.mxu0 0.0
    %3515 = vmatpush1.xpose.msra.mxu0 0.0
    %3516 = vmatprep.subr.mxu0 0.0
    %3517 = vmatpush1.xpose.msra.mxu0 0.0
    %3518 = vmatprep.subr.mxu0 0.0
    %3519 = vmatpush1.xpose.msra.mxu0 0.0
    %3520 = vmatprep.subr.mxu0 0.0
    %3521 = vmatpush1.xpose.msra.mxu0 0.0
    %3522 = vmatprep.subr.mxu0 0.0
    %3523 = vmatpush1.xpose.msra.mxu0 0.0
    %3524 = vmatprep.subr.mxu0 0.0
    %3525 = vmatpush1.xpose.msra.mxu0 0.0
    %3526 = vmatprep.subr.mxu0 0.0
    %3527 = vmatpush1.xpose.msra.mxu0 0.0
    %3528 = vmatprep.subr.mxu0 0.0
    %3529 = vmatpush1.xpose.msra.mxu0 0.0
    %3530 = vmatprep.subr.mxu0 0.0
    %3531 = vmatpush1.xpose.msra.mxu0 0.0
    %3532 = vmatprep.mubr.f32.mxu0 0.0
    %3533 = vmatmul.mubr.f32.gmra.mrb[0].mxu0 %v3464
    %v3534 = vpop.f32.mrb[0].mxu0
    %v3535 = vadd.f32 0.0, %v3534
    %v3536 = vpop.f32.mrb[0].mxu0
    %3537 = vdwg.mxu0
    %v3538 = vmul.f32 %v3535, 0.35355338
    %v3539 = vadd.f32 %v3538, %v1152
    %v3540 = vsel %vm385, %v3539, -inf
    %3541 = vmax.xlane.f32.xlu0 %v3540
    %v3542 = vpop.xlane.xlu0 %3541
    %v3543 = vsub.f32 %v3539, %v3542
    %v3544 = vmul.f32 %v3543, 1.442695
    %v3545 = vpow.pop %v3544
    %v3546 = vsel %vm385, %v3545, 0.0
    %3547 = vadd.xlane.f32.xlu0 %v3546
    %v3548 = vpop.xlane.xlu0 %3547
    %v3549 = vrcp.pop %v3548
    %v3550 = vmul.f32 %v3545, %v3549
    %3551 = vrot.lane.b32.xlu0 %v2275, 40
    %v3552 = vpop.permute.xlu0 %3551
    %v3555 = vsel %vm385, %v3550, 0
    %3557 = vmatprep.subr.mxu0 0.0
    %3558 = vmatpush1.msra.mxu0 %v3552
    %3559 = vmatprep.subr.mxu0 0.0
    %3560 = vmatpush1.msra.mxu0 0.0
    %3561 = vmatprep.subr.mxu0 0.0
    %3562 = vmatpush1.msra.mxu0 0.0
    %3563 = vmatprep.subr.mxu0 0.0
    %3564 = vmatpush1.msra.mxu0 0.0
    %3565 = vmatprep.subr.mxu0 0.0
    %3566 = vmatpush1.msra.mxu0 0.0
    %3567 = vmatprep.subr.mxu0 0.0
    %3568 = vmatpush1.msra.mxu0 0.0
    %3569 = vmatprep.subr.mxu0 0.0
    %3570 = vmatpush1.msra.mxu0 0.0
    %3571 = vmatprep.subr.mxu0 0.0
    %3572 = vmatpush1.msra.mxu0 0.0
    %3573 = vmatprep.subr.mxu0 0.0
    %3574 = vmatpush1.msra.mxu0 0.0
    %3575 = vmatprep.subr.mxu0 0.0
    %3576 = vmatpush1.msra.mxu0 0.0
    %3577 = vmatprep.subr.mxu0 0.0
    %3578 = vmatpush1.msra.mxu0 0.0
    %3579 = vmatprep.subr.mxu0 0.0
    %3580 = vmatpush1.msra.mxu0 0.0
    %3581 = vmatprep.subr.mxu0 0.0
    %3582 = vmatpush1.msra.mxu0 0.0
    %3583 = vmatprep.subr.mxu0 0.0
    %3584 = vmatpush1.msra.mxu0 0.0
    %3585 = vmatprep.subr.mxu0 0.0
    %3586 = vmatpush1.msra.mxu0 0.0
    %3587 = vmatprep.subr.mxu0 0.0
    %3588 = vmatpush1.msra.mxu0 0.0
    %3589 = vmatprep.subr.mxu0 0.0
    %3590 = vmatpush1.msra.mxu0 0.0
    %3591 = vmatprep.subr.mxu0 0.0
    %3592 = vmatpush1.msra.mxu0 0.0
    %3593 = vmatprep.subr.mxu0 0.0
    %3594 = vmatpush1.msra.mxu0 0.0
    %3595 = vmatprep.subr.mxu0 0.0
    %3596 = vmatpush1.msra.mxu0 0.0
    %3597 = vmatprep.subr.mxu0 0.0
    %3598 = vmatpush1.msra.mxu0 0.0
    %3599 = vmatprep.subr.mxu0 0.0
    %3600 = vmatpush1.msra.mxu0 0.0
    %3601 = vmatprep.subr.mxu0 0.0
    %3602 = vmatpush1.msra.mxu0 0.0
    %3603 = vmatprep.subr.mxu0 0.0
    %3604 = vmatpush1.msra.mxu0 0.0
    %3605 = vmatprep.subr.mxu0 0.0
    %3606 = vmatpush1.msra.mxu0 0.0
    %3607 = vmatprep.subr.mxu0 0.0
    %3608 = vmatpush1.msra.mxu0 0.0
    %3609 = vmatprep.subr.mxu0 0.0
    %3610 = vmatpush1.msra.mxu0 0.0
    %3611 = vmatprep.subr.mxu0 0.0
    %3612 = vmatpush1.msra.mxu0 0.0
    %3613 = vmatprep.subr.mxu0 0.0
    %3614 = vmatpush1.msra.mxu0 0.0
    %3615 = vmatprep.subr.mxu0 0.0
    %3616 = vmatpush1.msra.mxu0 0.0
    %3617 = vmatprep.subr.mxu0 0.0
    %3618 = vmatpush1.msra.mxu0 0.0
    %3619 = vmatprep.subr.mxu0 0.0
    %3620 = vmatpush1.msra.mxu0 0.0
    %3621 = vmatprep.mubr.f32.mxu0 0.0
    %3622 = vmatmul.mubr.f32.gmra.mrb[0].mxu0 %v3555
    %v3623 = vpop.f32.mrb[0].mxu0
    %v3624 = vadd.f32 0.0, %v3623
    %v3625 = vpop.f32.mrb[0].mxu0
    %3626 = vdwg.mxu0
    %3628 = vrot.lane.b32.xlu0 %v3290, 8
    %v3629 = vpop.permute.xlu0 %3628
    %3632 = vrot.lane.b32.xlu0 %v3457, 16
    %v3633 = vpop.permute.xlu0 %3632
    %3636 = vrot.lane.b32.xlu0 %v3624, 24
    %v3637 = vpop.permute.xlu0 %3636
    %v3639 = vsel %vm385, %v3123, %v3629
    %v3640 = vsel %vm1067, %v3639, %v3633
    %v3641 = vsel %vm1069, %v3640, %v3637
    %s3642 = scalar_lea.vmem %s11, 32
    %v3643 = vld [vmem:[%s3642] sm:$0xff]
    %v3644 = vld [vmem:[%s3642 + $0x8] sm:$0xff]
    %v3645 = vld [vmem:[%s3642 + $0x10] sm:$0xff]
    %v3646 = vld [vmem:[%s3642 + $0x18] sm:$0xff]
    %s3647 = scalar_lea.vmem %s12, 1
    %v3648 = vld [vmem:[%s3647] sm:$0x1]
    %v3650 = vlaneseq
    %v3651 = vshrl.u32 %v3650, 7
    %v3652 = vsub.s32 0, %v3651
    %v3653 = vrot.slane %v3648, %v3652
    %v3656 = vsel %vm244, %v2959, 0
    %v3659 = vsel %vm244, %v3641, 0
    %3661 = vmatprep.subr.mxu0 0.0
    %3662 = vmatpush1.msra.mxu0 %v3643
    %3663 = vmatprep.subr.mxu0 0.0
    %3664 = vmatpush1.msra.mxu0 %v3644
    %3665 = vmatprep.subr.mxu0 0.0
    %3666 = vmatpush1.msra.mxu0 %v3645
    %3667 = vmatprep.subr.mxu0 0.0
    %3668 = vmatpush1.msra.mxu0 %v3646
    %3669 = vmatprep.subr.mxu0 0.0
    %3670 = vmatpush1.msra.mxu0 0.0
    %3671 = vmatprep.subr.mxu0 0.0
    %3672 = vmatpush1.msra.mxu0 0.0
    %3673 = vmatprep.subr.mxu0 0.0
    %3674 = vmatpush1.msra.mxu0 0.0
    %3675 = vmatprep.subr.mxu0 0.0
    %3676 = vmatpush1.msra.mxu0 0.0
    %3677 = vmatprep.subr.mxu0 0.0
    %3678 = vmatpush1.msra.mxu0 0.0
    %3679 = vmatprep.subr.mxu0 0.0
    %3680 = vmatpush1.msra.mxu0 0.0
    %3681 = vmatprep.subr.mxu0 0.0
    %3682 = vmatpush1.msra.mxu0 0.0
    %3683 = vmatprep.subr.mxu0 0.0
    %3684 = vmatpush1.msra.mxu0 0.0
    %3685 = vmatprep.subr.mxu0 0.0
    %3686 = vmatpush1.msra.mxu0 0.0
    %3687 = vmatprep.subr.mxu0 0.0
    %3688 = vmatpush1.msra.mxu0 0.0
    %3689 = vmatprep.subr.mxu0 0.0
    %3690 = vmatpush1.msra.mxu0 0.0
    %3691 = vmatprep.subr.mxu0 0.0
    %3692 = vmatpush1.msra.mxu0 0.0
    %3693 = vmatprep.subr.mxu0 0.0
    %3694 = vmatpush1.msra.mxu0 0.0
    %3695 = vmatprep.subr.mxu0 0.0
    %3696 = vmatpush1.msra.mxu0 0.0
    %3697 = vmatprep.subr.mxu0 0.0
    %3698 = vmatpush1.msra.mxu0 0.0
    %3699 = vmatprep.subr.mxu0 0.0
    %3700 = vmatpush1.msra.mxu0 0.0
    %3701 = vmatprep.subr.mxu0 0.0
    %3702 = vmatpush1.msra.mxu0 0.0
    %3703 = vmatprep.subr.mxu0 0.0
    %3704 = vmatpush1.msra.mxu0 0.0
    %3705 = vmatprep.subr.mxu0 0.0
    %3706 = vmatpush1.msra.mxu0 0.0
    %3707 = vmatprep.subr.mxu0 0.0
    %3708 = vmatpush1.msra.mxu0 0.0
    %3709 = vmatprep.subr.mxu0 0.0
    %3710 = vmatpush1.msra.mxu0 0.0
    %3711 = vmatprep.subr.mxu0 0.0
    %3712 = vmatpush1.msra.mxu0 0.0
    %3713 = vmatprep.subr.mxu0 0.0
    %3714 = vmatpush1.msra.mxu0 0.0
    %3715 = vmatprep.subr.mxu0 0.0
    %3716 = vmatpush1.msra.mxu0 0.0
    %3717 = vmatprep.subr.mxu0 0.0
    %3718 = vmatpush1.msra.mxu0 0.0
    %3719 = vmatprep.subr.mxu0 0.0
    %3720 = vmatpush1.msra.mxu0 0.0
    %3721 = vmatprep.subr.mxu0 0.0
    %3722 = vmatpush1.msra.mxu0 0.0
    %3723 = vmatprep.subr.mxu0 0.0
    %3724 = vmatpush1.msra.mxu0 0.0
    %3725 = vmatprep.mubr.f32.mxu0 0.0
    %3726 = vmatmul.mubr.f32.gmra.mrb[0].mxu0 %v3656
    %v3727 = vpop.f32.mrb[0].mxu0
    %v3728 = vadd.f32 %v3653, %v3727
    %v3729 = vpop.f32.mrb[0].mxu0
    %3730 = vmatprep.mubr.f32.mxu0 0.0
    %3731 = vmatmul.mubr.f32.gmra.mrb[0].mxu0 %v3659
    %v3732 = vpop.f32.mrb[0].mxu0
    %v3733 = vadd.f32 %v3653, %v3732
    %v3734 = vpop.f32.mrb[0].mxu0
    %3735 = vdwg.mxu0
    %v3736 = vadd.f32 %v2182, %v3728
    %v3737 = vadd.f32 %v2183, %v3733
    %s3738 = scalar_lea.vmem %s13, 1
    %v3739 = vld [vmem:[%s3738] sm:$0x1]
    %s3740 = scalar_lea.vmem %s14, 1
    %v3741 = vld [vmem:[%s3740] sm:$0x1]
    %v3742 = vsel %vm244, %v3736, 0.0
    %3743 = vadd.xlane.f32.xlu0 %v3742
    %v3744 = vpop.xlane.xlu0 %3743
    %v3745 = vsel %vm244, %v3737, 0.0
    %3746 = vadd.xlane.f32.xlu0 %v3745
    %v3747 = vpop.xlane.xlu0 %3746
    %v3748 = vmul.f32 %v3744, %v251
    %v3749 = vmul.f32 %v3747, %v251
    %v3750 = vsub.f32 %v3736, %v3748
    %v3751 = vsub.f32 %v3737, %v3749
    %v3752 = vmul.f32 %v3750, %v3750
    %v3753 = vmul.f32 %v3751, %v3751
    %v3754 = vsel %vm244, %v3752, 0.0
    %3755 = vadd.xlane.f32.xlu0 %v3754
    %v3756 = vpop.xlane.xlu0 %3755
    %v3757 = vsel %vm244, %v3753, 0.0
    %3758 = vadd.xlane.f32.xlu0 %v3757
    %v3759 = vpop.xlane.xlu0 %3758
    %v3760 = vmul.f32 %v3756, %v251
    %v3761 = vmul.f32 %v3759, %v251
    %v3762 = vadd.f32 %v3760, 1e-12
    %v3763 = vadd.f32 %v3761, 1e-12
    %v3764 = vrsqrt.pop %v3762
    %v3765 = vrsqrt.pop %v3763
    %v3766 = vmul.f32 %v3750, %v3764
    %v3767 = vmul.f32 %v3751, %v3765
    %v3769 = vlaneseq
    %v3770 = vshrl.u32 %v3769, 7
    %v3771 = vsub.s32 0, %v3770
    %v3772 = vrot.slane %v3739, %v3771
    %v3774 = vmul.f32 %v3766, %v3772
    %v3775 = vmul.f32 %v3767, %v3772
    %v3777 = vlaneseq
    %v3778 = vshrl.u32 %v3777, 7
    %v3779 = vsub.s32 0, %v3778
    %v3780 = vrot.slane %v3741, %v3779
    %v3782 = vadd.f32 %v3774, %v3780
    %v3783 = vadd.f32 %v3775, %v3780
    %s3784 = scalar_lea.vmem %s15, 32
    %v3785 = vld [vmem:[%s3784] sm:$0xff]
    %v3786 = vld [vmem:[%s3784 + $0x8] sm:$0xff]
    %v3787 = vld [vmem:[%s3784 + $0x10] sm:$0xff]
    %v3788 = vld [vmem:[%s3784 + $0x18] sm:$0xff]
    %s3789 = scalar_lea.vmem %s16, 1
    %v3790 = vld [vmem:[%s3789] sm:$0x1]
    %v3792 = vlaneseq
    %v3793 = vshrl.u32 %v3792, 7
    %v3794 = vsub.s32 0, %v3793
    %v3795 = vrot.slane %v3790, %v3794
    %v3798 = vsel %vm244, %v3782, 0
    %v3801 = vsel %vm244, %v3783, 0
    %3803 = vmatprep.subr.mxu0 0.0
    %3804 = vmatpush1.msra.mxu0 %v3785
    %3805 = vmatprep.subr.mxu0 0.0
    %3806 = vmatpush1.msra.mxu0 %v3786
    %3807 = vmatprep.subr.mxu0 0.0
    %3808 = vmatpush1.msra.mxu0 %v3787
    %3809 = vmatprep.subr.mxu0 0.0
    %3810 = vmatpush1.msra.mxu0 %v3788
    %3811 = vmatprep.subr.mxu0 0.0
    %3812 = vmatpush1.msra.mxu0 0.0
    %3813 = vmatprep.subr.mxu0 0.0
    %3814 = vmatpush1.msra.mxu0 0.0
    %3815 = vmatprep.subr.mxu0 0.0
    %3816 = vmatpush1.msra.mxu0 0.0
    %3817 = vmatprep.subr.mxu0 0.0
    %3818 = vmatpush1.msra.mxu0 0.0
    %3819 = vmatprep.subr.mxu0 0.0
    %3820 = vmatpush1.msra.mxu0 0.0
    %3821 = vmatprep.subr.mxu0 0.0
    %3822 = vmatpush1.msra.mxu0 0.0
    %3823 = vmatprep.subr.mxu0 0.0
    %3824 = vmatpush1.msra.mxu0 0.0
    %3825 = vmatprep.subr.mxu0 0.0
    %3826 = vmatpush1.msra.mxu0 0.0
    %3827 = vmatprep.subr.mxu0 0.0
    %3828 = vmatpush1.msra.mxu0 0.0
    %3829 = vmatprep.subr.mxu0 0.0
    %3830 = vmatpush1.msra.mxu0 0.0
    %3831 = vmatprep.subr.mxu0 0.0
    %3832 = vmatpush1.msra.mxu0 0.0
    %3833 = vmatprep.subr.mxu0 0.0
    %3834 = vmatpush1.msra.mxu0 0.0
    %3835 = vmatprep.subr.mxu0 0.0
    %3836 = vmatpush1.msra.mxu0 0.0
    %3837 = vmatprep.subr.mxu0 0.0
    %3838 = vmatpush1.msra.mxu0 0.0
    %3839 = vmatprep.subr.mxu0 0.0
    %3840 = vmatpush1.msra.mxu0 0.0
    %3841 = vmatprep.subr.mxu0 0.0
    %3842 = vmatpush1.msra.mxu0 0.0
    %3843 = vmatprep.subr.mxu0 0.0
    %3844 = vmatpush1.msra.mxu0 0.0
    %3845 = vmatprep.subr.mxu0 0.0
    %3846 = vmatpush1.msra.mxu0 0.0
    %3847 = vmatprep.subr.mxu0 0.0
    %3848 = vmatpush1.msra.mxu0 0.0
    %3849 = vmatprep.subr.mxu0 0.0
    %3850 = vmatpush1.msra.mxu0 0.0
    %3851 = vmatprep.subr.mxu0 0.0
    %3852 = vmatpush1.msra.mxu0 0.0
    %3853 = vmatprep.subr.mxu0 0.0
    %3854 = vmatpush1.msra.mxu0 0.0
    %3855 = vmatprep.subr.mxu0 0.0
    %3856 = vmatpush1.msra.mxu0 0.0
    %3857 = vmatprep.subr.mxu0 0.0
    %3858 = vmatpush1.msra.mxu0 0.0
    %3859 = vmatprep.subr.mxu0 0.0
    %3860 = vmatpush1.msra.mxu0 0.0
    %3861 = vmatprep.subr.mxu0 0.0
    %3862 = vmatpush1.msra.mxu0 0.0
    %3863 = vmatprep.subr.mxu0 0.0
    %3864 = vmatpush1.msra.mxu0 0.0
    %3865 = vmatprep.subr.mxu0 0.0
    %3866 = vmatpush1.msra.mxu0 0.0
    %3867 = vmatprep.mubr.f32.mxu0 0.0
    %3868 = vmatmul.mubr.f32.gmra.mrb[0].mxu0 %v3798
    %v3869 = vpop.f32.mrb[0].mxu0
    %v3870 = vadd.f32 %v3795, %v3869
    %v3871 = vpop.f32.mrb[0].mxu0
    %3872 = vmatprep.mubr.f32.mxu0 0.0
    %3873 = vmatmul.mubr.f32.gmra.mrb[0].mxu0 %v3801
    %v3874 = vpop.f32.mrb[0].mxu0
    %v3875 = vadd.f32 %v3795, %v3874
    %v3876 = vpop.f32.mrb[0].mxu0
    %3877 = vdwg.mxu0
    %v3878 = vmul.f32 %v3870, 0.5
    %v3879 = vmul.f32 %v3875, 0.5
    %v3880 = vmul.f32 %v3870, 0.70710677
    %v3881 = vmul.f32 %v3875, 0.70710677
    %v3882 = vand.u32 2147483647, %v3880
    %v3883 = vand.u32 2147483647, %v3881
    %v3884 = vmul.f32 %v3882, 0.3275911
    %v3885 = vmul.f32 %v3883, 0.3275911
    %v3886 = vadd.f32 %v3884, 1.0
    %v3887 = vadd.f32 %v3885, 1.0
    %v3888 = vrcp.pop %v3886
    %v3889 = vmul.f32 1.0, %v3888
    %v3890 = vrcp.pop %v3887
    %v3891 = vmul.f32 1.0, %v3890
    %v3892 = vmul.f32 %v3889, 1.0614054
    %v3893 = vmul.f32 %v3891, 1.0614054
    %v3894 = vadd.f32 %v3892, -1.4531521
    %v3895 = vadd.f32 %v3893, -1.4531521
    %v3896 = vmul.f32 %v3889, %v3894
    %v3897 = vmul.f32 %v3891, %v3895
    %v3898 = vadd.f32 %v3896, 1.4214138
    %v3899 = vadd.f32 %v3897, 1.4214138
    %v3900 = vmul.f32 %v3889, %v3898
    %v3901 = vmul.f32 %v3891, %v3899
    %v3902 = vadd.f32 %v3900, -0.28449672
    %v3903 = vadd.f32 %v3901, -0.28449672
    %v3904 = vmul.f32 %v3889, %v3902
    %v3905 = vmul.f32 %v3891, %v3903
    %v3906 = vadd.f32 %v3904, 0.2548296
    %v3907 = vadd.f32 %v3905, 0.2548296
    %v3908 = vmul.f32 %v3889, %v3906
    %v3909 = vmul.f32 %v3891, %v3907
    %v3910 = vsub.f32 0.0, %v3882
    %v3911 = vsub.f32 0.0, %v3883
    %v3912 = vmul.f32 %v3910, %v3882
    %v3913 = vmul.f32 %v3911, %v3883
    %v3914 = vmul.f32 %v3912, 1.442695
    %v3915 = vpow.pop %v3914
    %v3916 = vmul.f32 %v3913, 1.442695
    %v3917 = vpow.pop %v3916
    %v3918 = vmul.f32 %v3908, %v3915
    %v3919 = vmul.f32 %v3909, %v3917
    %v3920 = vsub.f32 1.0, %v3918
    %v3921 = vsub.f32 1.0, %v3919
    %vm3922 = vcmp.ge.f32.partialorder %v3880, 0.0
    %vm3923 = vcmp.ge.f32.partialorder %v3881, 0.0
    %v3924 = vsub.f32 0.0, %v3920
    %v3925 = vsub.f32 0.0, %v3921
    %v3926 = vsel %vm3922, %v3920, %v3924
    %v3927 = vsel %vm3923, %v3921, %v3925
    %v3928 = vadd.f32 %v3926, 1.0
    %v3929 = vadd.f32 %v3927, 1.0
    %v3930 = vmul.f32 %v3878, %v3928
    %v3931 = vmul.f32 %v3879, %v3929
    %s3932 = scalar_lea.vmem %s17, 64
    %v3933 = vld [vmem:[%s3932] sm:$0xff]
    %v3934 = vld [vmem:[%s3932 + $0x8] sm:$0xff]
    %v3935 = vld [vmem:[%s3932 + $0x10] sm:$0xff]
    %v3936 = vld [vmem:[%s3932 + $0x18] sm:$0xff]
    %v3937 = vld [vmem:[%s3932 + $0x20] sm:$0xff]
    %v3938 = vld [vmem:[%s3932 + $0x28] sm:$0xff]
    %v3939 = vld [vmem:[%s3932 + $0x30] sm:$0xff]
    %v3940 = vld [vmem:[%s3932 + $0x38] sm:$0xff]
    %s3941 = scalar_lea.vmem %s18, 1
    %v3942 = vld [vmem:[%s3941] sm:$0x1]
    %v3944 = vlaneseq
    %v3945 = vshrl.u32 %v3944, 7
    %v3946 = vsub.s32 0, %v3945
    %v3947 = vrot.slane %v3942, %v3946
    %v3950 = vsel %vm2056, %v3930, 0
    %v3953 = vsel %vm2056, %v3931, 0
    %3955 = vmatprep.subr.mxu0 0.0
    %3956 = vmatpush1.msra.mxu0 %v3933
    %3957 = vmatprep.subr.mxu0 0.0
    %3958 = vmatpush1.msra.mxu0 %v3934
    %3959 = vmatprep.subr.mxu0 0.0
    %3960 = vmatpush1.msra.mxu0 %v3935
    %3961 = vmatprep.subr.mxu0 0.0
    %3962 = vmatpush1.msra.mxu0 %v3936
    %3963 = vmatprep.subr.mxu0 0.0
    %3964 = vmatpush1.msra.mxu0 %v3937
    %3965 = vmatprep.subr.mxu0 0.0
    %3966 = vmatpush1.msra.mxu0 %v3938
    %3967 = vmatprep.subr.mxu0 0.0
    %3968 = vmatpush1.msra.mxu0 %v3939
    %3969 = vmatprep.subr.mxu0 0.0
    %3970 = vmatpush1.msra.mxu0 %v3940
    %3971 = vmatprep.subr.mxu0 0.0
    %3972 = vmatpush1.msra.mxu0 0.0
    %3973 = vmatprep.subr.mxu0 0.0
    %3974 = vmatpush1.msra.mxu0 0.0
    %3975 = vmatprep.subr.mxu0 0.0
    %3976 = vmatpush1.msra.mxu0 0.0
    %3977 = vmatprep.subr.mxu0 0.0
    %3978 = vmatpush1.msra.mxu0 0.0
    %3979 = vmatprep.subr.mxu0 0.0
    %3980 = vmatpush1.msra.mxu0 0.0
    %3981 = vmatprep.subr.mxu0 0.0
    %3982 = vmatpush1.msra.mxu0 0.0
    %3983 = vmatprep.subr.mxu0 0.0
    %3984 = vmatpush1.msra.mxu0 0.0
    %3985 = vmatprep.subr.mxu0 0.0
    %3986 = vmatpush1.msra.mxu0 0.0
    %3987 = vmatprep.subr.mxu0 0.0
    %3988 = vmatpush1.msra.mxu0 0.0
    %3989 = vmatprep.subr.mxu0 0.0
    %3990 = vmatpush1.msra.mxu0 0.0
    %3991 = vmatprep.subr.mxu0 0.0
    %3992 = vmatpush1.msra.mxu0 0.0
    %3993 = vmatprep.subr.mxu0 0.0
    %3994 = vmatpush1.msra.mxu0 0.0
    %3995 = vmatprep.subr.mxu0 0.0
    %3996 = vmatpush1.msra.mxu0 0.0
    %3997 = vmatprep.subr.mxu0 0.0
    %3998 = vmatpush1.msra.mxu0 0.0
    %3999 = vmatprep.subr.mxu0 0.0
    %4000 = vmatpush1.msra.mxu0 0.0
    %4001 = vmatprep.subr.mxu0 0.0
    %4002 = vmatpush1.msra.mxu0 0.0
    %4003 = vmatprep.subr.mxu0 0.0
    %4004 = vmatpush1.msra.mxu0 0.0
    %4005 = vmatprep.subr.mxu0 0.0
    %4006 = vmatpush1.msra.mxu0 0.0
    %4007 = vmatprep.subr.mxu0 0.0
    %4008 = vmatpush1.msra.mxu0 0.0
    %4009 = vmatprep.subr.mxu0 0.0
    %4010 = vmatpush1.msra.mxu0 0.0
    %4011 = vmatprep.subr.mxu0 0.0
    %4012 = vmatpush1.msra.mxu0 0.0
    %4013 = vmatprep.subr.mxu0 0.0
    %4014 = vmatpush1.msra.mxu0 0.0
    %4015 = vmatprep.subr.mxu0 0.0
    %4016 = vmatpush1.msra.mxu0 0.0
    %4017 = vmatprep.subr.mxu0 0.0
    %4018 = vmatpush1.msra.mxu0 0.0
    %4019 = vmatprep.mubr.f32.mxu0 0.0
    %4020 = vmatmul.mubr.f32.gmra.mrb[0].mxu0 %v3950
    %v4021 = vpop.f32.mrb[0].mxu0
    %v4022 = vadd.f32 %v3947, %v4021
    %v4023 = vpop.f32.mrb[0].mxu0
    %4024 = vmatprep.mubr.f32.mxu0 0.0
    %4025 = vmatmul.mubr.f32.gmra.mrb[0].mxu0 %v3953
    %v4026 = vpop.f32.mrb[0].mxu0
    %v4027 = vadd.f32 %v3947, %v4026
    %v4028 = vpop.f32.mrb[0].mxu0
    %4029 = vdwg.mxu0
    %v4030 = vadd.f32 %v3782, %v4022
    %v4031 = vadd.f32 %v3783, %v4027
    %s4032 = scalar_lea.vmem %s19, 1
    %v4033 = vld [vmem:[%s4032] sm:$0x1]
    %s4034 = scalar_lea.vmem %s20, 1
    %v4035 = vld [vmem:[%s4034] sm:$0x1]
    %v4036 = vsel %vm244, %v4030, 0.0
    %4037 = vadd.xlane.f32.xlu0 %v4036
    %v4038 = vpop.xlane.xlu0 %4037
    %v4039 = vsel %vm244, %v4031, 0.0
    %4040 = vadd.xlane.f32.xlu0 %v4039
    %v4041 = vpop.xlane.xlu0 %4040
    %v4042 = vmul.f32 %v4038, %v251
    %v4043 = vmul.f32 %v4041, %v251
    %v4044 = vsub.f32 %v4030, %v4042
    %v4045 = vsub.f32 %v4031, %v4043
    %v4046 = vmul.f32 %v4044, %v4044
    %v4047 = vmul.f32 %v4045, %v4045
    %v4048 = vsel %vm244, %v4046, 0.0
    %4049 = vadd.xlane.f32.xlu0 %v4048
    %v4050 = vpop.xlane.xlu0 %4049
    %v4051 = vsel %vm244, %v4047, 0.0
    %4052 = vadd.xlane.f32.xlu0 %v4051
    %v4053 = vpop.xlane.xlu0 %4052
    %v4054 = vmul.f32 %v4050, %v251
    %v4055 = vmul.f32 %v4053, %v251
    %v4056 = vadd.f32 %v4054, 1e-12
    %v4057 = vadd.f32 %v4055, 1e-12
    %v4058 = vrsqrt.pop %v4056
    %v4059 = vrsqrt.pop %v4057
    %v4060 = vmul.f32 %v4044, %v4058
    %v4061 = vmul.f32 %v4045, %v4059
    %v4063 = vlaneseq
    %v4064 = vshrl.u32 %v4063, 7
    %v4065 = vsub.s32 0, %v4064
    %v4066 = vrot.slane %v4033, %v4065
    %v4068 = vmul.f32 %v4060, %v4066
    %v4069 = vmul.f32 %v4061, %v4066
    %v4071 = vlaneseq
    %v4072 = vshrl.u32 %v4071, 7
    %v4073 = vsub.s32 0, %v4072
    %v4074 = vrot.slane %v4035, %v4073
    %v4076 = vadd.f32 %v4068, %v4074
    %v4077 = vadd.f32 %v4069, %v4074
    %v4078 = vld [vmem:[%s21] sm:$0xff]
    %v4079 = vld [vmem:[%s21 + $0x8] sm:$0xff]
    %v4080 = vld [vmem:[%s21 + $0x10] sm:$0xff]
    %v4081 = vld [vmem:[%s21 + $0x18] sm:$0xff]
    %v4082 = vld [vmem:[%s22] sm:$0x1]
    %v4084 = vlaneseq
    %v4085 = vshrl.u32 %v4084, 7
    %v4086 = vsub.s32 0, %v4085
    %v4087 = vrot.slane %v4082, %v4086
    %v4090 = vsel %vm244, %v4076, 0
    %v4093 = vsel %vm244, %v4077, 0
    %4095 = vmatprep.subr.mxu0 0.0
    %4096 = vmatpush1.msra.mxu0 %v4078
    %4097 = vmatprep.subr.mxu0 0.0
    %4098 = vmatpush1.msra.mxu0 %v4079
    %4099 = vmatprep.subr.mxu0 0.0
    %4100 = vmatpush1.msra.mxu0 %v4080
    %4101 = vmatprep.subr.mxu0 0.0
    %4102 = vmatpush1.msra.mxu0 %v4081
    %4103 = vmatprep.subr.mxu0 0.0
    %4104 = vmatpush1.msra.mxu0 0.0
    %4105 = vmatprep.subr.mxu0 0.0
    %4106 = vmatpush1.msra.mxu0 0.0
    %4107 = vmatprep.subr.mxu0 0.0
    %4108 = vmatpush1.msra.mxu0 0.0
    %4109 = vmatprep.subr.mxu0 0.0
    %4110 = vmatpush1.msra.mxu0 0.0
    %4111 = vmatprep.subr.mxu0 0.0
    %4112 = vmatpush1.msra.mxu0 0.0
    %4113 = vmatprep.subr.mxu0 0.0
    %4114 = vmatpush1.msra.mxu0 0.0
    %4115 = vmatprep.subr.mxu0 0.0
    %4116 = vmatpush1.msra.mxu0 0.0
    %4117 = vmatprep.subr.mxu0 0.0
    %4118 = vmatpush1.msra.mxu0 0.0
    %4119 = vmatprep.subr.mxu0 0.0
    %4120 = vmatpush1.msra.mxu0 0.0
    %4121 = vmatprep.subr.mxu0 0.0
    %4122 = vmatpush1.msra.mxu0 0.0
    %4123 = vmatprep.subr.mxu0 0.0
    %4124 = vmatpush1.msra.mxu0 0.0
    %4125 = vmatprep.subr.mxu0 0.0
    %4126 = vmatpush1.msra.mxu0 0.0
    %4127 = vmatprep.subr.mxu0 0.0
    %4128 = vmatpush1.msra.mxu0 0.0
    %4129 = vmatprep.subr.mxu0 0.0
    %4130 = vmatpush1.msra.mxu0 0.0
    %4131 = vmatprep.subr.mxu0 0.0
    %4132 = vmatpush1.msra.mxu0 0.0
    %4133 = vmatprep.subr.mxu0 0.0
    %4134 = vmatpush1.msra.mxu0 0.0
    %4135 = vmatprep.subr.mxu0 0.0
    %4136 = vmatpush1.msra.mxu0 0.0
    %4137 = vmatprep.subr.mxu0 0.0
    %4138 = vmatpush1.msra.mxu0 0.0
    %4139 = vmatprep.subr.mxu0 0.0
    %4140 = vmatpush1.msra.mxu0 0.0
    %4141 = vmatprep.subr.mxu0 0.0
    %4142 = vmatpush1.msra.mxu0 0.0
    %4143 = vmatprep.subr.mxu0 0.0
    %4144 = vmatpush1.msra.mxu0 0.0
    %4145 = vmatprep.subr.mxu0 0.0
    %4146 = vmatpush1.msra.mxu0 0.0
    %4147 = vmatprep.subr.mxu0 0.0
    %4148 = vmatpush1.msra.mxu0 0.0
    %4149 = vmatprep.subr.mxu0 0.0
    %4150 = vmatpush1.msra.mxu0 0.0
    %4151 = vmatprep.subr.mxu0 0.0
    %4152 = vmatpush1.msra.mxu0 0.0
    %4153 = vmatprep.subr.mxu0 0.0
    %4154 = vmatpush1.msra.mxu0 0.0
    %4155 = vmatprep.subr.mxu0 0.0
    %4156 = vmatpush1.msra.mxu0 0.0
    %4157 = vmatprep.subr.mxu0 0.0
    %4158 = vmatpush1.msra.mxu0 0.0
    %4159 = vmatprep.mubr.f32.mxu0 0.0
    %4160 = vmatmul.mubr.f32.gmra.mrb[0].mxu0 %v4090
    %v4161 = vpop.f32.mrb[0].mxu0
    %v4162 = vadd.f32 %v4087, %v4161
    %v4163 = vpop.f32.mrb[0].mxu0
    %4164 = vmatprep.mubr.f32.mxu0 0.0
    %4165 = vmatmul.mubr.f32.gmra.mrb[0].mxu0 %v4093
    %v4166 = vpop.f32.mrb[0].mxu0
    %v4167 = vadd.f32 %v4087, %v4166
    %v4168 = vpop.f32.mrb[0].mxu0
    %4169 = vdwg.mxu0
    %v4170 = vmul.f32 %v4162, 0.5
    %v4171 = vmul.f32 %v4167, 0.5
    %v4172 = vmul.f32 %v4162, 0.70710677
    %v4173 = vmul.f32 %v4167, 0.70710677
    %v4174 = vand.u32 2147483647, %v4172
    %v4175 = vand.u32 2147483647, %v4173
    %v4176 = vmul.f32 %v4174, 0.3275911
    %v4177 = vmul.f32 %v4175, 0.3275911
    %v4178 = vadd.f32 %v4176, 1.0
    %v4179 = vadd.f32 %v4177, 1.0
    %v4180 = vrcp.pop %v4178
    %v4181 = vmul.f32 1.0, %v4180
    %v4182 = vrcp.pop %v4179
    %v4183 = vmul.f32 1.0, %v4182
    %v4184 = vmul.f32 %v4181, 1.0614054
    %v4185 = vmul.f32 %v4183, 1.0614054
    %v4186 = vadd.f32 %v4184, -1.4531521
    %v4187 = vadd.f32 %v4185, -1.4531521
    %v4188 = vmul.f32 %v4181, %v4186
    %v4189 = vmul.f32 %v4183, %v4187
    %v4190 = vadd.f32 %v4188, 1.4214138
    %v4191 = vadd.f32 %v4189, 1.4214138
    %v4192 = vmul.f32 %v4181, %v4190
    %v4193 = vmul.f32 %v4183, %v4191
    %v4194 = vadd.f32 %v4192, -0.28449672
    %v4195 = vadd.f32 %v4193, -0.28449672
    %v4196 = vmul.f32 %v4181, %v4194
    %v4197 = vmul.f32 %v4183, %v4195
    %v4198 = vadd.f32 %v4196, 0.2548296
    %v4199 = vadd.f32 %v4197, 0.2548296
    %v4200 = vmul.f32 %v4181, %v4198
    %v4201 = vmul.f32 %v4183, %v4199
    %v4202 = vsub.f32 0.0, %v4174
    %v4203 = vsub.f32 0.0, %v4175
    %v4204 = vmul.f32 %v4202, %v4174
    %v4205 = vmul.f32 %v4203, %v4175
    %v4206 = vmul.f32 %v4204, 1.442695
    %v4207 = vpow.pop %v4206
    %v4208 = vmul.f32 %v4205, 1.442695
    %v4209 = vpow.pop %v4208
    %v4210 = vmul.f32 %v4200, %v4207
    %v4211 = vmul.f32 %v4201, %v4209
    %v4212 = vsub.f32 1.0, %v4210
    %v4213 = vsub.f32 1.0, %v4211
    %vm4214 = vcmp.ge.f32.partialorder %v4172, 0.0
    %vm4215 = vcmp.ge.f32.partialorder %v4173, 0.0
    %v4216 = vsub.f32 0.0, %v4212
    %v4217 = vsub.f32 0.0, %v4213
    %v4218 = vsel %vm4214, %v4212, %v4216
    %v4219 = vsel %vm4215, %v4213, %v4217
    %v4220 = vadd.f32 %v4218, 1.0
    %v4221 = vadd.f32 %v4219, 1.0
    %v4222 = vmul.f32 %v4170, %v4220
    %v4223 = vmul.f32 %v4171, %v4221
    %v4224 = vld [vmem:[%s23] sm:$0x1]
    %v4225 = vld [vmem:[%s24] sm:$0x1]
    %v4226 = vsel %vm244, %v4222, 0.0
    %4227 = vadd.xlane.f32.xlu0 %v4226
    %v4228 = vpop.xlane.xlu0 %4227
    %v4229 = vsel %vm244, %v4223, 0.0
    %4230 = vadd.xlane.f32.xlu0 %v4229
    %v4231 = vpop.xlane.xlu0 %4230
    %v4232 = vmul.f32 %v4228, %v251
    %v4233 = vmul.f32 %v4231, %v251
    %v4234 = vsub.f32 %v4222, %v4232
    %v4235 = vsub.f32 %v4223, %v4233
    %v4236 = vmul.f32 %v4234, %v4234
    %v4237 = vmul.f32 %v4235, %v4235
    %v4238 = vsel %vm244, %v4236, 0.0
    %4239 = vadd.xlane.f32.xlu0 %v4238
    %v4240 = vpop.xlane.xlu0 %4239
    %v4241 = vsel %vm244, %v4237, 0.0
    %4242 = vadd.xlane.f32.xlu0 %v4241
    %v4243 = vpop.xlane.xlu0 %4242
    %v4244 = vmul.f32 %v4240, %v251
    %v4245 = vmul.f32 %v4243, %v251
    %v4246 = vadd.f32 %v4244, 1e-12
    %v4247 = vadd.f32 %v4245, 1e-12
    %v4248 = vrsqrt.pop %v4246
    %v4249 = vrsqrt.pop %v4247
    %v4250 = vmul.f32 %v4234, %v4248
    %v4251 = vmul.f32 %v4235, %v4249
    %v4253 = vlaneseq
    %v4254 = vshrl.u32 %v4253, 7
    %v4255 = vsub.s32 0, %v4254
    %v4256 = vrot.slane %v4224, %v4255
    %v4258 = vmul.f32 %v4250, %v4256
    %v4259 = vmul.f32 %v4251, %v4256
    %v4261 = vlaneseq
    %v4262 = vshrl.u32 %v4261, 7
    %v4263 = vsub.s32 0, %v4262
    %v4264 = vrot.slane %v4225, %v4263
    %v4266 = vadd.f32 %v4258, %v4264
    %v4267 = vadd.f32 %v4259, %v4264
    %v4268 = vld [vmem:[%s25] sm:$0x1]
    %v4270 = vlaneseq
    %v4271 = vshrl.u32 %v4270, 7
    %v4272 = vsub.s32 0, %v4271
    %v4273 = vrot.slane %v4268, %v4272
    %v4276 = vsel %vm244, %v4266, 0
    %v4279 = vsel %vm244, %v4267, 0
    %v4282 = vsel %vm244, %v97, 0
    %v4285 = vsel %vm244, %v98, 0
    %v4288 = vsel %vm244, %v99, 0
    %v4291 = vsel %vm244, %v100, 0
    %v4294 = vsel %vm244, %v101, 0
    %v4297 = vsel %vm244, %v102, 0
    %v4300 = vsel %vm244, %v103, 0
    %v4303 = vsel %vm244, %v104, 0
    %v4306 = vsel %vm244, %v105, 0
    %v4309 = vsel %vm244, %v106, 0
    %v4312 = vsel %vm244, %v107, 0
    %v4315 = vsel %vm244, %v108, 0
    %v4318 = vsel %vm244, %v109, 0
    %v4321 = vsel %vm244, %v110, 0
    %v4324 = vsel %vm244, %v111, 0
    %v4327 = vsel %vm244, %v112, 0
    %4329 = vmatprep.subr.mxu0 0.0
    %4330 = vmatpush1.xpose.msra.mxu0 %v4282
    %4331 = vmatprep.subr.mxu0 0.0
    %4332 = vmatpush1.xpose.msra.mxu0 %v4285
    %4333 = vmatprep.subr.mxu0 0.0
    %4334 = vmatpush1.xpose.msra.mxu0 %v4288
    %4335 = vmatprep.subr.mxu0 0.0
    %4336 = vmatpush1.xpose.msra.mxu0 %v4291
    %4337 = vmatprep.subr.mxu0 0.0
    %4338 = vmatpush1.xpose.msra.mxu0 %v4294
    %4339 = vmatprep.subr.mxu0 0.0
    %4340 = vmatpush1.xpose.msra.mxu0 %v4297
    %4341 = vmatprep.subr.mxu0 0.0
    %4342 = vmatpush1.xpose.msra.mxu0 %v4300
    %4343 = vmatprep.subr.mxu0 0.0
    %4344 = vmatpush1.xpose.msra.mxu0 %v4303
    %4345 = vmatprep.subr.mxu0 0.0
    %4346 = vmatpush1.xpose.msra.mxu0 %v4306
    %4347 = vmatprep.subr.mxu0 0.0
    %4348 = vmatpush1.xpose.msra.mxu0 %v4309
    %4349 = vmatprep.subr.mxu0 0.0
    %4350 = vmatpush1.xpose.msra.mxu0 %v4312
    %4351 = vmatprep.subr.mxu0 0.0
    %4352 = vmatpush1.xpose.msra.mxu0 %v4315
    %4353 = vmatprep.subr.mxu0 0.0
    %4354 = vmatpush1.xpose.msra.mxu0 %v4318
    %4355 = vmatprep.subr.mxu0 0.0
    %4356 = vmatpush1.xpose.msra.mxu0 %v4321
    %4357 = vmatprep.subr.mxu0 0.0
    %4358 = vmatpush1.xpose.msra.mxu0 %v4324
    %4359 = vmatprep.subr.mxu0 0.0
    %4360 = vmatpush1.xpose.msra.mxu0 %v4327
    %4361 = vmatprep.subr.mxu0 0.0
    %4362 = vmatpush1.xpose.msra.mxu0 0.0
    %4363 = vmatprep.subr.mxu0 0.0
    %4364 = vmatpush1.xpose.msra.mxu0 0.0
    %4365 = vmatprep.subr.mxu0 0.0
    %4366 = vmatpush1.xpose.msra.mxu0 0.0
    %4367 = vmatprep.subr.mxu0 0.0
    %4368 = vmatpush1.xpose.msra.mxu0 0.0
    %4369 = vmatprep.subr.mxu0 0.0
    %4370 = vmatpush1.xpose.msra.mxu0 0.0
    %4371 = vmatprep.subr.mxu0 0.0
    %4372 = vmatpush1.xpose.msra.mxu0 0.0
    %4373 = vmatprep.subr.mxu0 0.0
    %4374 = vmatpush1.xpose.msra.mxu0 0.0
    %4375 = vmatprep.subr.mxu0 0.0
    %4376 = vmatpush1.xpose.msra.mxu0 0.0
    %4377 = vmatprep.subr.mxu0 0.0
    %4378 = vmatpush1.xpose.msra.mxu0 0.0
    %4379 = vmatprep.subr.mxu0 0.0
    %4380 = vmatpush1.xpose.msra.mxu0 0.0
    %4381 = vmatprep.subr.mxu0 0.0
    %4382 = vmatpush1.xpose.msra.mxu0 0.0
    %4383 = vmatprep.subr.mxu0 0.0
    %4384 = vmatpush1.xpose.msra.mxu0 0.0
    %4385 = vmatprep.subr.mxu0 0.0
    %4386 = vmatpush1.xpose.msra.mxu0 0.0
    %4387 = vmatprep.subr.mxu0 0.0
    %4388 = vmatpush1.xpose.msra.mxu0 0.0
    %4389 = vmatprep.subr.mxu0 0.0
    %4390 = vmatpush1.xpose.msra.mxu0 0.0
    %4391 = vmatprep.subr.mxu0 0.0
    %4392 = vmatpush1.xpose.msra.mxu0 0.0
    %4393 = vmatprep.mubr.f32.mxu0 0.0
    %4394 = vmatmul.mubr.f32.gmra.mrb[0].mxu0 %v4276
    %v4395 = vpop.f32.mrb[0].mxu0
    %v4396 = vadd.f32 %v4273, %v4395
    %v4397 = vpop.f32.mrb[0].mxu0
    %4398 = vmatprep.mubr.f32.mxu0 0.0
    %4399 = vmatmul.mubr.f32.gmra.mrb[0].mxu0 %v4279
    %v4400 = vpop.f32.mrb[0].mxu0
    %v4401 = vadd.f32 %v4273, %v4400
    %v4402 = vpop.f32.mrb[0].mxu0
    %4403 = vdwg.mxu0
    %4404 = vst [vmem:[#allocation2] sm:$0xff] %v4396
    %4405 = vst [vmem:[#allocation2 + $0x8] sm:$0xff] %v4401
    %4406 = vmax.xlane.f32.xlu0 %v4396
    %v4407 = vpop.xlane.xlu0 %4406
    %4408 = vmax.xlane.f32.xlu0 %v4401
    %v4409 = vpop.xlane.xlu0 %4408
    %v4410 = vsub.f32 %v4396, %v4407
    %v4411 = vsub.f32 %v4401, %v4409
    %v4412 = vmul.f32 %v4410, 1.442695
    %v4413 = vpow.pop %v4412
    %v4414 = vmul.f32 %v4411, 1.442695
    %v4415 = vpow.pop %v4414
    %4416 = vadd.xlane.f32.xlu0 %v4413
    %v4417 = vpop.xlane.xlu0 %4416
    %4418 = vadd.xlane.f32.xlu0 %v4415
    %v4419 = vpop.xlane.xlu0 %4418
    %v4420 = vlog2.pop %v4417
    %v4421 = vmul.f32 %v4420, 0.6931472
    %v4422 = vlog2.pop %v4419
    %v4423 = vmul.f32 %v4422, 0.6931472
    %v4424 = vsub.f32 %v4410, %v4421
    %v4425 = vsub.f32 %v4411, %v4423
    %4426 = vset.pattern.permute.xlu0 0
    %4427 = vperm.xlu0 %4426, %v95
    %v4428 = vpop.permute.xlu0 %4427
    %4429 = vset.pattern.permute.xlu0 0
    %4430 = vperm.xlu0 %4429, %v96
    %v4431 = vpop.permute.xlu0 %4430
    %vm4432 = vcmp.eq.s32.totalorder %v114, %v4428
    %vm4433 = vcmp.eq.s32.totalorder %v114, %v4431
    %v4434 = vsel %vm4432, 1, 0
    %v4435 = vsel %vm4433, 1, 0
    %v4436 = vcvt.s32.f32 %v4434
    %v4437 = vcvt.s32.f32 %v4435
    %v4438 = vmul.f32 %v4424, %v4436
    %v4439 = vmul.f32 %v4425, %v4437
    %4440 = vadd.xlane.f32.xlu0 %v4438
    %v4441 = vpop.xlane.xlu0 %4440
    %4442 = vadd.xlane.f32.xlu0 %v4439
    %v4443 = vpop.xlane.xlu0 %4442
    %v4444 = vsub.f32 0.0, %v4441
    %v4445 = vsub.f32 0.0, %v4443
    %vm4446 = vcmp.ne.s32.totalorder %v95, 4294967295
    %vm4447 = vcmp.ne.s32.totalorder %v96, 4294967295
    %v4448 = vsel %vm4446, 1, 0
    %v4449 = vsel %vm4447, 1, 0
    %v4450 = vcvt.s32.f32 %v4448
    %v4451 = vcvt.s32.f32 %v4449
    %v4452 = vadd.f32 %v4444, %v4445
    %v4453 = vrot.slane %v4452, 4
    %v4454 = vadd.f32 %v4452, %v4453
    %v4455 = vrot.slane %v4454, 2
    %v4456 = vadd.f32 %v4454, %v4455
    %v4457 = vrot.slane %v4456, 1
    %v4458 = vadd.f32 %v4456, %v4457
    %vm4459 = vcmask 7168
    %v4460 = vsel %vm4459, %v4450, 0.0
    %v4461 = vsel %vm4459, %v4451, 0.0
    %v4462 = vadd.f32 %v4460, %v4461
    %v4463 = vrot.slane %v4462, 4
    %v4464 = vadd.f32 %v4462, %v4463
    %v4465 = vrot.slane %v4464, 2
    %v4466 = vadd.f32 %v4464, %v4465
    %v4467 = vrot.slane %v4466, 1
    %v4468 = vadd.f32 %v4466, %v4467
    %v4469 = vmax.f32 %v4468, 1.0
    %v4470 = vrcp.pop %v4469
    %v4471 = vmul.f32 %v4458, %v4470
    %vm4472 = vcmask 0
    %4473 = vst.msk [vmem:[#allocation4] sm:$0x1] %vm4472, %v4471
    // Predicated region
    $region106: #{bert_mlm_forward.1} parent=1 // pred_check
      _
    $region107: #{bert_mlm_forward.1} parent=1 // pred_check_branch
      %4475 = sbr.rel (0) target = $region109
    $region108: #{bert_mlm_forward.1} parent=1 // pred_region
      %s4477 = ssub.s32 256, 256
      %4478 = vsyncadd [#allocation3], %s4477
      %s4479 = sshll.u32 [#allocation2], 4
      %s4480 = int_to_ptr.vmem [resolvable:$true] %s4479
      %4485 = dma.vmem_to_hbm [thread:$0]  %s4480, 256, %s26, [#allocation3], 128, 128, 8
    $region109: #{bert_mlm_forward.1} parent=1 // pred_fallthru
      _
    // Predicated region
    $region110: #{bert_mlm_forward.1} parent=1 // pred_check
      _
    $region111: #{bert_mlm_forward.1} parent=1 // pred_check_branch
      %4487 = sbr.rel (0) target = $region113
    $region112: #{bert_mlm_forward.1} parent=1 // pred_region
      %s4489 = ssub.s32 16, 16
      %4490 = vsyncadd [#allocation5], %s4489
      %s4492 = sshll.u32 [#allocation4], 4
      %s4493 = int_to_ptr.vmem [resolvable:$true] %s4492
      %4495 = dma.vmem_to_hbm [thread:$0]  %s4493, 16, %s27, [#allocation5]
    $region113: #{bert_mlm_forward.1} parent=1 // pred_fallthru
      _
    // Predicated region
    $region114: #{bert_mlm_forward.1} parent=1 // pred_check
      _
    $region115: #{bert_mlm_forward.1} parent=1 // pred_check_branch
      %4497 = sbr.rel (0) target = $region117
    $region116: #{bert_mlm_forward.1} parent=1 // pred_region
      %4498 = dma.done [#allocation3], 256
    $region117: #{bert_mlm_forward.1} parent=1 // pred_fallthru
      _
    // Predicated region
    $region118: #{bert_mlm_forward.1} parent=1 // pred_check
      _
    $region119: #{bert_mlm_forward.1} parent=1 // pred_check_branch
      %4500 = sbr.rel (0) target = $region121
    $region120: #{bert_mlm_forward.1} parent=1 // pred_region
      %4501 = dma.done [#allocation5], 16
    $region121: #{bert_mlm_forward.1} parent=1 // pred_fallthru
      _
    %4502 = vsyncpa [#allocation3], 1
    %4503 = vsyncpa [#allocation5], 1

</llo_original>
